<compile_context>
chip_gen: v7x
topology: tpu7x:2x2x1
jax: 0.10.0
libtpu: 0.0.40
codegen_flags: <defaults>
</compile_context>

<pallas_src>
import functools

import jax
import jax.numpy as jnp
from jax import lax
from jax.experimental import pallas as pl
from jax.experimental.pallas import tpu as pltpu

MXU_DTYPE = jnp.bfloat16   # matmul operand dtype (accumulation stays f32)
LANE = 128                 # gate slabs padded to vreg lane width
SUBLANE = 8                # f32 sublane quantum (batch tiling)


def _round_up(x, m):
    return ((x + m - 1) // m) * m


def _vmem_limit_bytes():
    """Per-generation scoped-VMEM budget: ~75% of the core's physical VMEM
    (~96 MiB on v5e/v6e's 128 MiB, ~48 MiB on v7x's 64 MiB), clamped to a
    safe [32 MiB, 100 MiB] range. Falls back to 48 MiB if the query fails."""
    cap = 64 * 1024 * 1024
    try:
        cap = int(getattr(pltpu.get_tpu_info(), "vmem_capacity_bytes", cap))
    except Exception:
        pass
    return int(min(max(cap * 3 // 4, 32 * 1024 * 1024), 100 * 1024 * 1024))


# PyTorch gate order in the raw weights is [i, f, g, o]; we place them into
# 128-lane-aligned slabs ordered [i, f, o, g] so ONE sigmoid covers [0:3Hp] and
# ONE tanh covers [3Hp:4Hp] in the serial loop. Padded rows/cols are zero, so
# padding can never leak into the real hidden state or the classifier output.
_SRC_GATE_FOR_SLAB = (0, 1, 3, 2)   # dest slab k  <-  PyTorch gate _SRC_GATE_FOR_SLAB[k]


def _pad_gate_cols(w, H, Hp):
    """(R, 4H) PyTorch-ordered -> (R, 4Hp) slab-ordered [i|f|o|g], zero padded."""
    out = jnp.zeros((w.shape[0], 4 * Hp), w.dtype)
    for slab, src in enumerate(_SRC_GATE_FOR_SLAB):
        out = out.at[:, slab * Hp: slab * Hp + H].set(w[:, src * H:(src + 1) * H])
    return out


# --------------------------------------------------------------------------
# Fused kernel: per-tile input projection + recurrence + (at last tile) head
# --------------------------------------------------------------------------
def _lstm_kernel(maxlen_ref,                       # SMEM (n_bt,) int32  [scalar prefetch]
                 len_ref,                          # VMEM (b_blk, 1) int32
                 x_ref,                            # VMEM (t_blk, b_blk, D) f32 (time-major)
                 w_ih_ref,                         # VMEM (D, 4Hp) bf16   (resident)
                 b_ref,                            # VMEM (1, 4Hp) f32    (resident)
                 w_hh_ref,                         # VMEM (Hp, 4Hp) bf16  (resident)
                 fc_w_ref,                         # VMEM (Hp, 1) f32     (resident)
                 fc_b_ref,                         # VMEM (1, 1) f32      (resident)
                 out_ref,                          # VMEM (b_blk, 1) f32
                 h_ref, c_ref,                     # VMEM (b_blk, Hp) f32 carries
                 pg_ref,                           # VMEM (t_blk, b_blk, 4Hp) f32 staged gates
                 *, hidden_pad, b_blk, t_blk, d_in):
    Hp = hidden_pad
    bi = pl.program_id(0)
    ti = pl.program_id(1)

    @pl.when(ti == 0)
    def _init():
        h_ref[...] = jnp.zeros_like(h_ref)
        c_ref[...] = jnp.zeros_like(c_ref)

    # Skip tiles where every row of this batch tile is already past its length:
    # (h, c) would be frozen for all of them anyway.
    @pl.when(ti * t_blk < maxlen_ref[bi])
    def _compute():
        # Fused input projection for the whole tile: ONE MXU matmul hoisted above
        # the serial loop; result stays in VMEM scratch (no HBM round trip).
        # Time-major input => row order is (t, b), so pg_ref[j] is a dense slab.
        x2d = x_ref[...].reshape(t_blk * b_blk, d_in)
        pg = (jnp.dot(x2d.astype(w_ih_ref.dtype), w_ih_ref[...],
                      preferred_element_type=jnp.float32)
              + b_ref[...])                                   # (t_blk*b_blk, 4Hp) f32
        pg_ref[...] = pg.reshape(t_blk, b_blk, 4 * Hp)

        # Hoisted out of the time loop (lane-broadcast per-row lengths once).
        lens_full = jnp.broadcast_to(len_ref[...], (b_blk, Hp))   # (b_blk, Hp) int32

        # Unrolled inner time loop -> LLO scheduler sees all t_blk steps at once.
        for j in range(t_blk):
            t = ti * t_blk + j                     # global timestep (traced scalar)
            h_prev = h_ref[...]
            c_prev = c_ref[...]

            # Only the recurrent half stays in the serial dependency chain.
            gates = pg_ref[j] + jnp.dot(
                h_prev.astype(w_hh_ref.dtype), w_hh_ref[...],
                preferred_element_type=jnp.float32)            # (b_blk, 4Hp) f32

            # Slab order [i | f | o | g]: one sigmoid, one tanh per step.
            sig = jax.nn.sigmoid(gates[:, :3 * Hp])
            i_g = sig[:, 0 * Hp:1 * Hp]
            f_g = sig[:, 1 * Hp:2 * Hp]
            o_g = sig[:, 2 * Hp:3 * Hp]
            g_g = jnp.tanh(gates[:, 3 * Hp:4 * Hp])

            c_new = f_g * c_prev + i_g * g_g
            h_new = o_g * jnp.tanh(c_new)

            # Freeze state past each sequence's length (packed-LSTM final hidden).
            # NOTE: must stay select-based (jnp.where); multiply-based masking
            # would propagate garbage/NaN from boundary-tile padding.
            valid = t < lens_full                               # (b_blk, Hp) bool
            h_ref[...] = jnp.where(valid, h_new, h_prev)
            c_ref[...] = jnp.where(valid, c_new, c_prev)

    @pl.when(ti == pl.num_programs(1) - 1)
    def _finalize():
        logits = (jnp.dot(h_ref[...], fc_w_ref[...],
                          preferred_element_type=jnp.float32) + fc_b_ref[...])
        out_ref[...] = jax.nn.sigmoid(logits)


# --------------------------------------------------------------------------
# Wrapper
# --------------------------------------------------------------------------
def lstm_classifier_forward(x, lengths, params, *, b_blk=None, t_blk=None,
                            mxu_dtype=MXU_DTYPE):
    """x: (B, T, D) f32 batch-first; lengths: (B,) int. Returns (B,) f32 probs."""
    B, T, D = x.shape
    H = params["w_hh"].shape[0]
    Hp = _round_up(H, LANE)                       # lane-aligned hidden size

    # Batch tile: fill MXU rows, amortize grid-step overhead; >=2 tiles appear
    # for large B so the "parallel" batch axis can split across v7x's two TCs.
    if b_blk is None:
        b_blk = min(_round_up(B, SUBLANE), 128)
    b_blk = _round_up(min(b_blk, _round_up(B, SUBLANE)), SUBLANE)
    Bp = _round_up(B, b_blk)
    n_bt = Bp // b_blk

    # Time tile: amortize per-grid-step overhead over more serial timesteps.
    if t_blk is None:
        t_blk = min(32, T)
    t_blk = min(t_blk, T)
    n_tt = -(-T // t_blk)

    # Pad params to the aligned [i|f|o|g] gate layout. Zero padding cannot leak:
    # padded w_hh rows, fc_w rows and lengths of padded batch rows are zero.
    w_ih_p = _pad_gate_cols(params["w_ih"], H, Hp).astype(mxu_dtype)     # (D, 4Hp)
    w_hh_p = (jnp.zeros((Hp, 4 * Hp), jnp.float32)
              .at[:H, :].set(_pad_gate_cols(params["w_hh"], H, Hp))
              .astype(mxu_dtype))                                        # (Hp, 4Hp)
    b_p = _pad_gate_cols(params["b"], H, Hp)                             # (1, 4Hp) f32
    fc_w_p = jnp.zeros((Hp, 1), jnp.float32).at[:H, :].set(params["fc_w"])

    if Bp != B:
        x = jnp.pad(x, ((0, Bp - B), (0, 0), (0, 0)))
        lengths = jnp.pad(lengths, (0, Bp - B))                # pad rows frozen (len 0)
    lens2d = lengths.reshape(Bp, 1).astype(jnp.int32)
    # Per-batch-tile max length (scalar-prefetched) -> skip fully-frozen time tiles.
    tile_maxlen = lens2d.reshape(n_bt, b_blk).max(axis=1).astype(jnp.int32)

    # Time-major staging: one cheap XLA transpose of x (D bytes/token) so each
    # serial step reads a dense (b_blk, 4Hp) gate slab instead of a strided slice.
    x_tm = jnp.transpose(x, (1, 0, 2))                         # (T, Bp, D)

    kernel = functools.partial(_lstm_kernel, hidden_pad=Hp, b_blk=b_blk,
                               t_blk=t_blk, d_in=D)
    probs = pl.pallas_call(
        kernel,
        out_shape=jax.ShapeDtypeStruct((Bp, 1), jnp.float32),
        grid_spec=pltpu.PrefetchScalarGridSpec(
            num_scalar_prefetch=1,
            grid=(n_bt, n_tt),                   # (batch tiles, time tiles)
            in_specs=[
                pl.BlockSpec((b_blk, 1), lambda bi, ti, ml: (bi, 0)),          # lengths
                pl.BlockSpec((t_blk, b_blk, D), lambda bi, ti, ml: (ti, bi, 0)),  # x (T-major)
                pl.BlockSpec((D, 4 * Hp), lambda bi, ti, ml: (0, 0)),          # W_ih resident
                pl.BlockSpec((1, 4 * Hp), lambda bi, ti, ml: (0, 0)),          # bias resident
                pl.BlockSpec((Hp, 4 * Hp), lambda bi, ti, ml: (0, 0)),         # W_hh resident
                pl.BlockSpec((Hp, 1), lambda bi, ti, ml: (0, 0)),              # fc_w resident
                pl.BlockSpec((1, 1), lambda bi, ti, ml: (0, 0)),               # fc_b resident
            ],
            out_specs=pl.BlockSpec((b_blk, 1), lambda bi, ti, ml: (bi, 0)),
            scratch_shapes=[
                pltpu.VMEM((b_blk, Hp), jnp.float32),              # h carry
                pltpu.VMEM((b_blk, Hp), jnp.float32),              # c carry
                pltpu.VMEM((t_blk, b_blk, 4 * Hp), jnp.float32),   # staged pre-gates
            ]),
        compiler_params=pltpu.CompilerParams(
            # batch axis independent (megacore-shardable on v7x); time axis carries state
            dimension_semantics=("parallel", "arbitrary"),
            vmem_limit_bytes=_vmem_limit_bytes()),
    )(tile_maxlen, lens2d, x_tm, w_ih_p, b_p, w_hh_p, fc_w_p, params["fc_b"])

    return probs[:B, 0]                                        # .squeeze()


# --------------------------------------------------------------------------
# Pure-JAX f32 reference (same math, lax.scan) for the correctness check
# --------------------------------------------------------------------------
def lstm_classifier_reference(x, lengths, params):
    B, T, D = x.shape
    H = params["w_hh"].shape[0]
    x_tm = jnp.transpose(x, (1, 0, 2))
    mask = (jnp.arange(T, dtype=jnp.int32)[:, None]
            < lengths[None, :]).astype(jnp.float32)[:, :, None]

    def step(carry, inp):
        h, c = carry
        x_t, m = inp
        gates = x_t @ params["w_ih"] + h @ params["w_hh"] + params["b"]
        i = jax.nn.sigmoid(gates[:, 0:H])
        f = jax.nn.sigmoid(gates[:, H:2 * H])
        g = jnp.tanh(gates[:, 2 * H:3 * H])
        o = jax.nn.sigmoid(gates[:, 3 * H:4 * H])
        c_new = f * c + i * g
        h_new = o * jnp.tanh(c_new)
        return (m * h_new + (1.0 - m) * h, m * c_new + (1.0 - m) * c), None

    init = (jnp.zeros((B, H), jnp.float32), jnp.zeros((B, H), jnp.float32))
    (h, _), _ = lax.scan(step, init, (x_tm, mask))
    return jax.nn.sigmoid(h @ params["fc_w"] + params["fc_b"])[:, 0]


def init_params(key, input_size, hidden_size):
    """Deterministic init mirroring nn.LSTM/nn.Linear (uniform +-1/sqrt(H)),
    PyTorch gate order [i, f, g, o], b = b_ih + b_hh fused."""
    H = hidden_size
    k_wi, k_wh, k_bi, k_bh, k_fw, k_fb = jax.random.split(key, 6)
    bound = 1.0 / jnp.sqrt(jnp.float32(H))
    u = lambda k, shape: jax.random.uniform(k, shape, jnp.float32, -bound, bound)
    return {
        "w_ih": u(k_wi, (input_size, 4 * H)),   # PyTorch (4H, D) stored transposed
        "w_hh": u(k_wh, (H, 4 * H)),
        "b": u(k_bi, (1, 4 * H)) + u(k_bh, (1, 4 * H)),
        "fc_w": u(k_fw, (H, 1)),
        "fc_b": u(k_fb, (1, 1)),
    }


if __name__ == "__main__":
    # batch, seq len, input_size (num features), hidden_size
    B, T, D, H = 4, 16, 16, 32

    key = jax.random.PRNGKey(0)
    k_x, k_len, k_p = jax.random.split(key, 3)

    x = jax.random.normal(k_x, (B, T, D), dtype=jnp.float32)
    lengths = jax.random.randint(k_len, (B,), 1, T + 1, dtype=jnp.int32)
    params = init_params(k_p, D, H)

    out = jax.block_until_ready(lstm_classifier_forward(x, lengths, params))
    ref = jax.block_until_ready(lstm_classifier_reference(x, lengths, params))

    assert out.shape == (B,), out.shape
    # bf16 MXU operands (f32 accumulation) vs the pure-f32 reference -> loosened tol.
    assert jnp.allclose(out, ref, atol=2e-2, rtol=0.0), (out, ref)
    print("KERNEL_OK")
</pallas_src>

<mosaic_0001>
module attributes {stable_mosaic.version = 11 : i64} {
  func.func @_lstm_kernel(%arg0: i32, %arg1: i32, %arg2: memref<1xi32, #tpu.memory_space<smem>>, %arg3: memref<8x1xi32, #tpu.memory_space<vmem>>, %arg4: memref<16x8x16xf32, #tpu.memory_space<vmem>>, %arg5: memref<16x512xbf16, #tpu.memory_space<vmem>>, %arg6: memref<1x512xf32, #tpu.memory_space<vmem>>, %arg7: memref<128x512xbf16, #tpu.memory_space<vmem>>, %arg8: memref<128x1xf32, #tpu.memory_space<vmem>>, %arg9: memref<1x1xf32, #tpu.memory_space<vmem>>, %arg10: memref<8x1xf32, #tpu.memory_space<vmem>>, %arg11: memref<8x128xf32, #tpu.memory_space<vmem>>, %arg12: memref<8x128xf32, #tpu.memory_space<vmem>>, %arg13: memref<16x8x512xf32, #tpu.memory_space<vmem>>) attributes {dimension_semantics = [#tpu.dimension_semantics<parallel>, #tpu.dimension_semantics<arbitrary>], iteration_bounds = array<i64: 1, 1>, scalar_prefetch = 1 : i64, scratch_operands = 3 : i64, tpu.core_type = #tpu.core_type<tc>, window_params = [{transform_indices = @transform_0, window_bounds = array<i64: 8, 1>}, {transform_indices = @transform_1, window_bounds = array<i64: 16, 8, 16>}, {pipeline_mode = #tpu.pipeline_mode<synchronous>, transform_indices = @transform_2, window_bounds = array<i64: 16, 512>}, {pipeline_mode = #tpu.pipeline_mode<synchronous>, transform_indices = @transform_3, window_bounds = array<i64: 1, 512>}, {pipeline_mode = #tpu.pipeline_mode<synchronous>, transform_indices = @transform_4, window_bounds = array<i64: 128, 512>}, {pipeline_mode = #tpu.pipeline_mode<synchronous>, transform_indices = @transform_5, window_bounds = array<i64: 128, 1>}, {pipeline_mode = #tpu.pipeline_mode<synchronous>, transform_indices = @transform_6, window_bounds = array<i64: 1, 1>}, {transform_indices = @transform_7, window_bounds = array<i64: 8, 1>}]} {
    %c0_i32 = arith.constant 0 : i32
    %0 = arith.cmpi eq, %arg1, %c0_i32 : i32
    %1 = arith.extui %0 : i1 to i32
    %c0_i32_0 = arith.constant 0 : i32
    %2 = arith.cmpi ne, %1, %c0_i32_0 : i32
    scf.if %2 {
      %cst = arith.constant 0.000000e+00 : f32
      %12 = vector.broadcast %cst : f32 to vector<8x128xf32>
      %c0 = arith.constant 0 : index
      %c0_4 = arith.constant 0 : index
      %13 = vector.load %arg11[%c0, %c0_4] : memref<8x128xf32, #tpu.memory_space<vmem>>, vector<8x128xf32>
      tpu.vector_store %arg11[%c0, %c0_4], %12 {strides = array<i32>} : memref<8x128xf32, #tpu.memory_space<vmem>>, vector<8x128xf32>,
      %cst_5 = arith.constant 0.000000e+00 : f32
      %14 = vector.broadcast %cst_5 : f32 to vector<8x128xf32>
      %c0_6 = arith.constant 0 : index
      %c0_7 = arith.constant 0 : index
      %15 = vector.load %arg12[%c0_6, %c0_7] : memref<8x128xf32, #tpu.memory_space<vmem>>, vector<8x128xf32>
      tpu.vector_store %arg12[%c0_6, %c0_7], %14 {strides = array<i32>} : memref<8x128xf32, #tpu.memory_space<vmem>>, vector<8x128xf32>,
    } else {
    }
    %c16_i32 = arith.constant 16 : i32
    %3 = arith.muli %arg1, %c16_i32 : i32
    %4 = arith.index_cast %arg0 : i32 to index
    %5 = memref.load %arg2[%4] : memref<1xi32, #tpu.memory_space<smem>>
    %6 = arith.cmpi slt, %3, %5 : i32
    %7 = arith.extui %6 : i1 to i32
    %c0_i32_1 = arith.constant 0 : i32
    %8 = arith.cmpi ne, %7, %c0_i32_1 : i32
    scf.if %8 {
      %c0 = arith.constant 0 : index
      %c0_4 = arith.constant 0 : index
      %c0_5 = arith.constant 0 : index
      %12 = vector.load %arg4[%c0, %c0_4, %c0_5] : memref<16x8x16xf32, #tpu.memory_space<vmem>>, vector<16x8x16xf32>
      %13 = vector.shape_cast %12 : vector<16x8x16xf32> to vector<128x16xf32>
      %14 = arith.truncf %13 : vector<128x16xf32> to vector<128x16xbf16>
      %c0_6 = arith.constant 0 : index
      %c0_7 = arith.constant 0 : index
      %15 = vector.load %arg5[%c0_6, %c0_7] : memref<16x512xbf16, #tpu.memory_space<vmem>>, vector<16x512xbf16>
      %cst = arith.constant dense<0.000000e+00> : vector<128x512xf32>
      %16 = tpu.matmul %14, %15, %cst {dimension_numbers = #tpu.dot_dimension_numbers<[1], [0], [0], [1], [0, 0, 1, 1], [], []>} : vector<128x16xbf16>, vector<16x512xbf16>, vector<128x512xf32> -> vector<128x512xf32>
      %c0_8 = arith.constant 0 : index
      %c0_9 = arith.constant 0 : index
      %17 = vector.load %arg6[%c0_8, %c0_9] : memref<1x512xf32, #tpu.memory_space<vmem>>, vector<1x512xf32>
      %18 = vector.broadcast %17 : vector<1x512xf32> to vector<128x512xf32>
      %19 = arith.addf %16, %18 : vector<128x512xf32>
      %20 = vector.shape_cast %19 : vector<128x512xf32> to vector<16x8x512xf32>
      %c0_10 = arith.constant 0 : index
      %c0_11 = arith.constant 0 : index
      %c0_12 = arith.constant 0 : index
      %21 = vector.load %arg13[%c0_10, %c0_11, %c0_12] : memref<16x8x512xf32, #tpu.memory_space<vmem>>, vector<16x8x512xf32>
      tpu.vector_store %arg13[%c0_10, %c0_11, %c0_12], %20 {strides = array<i32>} : memref<16x8x512xf32, #tpu.memory_space<vmem>>, vector<16x8x512xf32>,
      %c0_13 = arith.constant 0 : index
      %c0_14 = arith.constant 0 : index
      %22 = vector.load %arg3[%c0_13, %c0_14] : memref<8x1xi32, #tpu.memory_space<vmem>>, vector<8x1xi32>
      %23 = vector.shape_cast %22 : vector<8x1xi32> to vector<8x1xi32>
      %24 = vector.broadcast %23 : vector<8x1xi32> to vector<8x128xi32>
      %c16_i32_15 = arith.constant 16 : i32
      %25 = arith.muli %arg1, %c16_i32_15 : i32
      %c0_i32_16 = arith.constant 0 : i32
      %26 = arith.addi %25, %c0_i32_16 : i32
      %c0_17 = arith.constant 0 : index
      %c0_18 = arith.constant 0 : index
      %27 = vector.load %arg11[%c0_17, %c0_18] : memref<8x128xf32, #tpu.memory_space<vmem>>, vector<8x128xf32>
      %c0_19 = arith.constant 0 : index
      %c0_20 = arith.constant 0 : index
      %28 = vector.load %arg12[%c0_19, %c0_20] : memref<8x128xf32, #tpu.memory_space<vmem>>, vector<8x128xf32>
      %c0_21 = arith.constant 0 : index
      %c0_22 = arith.constant 0 : index
      %c0_23 = arith.constant 0 : index
      %29 = vector.load %arg13[%c0_21, %c0_22, %c0_23] : memref<16x8x512xf32, #tpu.memory_space<vmem>>, vector<1x8x512xf32>
      %30 = vector.shape_cast %29 : vector<1x8x512xf32> to vector<8x512xf32>
      %31 = arith.truncf %27 : vector<8x128xf32> to vector<8x128xbf16>
      %c0_24 = arith.constant 0 : index
      %c0_25 = arith.constant 0 : index
      %32 = vector.load %arg7[%c0_24, %c0_25] : memref<128x512xbf16, #tpu.memory_space<vmem>>, vector<128x512xbf16>
      %cst_26 = arith.constant dense<0.000000e+00> : vector<8x512xf32>
      %33 = tpu.matmul %31, %32, %cst_26 {dimension_numbers = #tpu.dot_dimension_numbers<[1], [0], [0], [1], [0, 0, 1, 1], [], []>} : vector<8x128xbf16>, vector<128x512xbf16>, vector<8x512xf32> -> vector<8x512xf32>
      %34 = arith.addf %30, %33 : vector<8x512xf32>
      %35 = vector.extract_strided_slice %34 {offsets = [0, 0], sizes = [8, 384], strides = [1, 1]} : vector<8x512xf32> to vector<8x384xf32>
      %36 = arith.negf %35 : vector<8x384xf32>
      %37 = math.exp %36 : vector<8x384xf32>
      %cst_27 = arith.constant 1.000000e+00 : f32
      %38 = vector.broadcast %cst_27 : f32 to vector<8x384xf32>
      %39 = arith.addf %38, %37 : vector<8x384xf32>
      %40 = arith.divf %38, %39 : vector<8x384xf32>
      %41 = vector.extract_strided_slice %40 {offsets = [0, 0], sizes = [8, 128], strides = [1, 1]} : vector<8x384xf32> to vector<8x128xf32>
      %42 = vector.extract_strided_slice %40 {offsets = [0, 128], sizes = [8, 128], strides = [1, 1]} : vector<8x384xf32> to vector<8x128xf32>
      %43 = vector.extract_strided_slice %40 {offsets = [0, 256], sizes = [8, 128], strides = [1, 1]} : vector<8x384xf32> to vector<8x128xf32>
      %44 = vector.extract_strided_slice %34 {offsets = [0, 384], sizes = [8, 128], strides = [1, 1]} : vector<8x512xf32> to vector<8x128xf32>
      %45 = math.tanh %44 : vector<8x128xf32>
      %46 = arith.mulf %42, %28 : vector<8x128xf32>
      %47 = arith.mulf %41, %45 : vector<8x128xf32>
      %48 = arith.addf %46, %47 : vector<8x128xf32>
      %49 = math.tanh %48 : vector<8x128xf32>
      %50 = arith.mulf %43, %49 : vector<8x128xf32>
      %51 = vector.broadcast %26 : i32 to vector<8x128xi32>
      %52 = arith.cmpi slt, %51, %24 : vector<8x128xi32>
      %53 = arith.select %52, %50, %27 : vector<8x128xi1>, vector<8x128xf32>
      %c0_28 = arith.constant 0 : index
      %c0_29 = arith.constant 0 : index
      %54 = vector.load %arg11[%c0_28, %c0_29] : memref<8x128xf32, #tpu.memory_space<vmem>>, vector<8x128xf32>
      tpu.vector_store %arg11[%c0_28, %c0_29], %53 {strides = array<i32>} : memref<8x128xf32, #tpu.memory_space<vmem>>, vector<8x128xf32>,
      %55 = arith.select %52, %48, %28 : vector<8x128xi1>, vector<8x128xf32>
      %c0_30 = arith.constant 0 : index
      %c0_31 = arith.constant 0 : index
      %56 = vector.load %arg12[%c0_30, %c0_31] : memref<8x128xf32, #tpu.memory_space<vmem>>, vector<8x128xf32>
      tpu.vector_store %arg12[%c0_30, %c0_31], %55 {strides = array<i32>} : memref<8x128xf32, #tpu.memory_space<vmem>>, vector<8x128xf32>,
      %c16_i32_32 = arith.constant 16 : i32
      %57 = arith.muli %arg1, %c16_i32_32 : i32
      %c1_i32 = arith.constant 1 : i32
      %58 = arith.addi %57, %c1_i32 : i32
      %c0_33 = arith.constant 0 : index
      %c0_34 = arith.constant 0 : index
      %59 = vector.load %arg11[%c0_33, %c0_34] : memref<8x128xf32, #tpu.memory_space<vmem>>, vector<8x128xf32>
      %c0_35 = arith.constant 0 : index
      %c0_36 = arith.constant 0 : index
      %60 = vector.load %arg12[%c0_35, %c0_36] : memref<8x128xf32, #tpu.memory_space<vmem>>, vector<8x128xf32>
      %c1 = arith.constant 1 : index
      %c0_37 = arith.constant 0 : index
      %c0_38 = arith.constant 0 : index
      %61 = vector.load %arg13[%c1, %c0_37, %c0_38] : memref<16x8x512xf32, #tpu.memory_space<vmem>>, vector<1x8x512xf32>
      %62 = vector.shape_cast %61 : vector<1x8x512xf32> to vector<8x512xf32>
      %63 = arith.truncf %59 : vector<8x128xf32> to vector<8x128xbf16>
      %c0_39 = arith.constant 0 : index
      %c0_40 = arith.constant 0 : index
      %64 = vector.load %arg7[%c0_39, %c0_40] : memref<128x512xbf16, #tpu.memory_space<vmem>>, vector<128x512xbf16>
      %cst_41 = arith.constant dense<0.000000e+00> : vector<8x512xf32>
      %65 = tpu.matmul %63, %64, %cst_41 {dimension_numbers = #tpu.dot_dimension_numbers<[1], [0], [0], [1], [0, 0, 1, 1], [], []>} : vector<8x128xbf16>, vector<128x512xbf16>, vector<8x512xf32> -> vector<8x512xf32>
      %66 = arith.addf %62, %65 : vector<8x512xf32>
      %67 = vector.extract_strided_slice %66 {offsets = [0, 0], sizes = [8, 384], strides = [1, 1]} : vector<8x512xf32> to vector<8x384xf32>
      %68 = arith.negf %67 : vector<8x384xf32>
      %69 = math.exp %68 : vector<8x384xf32>
      %cst_42 = arith.constant 1.000000e+00 : f32
      %70 = vector.broadcast %cst_42 : f32 to vector<8x384xf32>
      %71 = arith.addf %70, %69 : vector<8x384xf32>
      %72 = arith.divf %70, %71 : vector<8x384xf32>
      %73 = vector.extract_strided_slice %72 {offsets = [0, 0], sizes = [8, 128], strides = [1, 1]} : vector<8x384xf32> to vector<8x128xf32>
      %74 = vector.extract_strided_slice %72 {offsets = [0, 128], sizes = [8, 128], strides = [1, 1]} : vector<8x384xf32> to vector<8x128xf32>
      %75 = vector.extract_strided_slice %72 {offsets = [0, 256], sizes = [8, 128], strides = [1, 1]} : vector<8x384xf32> to vector<8x128xf32>
      %76 = vector.extract_strided_slice %66 {offsets = [0, 384], sizes = [8, 128], strides = [1, 1]} : vector<8x512xf32> to vector<8x128xf32>
      %77 = math.tanh %76 : vector<8x128xf32>
      %78 = arith.mulf %74, %60 : vector<8x128xf32>
      %79 = arith.mulf %73, %77 : vector<8x128xf32>
      %80 = arith.addf %78, %79 : vector<8x128xf32>
      %81 = math.tanh %80 : vector<8x128xf32>
      %82 = arith.mulf %75, %81 : vector<8x128xf32>
      %83 = vector.broadcast %58 : i32 to vector<8x128xi32>
      %84 = arith.cmpi slt, %83, %24 : vector<8x128xi32>
      %85 = arith.select %84, %82, %59 : vector<8x128xi1>, vector<8x128xf32>
      %c0_43 = arith.constant 0 : index
      %c0_44 = arith.constant 0 : index
      %86 = vector.load %arg11[%c0_43, %c0_44] : memref<8x128xf32, #tpu.memory_space<vmem>>, vector<8x128xf32>
      tpu.vector_store %arg11[%c0_43, %c0_44], %85 {strides = array<i32>} : memref<8x128xf32, #tpu.memory_space<vmem>>, vector<8x128xf32>,
      %87 = arith.select %84, %80, %60 : vector<8x128xi1>, vector<8x128xf32>
      %c0_45 = arith.constant 0 : index
      %c0_46 = arith.constant 0 : index
      %88 = vector.load %arg12[%c0_45, %c0_46] : memref<8x128xf32, #tpu.memory_space<vmem>>, vector<8x128xf32>
      tpu.vector_store %arg12[%c0_45, %c0_46], %87 {strides = array<i32>} : memref<8x128xf32, #tpu.memory_space<vmem>>, vector<8x128xf32>,
      %c16_i32_47 = arith.constant 16 : i32
      %89 = arith.muli %arg1, %c16_i32_47 : i32
      %c2_i32 = arith.constant 2 : i32
      %90 = arith.addi %89, %c2_i32 : i32
      %c0_48 = arith.constant 0 : index
      %c0_49 = arith.constant 0 : index
      %91 = vector.load %arg11[%c0_48, %c0_49] : memref<8x128xf32, #tpu.memory_space<vmem>>, vector<8x128xf32>
      %c0_50 = arith.constant 0 : index
      %c0_51 = arith.constant 0 : index
      %92 = vector.load %arg12[%c0_50, %c0_51] : memref<8x128xf32, #tpu.memory_space<vmem>>, vector<8x128xf32>
      %c2 = arith.constant 2 : index
      %c0_52 = arith.constant 0 : index
      %c0_53 = arith.constant 0 : index
      %93 = vector.load %arg13[%c2, %c0_52, %c0_53] : memref<16x8x512xf32, #tpu.memory_space<vmem>>, vector<1x8x512xf32>
      %94 = vector.shape_cast %93 : vector<1x8x512xf32> to vector<8x512xf32>
      %95 = arith.truncf %91 : vector<8x128xf32> to vector<8x128xbf16>
      %c0_54 = arith.constant 0 : index
      %c0_55 = arith.constant 0 : index
      %96 = vector.load %arg7[%c0_54, %c0_55] : memref<128x512xbf16, #tpu.memory_space<vmem>>, vector<128x512xbf16>
      %cst_56 = arith.constant dense<0.000000e+00> : vector<8x512xf32>
      %97 = tpu.matmul %95, %96, %cst_56 {dimension_numbers = #tpu.dot_dimension_numbers<[1], [0], [0], [1], [0, 0, 1, 1], [], []>} : vector<8x128xbf16>, vector<128x512xbf16>, vector<8x512xf32> -> vector<8x512xf32>
      %98 = arith.addf %94, %97 : vector<8x512xf32>
      %99 = vector.extract_strided_slice %98 {offsets = [0, 0], sizes = [8, 384], strides = [1, 1]} : vector<8x512xf32> to vector<8x384xf32>
      %100 = arith.negf %99 : vector<8x384xf32>
      %101 = math.exp %100 : vector<8x384xf32>
      %cst_57 = arith.constant 1.000000e+00 : f32
      %102 = vector.broadcast %cst_57 : f32 to vector<8x384xf32>
      %103 = arith.addf %102, %101 : vector<8x384xf32>
      %104 = arith.divf %102, %103 : vector<8x384xf32>
      %105 = vector.extract_strided_slice %104 {offsets = [0, 0], sizes = [8, 128], strides = [1, 1]} : vector<8x384xf32> to vector<8x128xf32>
      %106 = vector.extract_strided_slice %104 {offsets = [0, 128], sizes = [8, 128], strides = [1, 1]} : vector<8x384xf32> to vector<8x128xf32>
      %107 = vector.extract_strided_slice %104 {offsets = [0, 256], sizes = [8, 128], strides = [1, 1]} : vector<8x384xf32> to vector<8x128xf32>
      %108 = vector.extract_strided_slice %98 {offsets = [0, 384], sizes = [8, 128], strides = [1, 1]} : vector<8x512xf32> to vector<8x128xf32>
      %109 = math.tanh %108 : vector<8x128xf32>
      %110 = arith.mulf %106, %92 : vector<8x128xf32>
      %111 = arith.mulf %105, %109 : vector<8x128xf32>
      %112 = arith.addf %110, %111 : vector<8x128xf32>
      %113 = math.tanh %112 : vector<8x128xf32>
      %114 = arith.mulf %107, %113 : vector<8x128xf32>
      %115 = vector.broadcast %90 : i32 to vector<8x128xi32>
      %116 = arith.cmpi slt, %115, %24 : vector<8x128xi32>
      %117 = arith.select %116, %114, %91 : vector<8x128xi1>, vector<8x128xf32>
      %c0_58 = arith.constant 0 : index
      %c0_59 = arith.constant 0 : index
      %118 = vector.load %arg11[%c0_58, %c0_59] : memref<8x128xf32, #tpu.memory_space<vmem>>, vector<8x128xf32>
      tpu.vector_store %arg11[%c0_58, %c0_59], %117 {strides = array<i32>} : memref<8x128xf32, #tpu.memory_space<vmem>>, vector<8x128xf32>,
      %119 = arith.select %116, %112, %92 : vector<8x128xi1>, vector<8x128xf32>
      %c0_60 = arith.constant 0 : index
      %c0_61 = arith.constant 0 : index
      %120 = vector.load %arg12[%c0_60, %c0_61] : memref<8x128xf32, #tpu.memory_space<vmem>>, vector<8x128xf32>
      tpu.vector_store %arg12[%c0_60, %c0_61], %119 {strides = array<i32>} : memref<8x128xf32, #tpu.memory_space<vmem>>, vector<8x128xf32>,
      %c16_i32_62 = arith.constant 16 : i32
      %121 = arith.muli %arg1, %c16_i32_62 : i32
      %c3_i32 = arith.constant 3 : i32
      %122 = arith.addi %121, %c3_i32 : i32
      %c0_63 = arith.constant 0 : index
      %c0_64 = arith.constant 0 : index
      %123 = vector.load %arg11[%c0_63, %c0_64] : memref<8x128xf32, #tpu.memory_space<vmem>>, vector<8x128xf32>
      %c0_65 = arith.constant 0 : index
      %c0_66 = arith.constant 0 : index
      %124 = vector.load %arg12[%c0_65, %c0_66] : memref<8x128xf32, #tpu.memory_space<vmem>>, vector<8x128xf32>
      %c3 = arith.constant 3 : index
      %c0_67 = arith.constant 0 : index
      %c0_68 = arith.constant 0 : index
      %125 = vector.load %arg13[%c3, %c0_67, %c0_68] : memref<16x8x512xf32, #tpu.memory_space<vmem>>, vector<1x8x512xf32>
      %126 = vector.shape_cast %125 : vector<1x8x512xf32> to vector<8x512xf32>
      %127 = arith.truncf %123 : vector<8x128xf32> to vector<8x128xbf16>
      %c0_69 = arith.constant 0 : index
      %c0_70 = arith.constant 0 : index
      %128 = vector.load %arg7[%c0_69, %c0_70] : memref<128x512xbf16, #tpu.memory_space<vmem>>, vector<128x512xbf16>
      %cst_71 = arith.constant dense<0.000000e+00> : vector<8x512xf32>
      %129 = tpu.matmul %127, %128, %cst_71 {dimension_numbers = #tpu.dot_dimension_numbers<[1], [0], [0], [1], [0, 0, 1, 1], [], []>} : vector<8x128xbf16>, vector<128x512xbf16>, vector<8x512xf32> -> vector<8x512xf32>
      %130 = arith.addf %126, %129 : vector<8x512xf32>
      %131 = vector.extract_strided_slice %130 {offsets = [0, 0], sizes = [8, 384], strides = [1, 1]} : vector<8x512xf32> to vector<8x384xf32>
      %132 = arith.negf %131 : vector<8x384xf32>
      %133 = math.exp %132 : vector<8x384xf32>
      %cst_72 = arith.constant 1.000000e+00 : f32
      %134 = vector.broadcast %cst_72 : f32 to vector<8x384xf32>
      %135 = arith.addf %134, %133 : vector<8x384xf32>
      %136 = arith.divf %134, %135 : vector<8x384xf32>
      %137 = vector.extract_strided_slice %136 {offsets = [0, 0], sizes = [8, 128], strides = [1, 1]} : vector<8x384xf32> to vector<8x128xf32>
      %138 = vector.extract_strided_slice %136 {offsets = [0, 128], sizes = [8, 128], strides = [1, 1]} : vector<8x384xf32> to vector<8x128xf32>
      %139 = vector.extract_strided_slice %136 {offsets = [0, 256], sizes = [8, 128], strides = [1, 1]} : vector<8x384xf32> to vector<8x128xf32>
      %140 = vector.extract_strided_slice %130 {offsets = [0, 384], sizes = [8, 128], strides = [1, 1]} : vector<8x512xf32> to vector<8x128xf32>
      %141 = math.tanh %140 : vector<8x128xf32>
      %142 = arith.mulf %138, %124 : vector<8x128xf32>
      %143 = arith.mulf %137, %141 : vector<8x128xf32>
      %144 = arith.addf %142, %143 : vector<8x128xf32>
      %145 = math.tanh %144 : vector<8x128xf32>
      %146 = arith.mulf %139, %145 : vector<8x128xf32>
      %147 = vector.broadcast %122 : i32 to vector<8x128xi32>
      %148 = arith.cmpi slt, %147, %24 : vector<8x128xi32>
      %149 = arith.select %148, %146, %123 : vector<8x128xi1>, vector<8x128xf32>
      %c0_73 = arith.constant 0 : index
      %c0_74 = arith.constant 0 : index
      %150 = vector.load %arg11[%c0_73, %c0_74] : memref<8x128xf32, #tpu.memory_space<vmem>>, vector<8x128xf32>
      tpu.vector_store %arg11[%c0_73, %c0_74], %149 {strides = array<i32>} : memref<8x128xf32, #tpu.memory_space<vmem>>, vector<8x128xf32>,
      %151 = arith.select %148, %144, %124 : vector<8x128xi1>, vector<8x128xf32>
      %c0_75 = arith.constant 0 : index
      %c0_76 = arith.constant 0 : index
      %152 = vector.load %arg12[%c0_75, %c0_76] : memref<8x128xf32, #tpu.memory_space<vmem>>, vector<8x128xf32>
      tpu.vector_store %arg12[%c0_75, %c0_76], %151 {strides = array<i32>} : memref<8x128xf32, #tpu.memory_space<vmem>>, vector<8x128xf32>,
      %c16_i32_77 = arith.constant 16 : i32
      %153 = arith.muli %arg1, %c16_i32_77 : i32
      %c4_i32 = arith.constant 4 : i32
      %154 = arith.addi %153, %c4_i32 : i32
      %c0_78 = arith.constant 0 : index
      %c0_79 = arith.constant 0 : index
      %155 = vector.load %arg11[%c0_78, %c0_79] : memref<8x128xf32, #tpu.memory_space<vmem>>, vector<8x128xf32>
      %c0_80 = arith.constant 0 : index
      %c0_81 = arith.constant 0 : index
      %156 = vector.load %arg12[%c0_80, %c0_81] : memref<8x128xf32, #tpu.memory_space<vmem>>, vector<8x128xf32>
      %c4 = arith.constant 4 : index
      %c0_82 = arith.constant 0 : index
      %c0_83 = arith.constant 0 : index
      %157 = vector.load %arg13[%c4, %c0_82, %c0_83] : memref<16x8x512xf32, #tpu.memory_space<vmem>>, vector<1x8x512xf32>
      %158 = vector.shape_cast %157 : vector<1x8x512xf32> to vector<8x512xf32>
      %159 = arith.truncf %155 : vector<8x128xf32> to vector<8x128xbf16>
      %c0_84 = arith.constant 0 : index
      %c0_85 = arith.constant 0 : index
      %160 = vector.load %arg7[%c0_84, %c0_85] : memref<128x512xbf16, #tpu.memory_space<vmem>>, vector<128x512xbf16>
      %cst_86 = arith.constant dense<0.000000e+00> : vector<8x512xf32>
      %161 = tpu.matmul %159, %160, %cst_86 {dimension_numbers = #tpu.dot_dimension_numbers<[1], [0], [0], [1], [0, 0, 1, 1], [], []>} : vector<8x128xbf16>, vector<128x512xbf16>, vector<8x512xf32> -> vector<8x512xf32>
      %162 = arith.addf %158, %161 : vector<8x512xf32>
      %163 = vector.extract_strided_slice %162 {offsets = [0, 0], sizes = [8, 384], strides = [1, 1]} : vector<8x512xf32> to vector<8x384xf32>
      %164 = arith.negf %163 : vector<8x384xf32>
      %165 = math.exp %164 : vector<8x384xf32>
      %cst_87 = arith.constant 1.000000e+00 : f32
      %166 = vector.broadcast %cst_87 : f32 to vector<8x384xf32>
      %167 = arith.addf %166, %165 : vector<8x384xf32>
      %168 = arith.divf %166, %167 : vector<8x384xf32>
      %169 = vector.extract_strided_slice %168 {offsets = [0, 0], sizes = [8, 128], strides = [1, 1]} : vector<8x384xf32> to vector<8x128xf32>
      %170 = vector.extract_strided_slice %168 {offsets = [0, 128], sizes = [8, 128], strides = [1, 1]} : vector<8x384xf32> to vector<8x128xf32>
      %171 = vector.extract_strided_slice %168 {offsets = [0, 256], sizes = [8, 128], strides = [1, 1]} : vector<8x384xf32> to vector<8x128xf32>
      %172 = vector.extract_strided_slice %162 {offsets = [0, 384], sizes = [8, 128], strides = [1, 1]} : vector<8x512xf32> to vector<8x128xf32>
      %173 = math.tanh %172 : vector<8x128xf32>
      %174 = arith.mulf %170, %156 : vector<8x128xf32>
      %175 = arith.mulf %169, %173 : vector<8x128xf32>
      %176 = arith.addf %174, %175 : vector<8x128xf32>
      %177 = math.tanh %176 : vector<8x128xf32>
      %178 = arith.mulf %171, %177 : vector<8x128xf32>
      %179 = vector.broadcast %154 : i32 to vector<8x128xi32>
      %180 = arith.cmpi slt, %179, %24 : vector<8x128xi32>
      %181 = arith.select %180, %178, %155 : vector<8x128xi1>, vector<8x128xf32>
      %c0_88 = arith.constant 0 : index
      %c0_89 = arith.constant 0 : index
      %182 = vector.load %arg11[%c0_88, %c0_89] : memref<8x128xf32, #tpu.memory_space<vmem>>, vector<8x128xf32>
      tpu.vector_store %arg11[%c0_88, %c0_89], %181 {strides = array<i32>} : memref<8x128xf32, #tpu.memory_space<vmem>>, vector<8x128xf32>,
      %183 = arith.select %180, %176, %156 : vector<8x128xi1>, vector<8x128xf32>
      %c0_90 = arith.constant 0 : index
      %c0_91 = arith.constant 0 : index
      %184 = vector.load %arg12[%c0_90, %c0_91] : memref<8x128xf32, #tpu.memory_space<vmem>>, vector<8x128xf32>
      tpu.vector_store %arg12[%c0_90, %c0_91], %183 {strides = array<i32>} : memref<8x128xf32, #tpu.memory_space<vmem>>, vector<8x128xf32>,
      %c16_i32_92 = arith.constant 16 : i32
      %185 = arith.muli %arg1, %c16_i32_92 : i32
      %c5_i32 = arith.constant 5 : i32
      %186 = arith.addi %185, %c5_i32 : i32
      %c0_93 = arith.constant 0 : index
      %c0_94 = arith.constant 0 : index
      %187 = vector.load %arg11[%c0_93, %c0_94] : memref<8x128xf32, #tpu.memory_space<vmem>>, vector<8x128xf32>
      %c0_95 = arith.constant 0 : index
      %c0_96 = arith.constant 0 : index
      %188 = vector.load %arg12[%c0_95, %c0_96] : memref<8x128xf32, #tpu.memory_space<vmem>>, vector<8x128xf32>
      %c5 = arith.constant 5 : index
      %c0_97 = arith.constant 0 : index
      %c0_98 = arith.constant 0 : index
      %189 = vector.load %arg13[%c5, %c0_97, %c0_98] : memref<16x8x512xf32, #tpu.memory_space<vmem>>, vector<1x8x512xf32>
      %190 = vector.shape_cast %189 : vector<1x8x512xf32> to vector<8x512xf32>
      %191 = arith.truncf %187 : vector<8x128xf32> to vector<8x128xbf16>
      %c0_99 = arith.constant 0 : index
      %c0_100 = arith.constant 0 : index
      %192 = vector.load %arg7[%c0_99, %c0_100] : memref<128x512xbf16, #tpu.memory_space<vmem>>, vector<128x512xbf16>
      %cst_101 = arith.constant dense<0.000000e+00> : vector<8x512xf32>
      %193 = tpu.matmul %191, %192, %cst_101 {dimension_numbers = #tpu.dot_dimension_numbers<[1], [0], [0], [1], [0, 0, 1, 1], [], []>} : vector<8x128xbf16>, vector<128x512xbf16>, vector<8x512xf32> -> vector<8x512xf32>
      %194 = arith.addf %190, %193 : vector<8x512xf32>
      %195 = vector.extract_strided_slice %194 {offsets = [0, 0], sizes = [8, 384], strides = [1, 1]} : vector<8x512xf32> to vector<8x384xf32>
      %196 = arith.negf %195 : vector<8x384xf32>
      %197 = math.exp %196 : vector<8x384xf32>
      %cst_102 = arith.constant 1.000000e+00 : f32
      %198 = vector.broadcast %cst_102 : f32 to vector<8x384xf32>
      %199 = arith.addf %198, %197 : vector<8x384xf32>
      %200 = arith.divf %198, %199 : vector<8x384xf32>
      %201 = vector.extract_strided_slice %200 {offsets = [0, 0], sizes = [8, 128], strides = [1, 1]} : vector<8x384xf32> to vector<8x128xf32>
      %202 = vector.extract_strided_slice %200 {offsets = [0, 128], sizes = [8, 128], strides = [1, 1]} : vector<8x384xf32> to vector<8x128xf32>
      %203 = vector.extract_strided_slice %200 {offsets = [0, 256], sizes = [8, 128], strides = [1, 1]} : vector<8x384xf32> to vector<8x128xf32>
      %204 = vector.extract_strided_slice %194 {offsets = [0, 384], sizes = [8, 128], strides = [1, 1]} : vector<8x512xf32> to vector<8x128xf32>
      %205 = math.tanh %204 : vector<8x128xf32>
      %206 = arith.mulf %202, %188 : vector<8x128xf32>
      %207 = arith.mulf %201, %205 : vector<8x128xf32>
      %208 = arith.addf %206, %207 : vector<8x128xf32>
      %209 = math.tanh %208 : vector<8x128xf32>
      %210 = arith.mulf %203, %209 : vector<8x128xf32>
      %211 = vector.broadcast %186 : i32 to vector<8x128xi32>
      %212 = arith.cmpi slt, %211, %24 : vector<8x128xi32>
      %213 = arith.select %212, %210, %187 : vector<8x128xi1>, vector<8x128xf32>
      %c0_103 = arith.constant 0 : index
      %c0_104 = arith.constant 0 : index
      %214 = vector.load %arg11[%c0_103, %c0_104] : memref<8x128xf32, #tpu.memory_space<vmem>>, vector<8x128xf32>
      tpu.vector_store %arg11[%c0_103, %c0_104], %213 {strides = array<i32>} : memref<8x128xf32, #tpu.memory_space<vmem>>, vector<8x128xf32>,
      %215 = arith.select %212, %208, %188 : vector<8x128xi1>, vector<8x128xf32>
      %c0_105 = arith.constant 0 : index
      %c0_106 = arith.constant 0 : index
      %216 = vector.load %arg12[%c0_105, %c0_106] : memref<8x128xf32, #tpu.memory_space<vmem>>, vector<8x128xf32>
      tpu.vector_store %arg12[%c0_105, %c0_106], %215 {strides = array<i32>} : memref<8x128xf32, #tpu.memory_space<vmem>>, vector<8x128xf32>,
      %c16_i32_107 = arith.constant 16 : i32
      %217 = arith.muli %arg1, %c16_i32_107 : i32
      %c6_i32 = arith.constant 6 : i32
      %218 = arith.addi %217, %c6_i32 : i32
      %c0_108 = arith.constant 0 : index
      %c0_109 = arith.constant 0 : index
      %219 = vector.load %arg11[%c0_108, %c0_109] : memref<8x128xf32, #tpu.memory_space<vmem>>, vector<8x128xf32>
      %c0_110 = arith.constant 0 : index
      %c0_111 = arith.constant 0 : index
      %220 = vector.load %arg12[%c0_110, %c0_111] : memref<8x128xf32, #tpu.memory_space<vmem>>, vector<8x128xf32>
      %c6 = arith.constant 6 : index
      %c0_112 = arith.constant 0 : index
      %c0_113 = arith.constant 0 : index
      %221 = vector.load %arg13[%c6, %c0_112, %c0_113] : memref<16x8x512xf32, #tpu.memory_space<vmem>>, vector<1x8x512xf32>
      %222 = vector.shape_cast %221 : vector<1x8x512xf32> to vector<8x512xf32>
      %223 = arith.truncf %219 : vector<8x128xf32> to vector<8x128xbf16>
      %c0_114 = arith.constant 0 : index
      %c0_115 = arith.constant 0 : index
      %224 = vector.load %arg7[%c0_114, %c0_115] : memref<128x512xbf16, #tpu.memory_space<vmem>>, vector<128x512xbf16>
      %cst_116 = arith.constant dense<0.000000e+00> : vector<8x512xf32>
      %225 = tpu.matmul %223, %224, %cst_116 {dimension_numbers = #tpu.dot_dimension_numbers<[1], [0], [0], [1], [0, 0, 1, 1], [], []>} : vector<8x128xbf16>, vector<128x512xbf16>, vector<8x512xf32> -> vector<8x512xf32>
      %226 = arith.addf %222, %225 : vector<8x512xf32>
      %227 = vector.extract_strided_slice %226 {offsets = [0, 0], sizes = [8, 384], strides = [1, 1]} : vector<8x512xf32> to vector<8x384xf32>
      %228 = arith.negf %227 : vector<8x384xf32>
      %229 = math.exp %228 : vector<8x384xf32>
      %cst_117 = arith.constant 1.000000e+00 : f32
      %230 = vector.broadcast %cst_117 : f32 to vector<8x384xf32>
      %231 = arith.addf %230, %229 : vector<8x384xf32>
      %232 = arith.divf %230, %231 : vector<8x384xf32>
      %233 = vector.extract_strided_slice %232 {offsets = [0, 0], sizes = [8, 128], strides = [1, 1]} : vector<8x384xf32> to vector<8x128xf32>
      %234 = vector.extract_strided_slice %232 {offsets = [0, 128], sizes = [8, 128], strides = [1, 1]} : vector<8x384xf32> to vector<8x128xf32>
      %235 = vector.extract_strided_slice %232 {offsets = [0, 256], sizes = [8, 128], strides = [1, 1]} : vector<8x384xf32> to vector<8x128xf32>
      %236 = vector.extract_strided_slice %226 {offsets = [0, 384], sizes = [8, 128], strides = [1, 1]} : vector<8x512xf32> to vector<8x128xf32>
      %237 = math.tanh %236 : vector<8x128xf32>
      %238 = arith.mulf %234, %220 : vector<8x128xf32>
      %239 = arith.mulf %233, %237 : vector<8x128xf32>
      %240 = arith.addf %238, %239 : vector<8x128xf32>
      %241 = math.tanh %240 : vector<8x128xf32>
      %242 = arith.mulf %235, %241 : vector<8x128xf32>
      %243 = vector.broadcast %218 : i32 to vector<8x128xi32>
      %244 = arith.cmpi slt, %243, %24 : vector<8x128xi32>
      %245 = arith.select %244, %242, %219 : vector<8x128xi1>, vector<8x128xf32>
      %c0_118 = arith.constant 0 : index
      %c0_119 = arith.constant 0 : index
      %246 = vector.load %arg11[%c0_118, %c0_119] : memref<8x128xf32, #tpu.memory_space<vmem>>, vector<8x128xf32>
      tpu.vector_store %arg11[%c0_118, %c0_119], %245 {strides = array<i32>} : memref<8x128xf32, #tpu.memory_space<vmem>>, vector<8x128xf32>,
      %247 = arith.select %244, %240, %220 : vector<8x128xi1>, vector<8x128xf32>
      %c0_120 = arith.constant 0 : index
      %c0_121 = arith.constant 0 : index
      %248 = vector.load %arg12[%c0_120, %c0_121] : memref<8x128xf32, #tpu.memory_space<vmem>>, vector<8x128xf32>
      tpu.vector_store %arg12[%c0_120, %c0_121], %247 {strides = array<i32>} : memref<8x128xf32, #tpu.memory_space<vmem>>, vector<8x128xf32>,
      %c16_i32_122 = arith.constant 16 : i32
      %249 = arith.muli %arg1, %c16_i32_122 : i32
      %c7_i32 = arith.constant 7 : i32
      %250 = arith.addi %249, %c7_i32 : i32
      %c0_123 = arith.constant 0 : index
      %c0_124 = arith.constant 0 : index
      %251 = vector.load %arg11[%c0_123, %c0_124] : memref<8x128xf32, #tpu.memory_space<vmem>>, vector<8x128xf32>
      %c0_125 = arith.constant 0 : index
      %c0_126 = arith.constant 0 : index
      %252 = vector.load %arg12[%c0_125, %c0_126] : memref<8x128xf32, #tpu.memory_space<vmem>>, vector<8x128xf32>
      %c7 = arith.constant 7 : index
      %c0_127 = arith.constant 0 : index
      %c0_128 = arith.constant 0 : index
      %253 = vector.load %arg13[%c7, %c0_127, %c0_128] : memref<16x8x512xf32, #tpu.memory_space<vmem>>, vector<1x8x512xf32>
      %254 = vector.shape_cast %253 : vector<1x8x512xf32> to vector<8x512xf32>
      %255 = arith.truncf %251 : vector<8x128xf32> to vector<8x128xbf16>
      %c0_129 = arith.constant 0 : index
      %c0_130 = arith.constant 0 : index
      %256 = vector.load %arg7[%c0_129, %c0_130] : memref<128x512xbf16, #tpu.memory_space<vmem>>, vector<128x512xbf16>
      %cst_131 = arith.constant dense<0.000000e+00> : vector<8x512xf32>
      %257 = tpu.matmul %255, %256, %cst_131 {dimension_numbers = #tpu.dot_dimension_numbers<[1], [0], [0], [1], [0, 0, 1, 1], [], []>} : vector<8x128xbf16>, vector<128x512xbf16>, vector<8x512xf32> -> vector<8x512xf32>
      %258 = arith.addf %254, %257 : vector<8x512xf32>
      %259 = vector.extract_strided_slice %258 {offsets = [0, 0], sizes = [8, 384], strides = [1, 1]} : vector<8x512xf32> to vector<8x384xf32>
      %260 = arith.negf %259 : vector<8x384xf32>
      %261 = math.exp %260 : vector<8x384xf32>
      %cst_132 = arith.constant 1.000000e+00 : f32
      %262 = vector.broadcast %cst_132 : f32 to vector<8x384xf32>
      %263 = arith.addf %262, %261 : vector<8x384xf32>
      %264 = arith.divf %262, %263 : vector<8x384xf32>
      %265 = vector.extract_strided_slice %264 {offsets = [0, 0], sizes = [8, 128], strides = [1, 1]} : vector<8x384xf32> to vector<8x128xf32>
      %266 = vector.extract_strided_slice %264 {offsets = [0, 128], sizes = [8, 128], strides = [1, 1]} : vector<8x384xf32> to vector<8x128xf32>
      %267 = vector.extract_strided_slice %264 {offsets = [0, 256], sizes = [8, 128], strides = [1, 1]} : vector<8x384xf32> to vector<8x128xf32>
      %268 = vector.extract_strided_slice %258 {offsets = [0, 384], sizes = [8, 128], strides = [1, 1]} : vector<8x512xf32> to vector<8x128xf32>
      %269 = math.tanh %268 : vector<8x128xf32>
      %270 = arith.mulf %266, %252 : vector<8x128xf32>
      %271 = arith.mulf %265, %269 : vector<8x128xf32>
      %272 = arith.addf %270, %271 : vector<8x128xf32>
      %273 = math.tanh %272 : vector<8x128xf32>
      %274 = arith.mulf %267, %273 : vector<8x128xf32>
      %275 = vector.broadcast %250 : i32 to vector<8x128xi32>
      %276 = arith.cmpi slt, %275, %24 : vector<8x128xi32>
      %277 = arith.select %276, %274, %251 : vector<8x128xi1>, vector<8x128xf32>
      %c0_133 = arith.constant 0 : index
      %c0_134 = arith.constant 0 : index
      %278 = vector.load %arg11[%c0_133, %c0_134] : memref<8x128xf32, #tpu.memory_space<vmem>>, vector<8x128xf32>
      tpu.vector_store %arg11[%c0_133, %c0_134], %277 {strides = array<i32>} : memref<8x128xf32, #tpu.memory_space<vmem>>, vector<8x128xf32>,
      %279 = arith.select %276, %272, %252 : vector<8x128xi1>, vector<8x128xf32>
      %c0_135 = arith.constant 0 : index
      %c0_136 = arith.constant 0 : index
      %280 = vector.load %arg12[%c0_135, %c0_136] : memref<8x128xf32, #tpu.memory_space<vmem>>, vector<8x128xf32>
      tpu.vector_store %arg12[%c0_135, %c0_136], %279 {strides = array<i32>} : memref<8x128xf32, #tpu.memory_space<vmem>>, vector<8x128xf32>,
      %c16_i32_137 = arith.constant 16 : i32
      %281 = arith.muli %arg1, %c16_i32_137 : i32
      %c8_i32 = arith.constant 8 : i32
      %282 = arith.addi %281, %c8_i32 : i32
      %c0_138 = arith.constant 0 : index
      %c0_139 = arith.constant 0 : index
      %283 = vector.load %arg11[%c0_138, %c0_139] : memref<8x128xf32, #tpu.memory_space<vmem>>, vector<8x128xf32>
      %c0_140 = arith.constant 0 : index
      %c0_141 = arith.constant 0 : index
      %284 = vector.load %arg12[%c0_140, %c0_141] : memref<8x128xf32, #tpu.memory_space<vmem>>, vector<8x128xf32>
      %c8 = arith.constant 8 : index
      %c0_142 = arith.constant 0 : index
      %c0_143 = arith.constant 0 : index
      %285 = vector.load %arg13[%c8, %c0_142, %c0_143] : memref<16x8x512xf32, #tpu.memory_space<vmem>>, vector<1x8x512xf32>
      %286 = vector.shape_cast %285 : vector<1x8x512xf32> to vector<8x512xf32>
      %287 = arith.truncf %283 : vector<8x128xf32> to vector<8x128xbf16>
      %c0_144 = arith.constant 0 : index
      %c0_145 = arith.constant 0 : index
      %288 = vector.load %arg7[%c0_144, %c0_145] : memref<128x512xbf16, #tpu.memory_space<vmem>>, vector<128x512xbf16>
      %cst_146 = arith.constant dense<0.000000e+00> : vector<8x512xf32>
      %289 = tpu.matmul %287, %288, %cst_146 {dimension_numbers = #tpu.dot_dimension_numbers<[1], [0], [0], [1], [0, 0, 1, 1], [], []>} : vector<8x128xbf16>, vector<128x512xbf16>, vector<8x512xf32> -> vector<8x512xf32>
      %290 = arith.addf %286, %289 : vector<8x512xf32>
      %291 = vector.extract_strided_slice %290 {offsets = [0, 0], sizes = [8, 384], strides = [1, 1]} : vector<8x512xf32> to vector<8x384xf32>
      %292 = arith.negf %291 : vector<8x384xf32>
      %293 = math.exp %292 : vector<8x384xf32>
      %cst_147 = arith.constant 1.000000e+00 : f32
      %294 = vector.broadcast %cst_147 : f32 to vector<8x384xf32>
      %295 = arith.addf %294, %293 : vector<8x384xf32>
      %296 = arith.divf %294, %295 : vector<8x384xf32>
      %297 = vector.extract_strided_slice %296 {offsets = [0, 0], sizes = [8, 128], strides = [1, 1]} : vector<8x384xf32> to vector<8x128xf32>
      %298 = vector.extract_strided_slice %296 {offsets = [0, 128], sizes = [8, 128], strides = [1, 1]} : vector<8x384xf32> to vector<8x128xf32>
      %299 = vector.extract_strided_slice %296 {offsets = [0, 256], sizes = [8, 128], strides = [1, 1]} : vector<8x384xf32> to vector<8x128xf32>
      %300 = vector.extract_strided_slice %290 {offsets = [0, 384], sizes = [8, 128], strides = [1, 1]} : vector<8x512xf32> to vector<8x128xf32>
      %301 = math.tanh %300 : vector<8x128xf32>
      %302 = arith.mulf %298, %284 : vector<8x128xf32>
      %303 = arith.mulf %297, %301 : vector<8x128xf32>
      %304 = arith.addf %302, %303 : vector<8x128xf32>
      %305 = math.tanh %304 : vector<8x128xf32>
      %306 = arith.mulf %299, %305 : vector<8x128xf32>
      %307 = vector.broadcast %282 : i32 to vector<8x128xi32>
      %308 = arith.cmpi slt, %307, %24 : vector<8x128xi32>
      %309 = arith.select %308, %306, %283 : vector<8x128xi1>, vector<8x128xf32>
      %c0_148 = arith.constant 0 : index
      %c0_149 = arith.constant 0 : index
      %310 = vector.load %arg11[%c0_148, %c0_149] : memref<8x128xf32, #tpu.memory_space<vmem>>, vector<8x128xf32>
      tpu.vector_store %arg11[%c0_148, %c0_149], %309 {strides = array<i32>} : memref<8x128xf32, #tpu.memory_space<vmem>>, vector<8x128xf32>,
      %311 = arith.select %308, %304, %284 : vector<8x128xi1>, vector<8x128xf32>
      %c0_150 = arith.constant 0 : index
      %c0_151 = arith.constant 0 : index
      %312 = vector.load %arg12[%c0_150, %c0_151] : memref<8x128xf32, #tpu.memory_space<vmem>>, vector<8x128xf32>
      tpu.vector_store %arg12[%c0_150, %c0_151], %311 {strides = array<i32>} : memref<8x128xf32, #tpu.memory_space<vmem>>, vector<8x128xf32>,
      %c16_i32_152 = arith.constant 16 : i32
      %313 = arith.muli %arg1, %c16_i32_152 : i32
      %c9_i32 = arith.constant 9 : i32
      %314 = arith.addi %313, %c9_i32 : i32
      %c0_153 = arith.constant 0 : index
      %c0_154 = arith.constant 0 : index
      %315 = vector.load %arg11[%c0_153, %c0_154] : memref<8x128xf32, #tpu.memory_space<vmem>>, vector<8x128xf32>
      %c0_155 = arith.constant 0 : index
      %c0_156 = arith.constant 0 : index
      %316 = vector.load %arg12[%c0_155, %c0_156] : memref<8x128xf32, #tpu.memory_space<vmem>>, vector<8x128xf32>
      %c9 = arith.constant 9 : index
      %c0_157 = arith.constant 0 : index
      %c0_158 = arith.constant 0 : index
      %317 = vector.load %arg13[%c9, %c0_157, %c0_158] : memref<16x8x512xf32, #tpu.memory_space<vmem>>, vector<1x8x512xf32>
      %318 = vector.shape_cast %317 : vector<1x8x512xf32> to vector<8x512xf32>
      %319 = arith.truncf %315 : vector<8x128xf32> to vector<8x128xbf16>
      %c0_159 = arith.constant 0 : index
      %c0_160 = arith.constant 0 : index
      %320 = vector.load %arg7[%c0_159, %c0_160] : memref<128x512xbf16, #tpu.memory_space<vmem>>, vector<128x512xbf16>
      %cst_161 = arith.constant dense<0.000000e+00> : vector<8x512xf32>
      %321 = tpu.matmul %319, %320, %cst_161 {dimension_numbers = #tpu.dot_dimension_numbers<[1], [0], [0], [1], [0, 0, 1, 1], [], []>} : vector<8x128xbf16>, vector<128x512xbf16>, vector<8x512xf32> -> vector<8x512xf32>
      %322 = arith.addf %318, %321 : vector<8x512xf32>
      %323 = vector.extract_strided_slice %322 {offsets = [0, 0], sizes = [8, 384], strides = [1, 1]} : vector<8x512xf32> to vector<8x384xf32>
      %324 = arith.negf %323 : vector<8x384xf32>
      %325 = math.exp %324 : vector<8x384xf32>
      %cst_162 = arith.constant 1.000000e+00 : f32
      %326 = vector.broadcast %cst_162 : f32 to vector<8x384xf32>
      %327 = arith.addf %326, %325 : vector<8x384xf32>
      %328 = arith.divf %326, %327 : vector<8x384xf32>
      %329 = vector.extract_strided_slice %328 {offsets = [0, 0], sizes = [8, 128], strides = [1, 1]} : vector<8x384xf32> to vector<8x128xf32>
      %330 = vector.extract_strided_slice %328 {offsets = [0, 128], sizes = [8, 128], strides = [1, 1]} : vector<8x384xf32> to vector<8x128xf32>
      %331 = vector.extract_strided_slice %328 {offsets = [0, 256], sizes = [8, 128], strides = [1, 1]} : vector<8x384xf32> to vector<8x128xf32>
      %332 = vector.extract_strided_slice %322 {offsets = [0, 384], sizes = [8, 128], strides = [1, 1]} : vector<8x512xf32> to vector<8x128xf32>
      %333 = math.tanh %332 : vector<8x128xf32>
      %334 = arith.mulf %330, %316 : vector<8x128xf32>
      %335 = arith.mulf %329, %333 : vector<8x128xf32>
      %336 = arith.addf %334, %335 : vector<8x128xf32>
      %337 = math.tanh %336 : vector<8x128xf32>
      %338 = arith.mulf %331, %337 : vector<8x128xf32>
      %339 = vector.broadcast %314 : i32 to vector<8x128xi32>
      %340 = arith.cmpi slt, %339, %24 : vector<8x128xi32>
      %341 = arith.select %340, %338, %315 : vector<8x128xi1>, vector<8x128xf32>
      %c0_163 = arith.constant 0 : index
      %c0_164 = arith.constant 0 : index
      %342 = vector.load %arg11[%c0_163, %c0_164] : memref<8x128xf32, #tpu.memory_space<vmem>>, vector<8x128xf32>
      tpu.vector_store %arg11[%c0_163, %c0_164], %341 {strides = array<i32>} : memref<8x128xf32, #tpu.memory_space<vmem>>, vector<8x128xf32>,
      %343 = arith.select %340, %336, %316 : vector<8x128xi1>, vector<8x128xf32>
      %c0_165 = arith.constant 0 : index
      %c0_166 = arith.constant 0 : index
      %344 = vector.load %arg12[%c0_165, %c0_166] : memref<8x128xf32, #tpu.memory_space<vmem>>, vector<8x128xf32>
      tpu.vector_store %arg12[%c0_165, %c0_166], %343 {strides = array<i32>} : memref<8x128xf32, #tpu.memory_space<vmem>>, vector<8x128xf32>,
      %c16_i32_167 = arith.constant 16 : i32
      %345 = arith.muli %arg1, %c16_i32_167 : i32
      %c10_i32 = arith.constant 10 : i32
      %346 = arith.addi %345, %c10_i32 : i32
      %c0_168 = arith.constant 0 : index
      %c0_169 = arith.constant 0 : index
      %347 = vector.load %arg11[%c0_168, %c0_169] : memref<8x128xf32, #tpu.memory_space<vmem>>, vector<8x128xf32>
      %c0_170 = arith.constant 0 : index
      %c0_171 = arith.constant 0 : index
      %348 = vector.load %arg12[%c0_170, %c0_171] : memref<8x128xf32, #tpu.memory_space<vmem>>, vector<8x128xf32>
      %c10 = arith.constant 10 : index
      %c0_172 = arith.constant 0 : index
      %c0_173 = arith.constant 0 : index
      %349 = vector.load %arg13[%c10, %c0_172, %c0_173] : memref<16x8x512xf32, #tpu.memory_space<vmem>>, vector<1x8x512xf32>
      %350 = vector.shape_cast %349 : vector<1x8x512xf32> to vector<8x512xf32>
      %351 = arith.truncf %347 : vector<8x128xf32> to vector<8x128xbf16>
      %c0_174 = arith.constant 0 : index
      %c0_175 = arith.constant 0 : index
      %352 = vector.load %arg7[%c0_174, %c0_175] : memref<128x512xbf16, #tpu.memory_space<vmem>>, vector<128x512xbf16>
      %cst_176 = arith.constant dense<0.000000e+00> : vector<8x512xf32>
      %353 = tpu.matmul %351, %352, %cst_176 {dimension_numbers = #tpu.dot_dimension_numbers<[1], [0], [0], [1], [0, 0, 1, 1], [], []>} : vector<8x128xbf16>, vector<128x512xbf16>, vector<8x512xf32> -> vector<8x512xf32>
      %354 = arith.addf %350, %353 : vector<8x512xf32>
      %355 = vector.extract_strided_slice %354 {offsets = [0, 0], sizes = [8, 384], strides = [1, 1]} : vector<8x512xf32> to vector<8x384xf32>
      %356 = arith.negf %355 : vector<8x384xf32>
      %357 = math.exp %356 : vector<8x384xf32>
      %cst_177 = arith.constant 1.000000e+00 : f32
      %358 = vector.broadcast %cst_177 : f32 to vector<8x384xf32>
      %359 = arith.addf %358, %357 : vector<8x384xf32>
      %360 = arith.divf %358, %359 : vector<8x384xf32>
      %361 = vector.extract_strided_slice %360 {offsets = [0, 0], sizes = [8, 128], strides = [1, 1]} : vector<8x384xf32> to vector<8x128xf32>
      %362 = vector.extract_strided_slice %360 {offsets = [0, 128], sizes = [8, 128], strides = [1, 1]} : vector<8x384xf32> to vector<8x128xf32>
      %363 = vector.extract_strided_slice %360 {offsets = [0, 256], sizes = [8, 128], strides = [1, 1]} : vector<8x384xf32> to vector<8x128xf32>
      %364 = vector.extract_strided_slice %354 {offsets = [0, 384], sizes = [8, 128], strides = [1, 1]} : vector<8x512xf32> to vector<8x128xf32>
      %365 = math.tanh %364 : vector<8x128xf32>
      %366 = arith.mulf %362, %348 : vector<8x128xf32>
      %367 = arith.mulf %361, %365 : vector<8x128xf32>
      %368 = arith.addf %366, %367 : vector<8x128xf32>
      %369 = math.tanh %368 : vector<8x128xf32>
      %370 = arith.mulf %363, %369 : vector<8x128xf32>
      %371 = vector.broadcast %346 : i32 to vector<8x128xi32>
      %372 = arith.cmpi slt, %371, %24 : vector<8x128xi32>
      %373 = arith.select %372, %370, %347 : vector<8x128xi1>, vector<8x128xf32>
      %c0_178 = arith.constant 0 : index
      %c0_179 = arith.constant 0 : index
      %374 = vector.load %arg11[%c0_178, %c0_179] : memref<8x128xf32, #tpu.memory_space<vmem>>, vector<8x128xf32>
      tpu.vector_store %arg11[%c0_178, %c0_179], %373 {strides = array<i32>} : memref<8x128xf32, #tpu.memory_space<vmem>>, vector<8x128xf32>,
      %375 = arith.select %372, %368, %348 : vector<8x128xi1>, vector<8x128xf32>
      %c0_180 = arith.constant 0 : index
      %c0_181 = arith.constant 0 : index
      %376 = vector.load %arg12[%c0_180, %c0_181] : memref<8x128xf32, #tpu.memory_space<vmem>>, vector<8x128xf32>
      tpu.vector_store %arg12[%c0_180, %c0_181], %375 {strides = array<i32>} : memref<8x128xf32, #tpu.memory_space<vmem>>, vector<8x128xf32>,
      %c16_i32_182 = arith.constant 16 : i32
      %377 = arith.muli %arg1, %c16_i32_182 : i32
      %c11_i32 = arith.constant 11 : i32
      %378 = arith.addi %377, %c11_i32 : i32
      %c0_183 = arith.constant 0 : index
      %c0_184 = arith.constant 0 : index
      %379 = vector.load %arg11[%c0_183, %c0_184] : memref<8x128xf32, #tpu.memory_space<vmem>>, vector<8x128xf32>
      %c0_185 = arith.constant 0 : index
      %c0_186 = arith.constant 0 : index
      %380 = vector.load %arg12[%c0_185, %c0_186] : memref<8x128xf32, #tpu.memory_space<vmem>>, vector<8x128xf32>
      %c11 = arith.constant 11 : index
      %c0_187 = arith.constant 0 : index
      %c0_188 = arith.constant 0 : index
      %381 = vector.load %arg13[%c11, %c0_187, %c0_188] : memref<16x8x512xf32, #tpu.memory_space<vmem>>, vector<1x8x512xf32>
      %382 = vector.shape_cast %381 : vector<1x8x512xf32> to vector<8x512xf32>
      %383 = arith.truncf %379 : vector<8x128xf32> to vector<8x128xbf16>
      %c0_189 = arith.constant 0 : index
      %c0_190 = arith.constant 0 : index
      %384 = vector.load %arg7[%c0_189, %c0_190] : memref<128x512xbf16, #tpu.memory_space<vmem>>, vector<128x512xbf16>
      %cst_191 = arith.constant dense<0.000000e+00> : vector<8x512xf32>
      %385 = tpu.matmul %383, %384, %cst_191 {dimension_numbers = #tpu.dot_dimension_numbers<[1], [0], [0], [1], [0, 0, 1, 1], [], []>} : vector<8x128xbf16>, vector<128x512xbf16>, vector<8x512xf32> -> vector<8x512xf32>
      %386 = arith.addf %382, %385 : vector<8x512xf32>
      %387 = vector.extract_strided_slice %386 {offsets = [0, 0], sizes = [8, 384], strides = [1, 1]} : vector<8x512xf32> to vector<8x384xf32>
      %388 = arith.negf %387 : vector<8x384xf32>
      %389 = math.exp %388 : vector<8x384xf32>
      %cst_192 = arith.constant 1.000000e+00 : f32
      %390 = vector.broadcast %cst_192 : f32 to vector<8x384xf32>
      %391 = arith.addf %390, %389 : vector<8x384xf32>
      %392 = arith.divf %390, %391 : vector<8x384xf32>
      %393 = vector.extract_strided_slice %392 {offsets = [0, 0], sizes = [8, 128], strides = [1, 1]} : vector<8x384xf32> to vector<8x128xf32>
      %394 = vector.extract_strided_slice %392 {offsets = [0, 128], sizes = [8, 128], strides = [1, 1]} : vector<8x384xf32> to vector<8x128xf32>
      %395 = vector.extract_strided_slice %392 {offsets = [0, 256], sizes = [8, 128], strides = [1, 1]} : vector<8x384xf32> to vector<8x128xf32>
      %396 = vector.extract_strided_slice %386 {offsets = [0, 384], sizes = [8, 128], strides = [1, 1]} : vector<8x512xf32> to vector<8x128xf32>
      %397 = math.tanh %396 : vector<8x128xf32>
      %398 = arith.mulf %394, %380 : vector<8x128xf32>
      %399 = arith.mulf %393, %397 : vector<8x128xf32>
      %400 = arith.addf %398, %399 : vector<8x128xf32>
      %401 = math.tanh %400 : vector<8x128xf32>
      %402 = arith.mulf %395, %401 : vector<8x128xf32>
      %403 = vector.broadcast %378 : i32 to vector<8x128xi32>
      %404 = arith.cmpi slt, %403, %24 : vector<8x128xi32>
      %405 = arith.select %404, %402, %379 : vector<8x128xi1>, vector<8x128xf32>
      %c0_193 = arith.constant 0 : index
      %c0_194 = arith.constant 0 : index
      %406 = vector.load %arg11[%c0_193, %c0_194] : memref<8x128xf32, #tpu.memory_space<vmem>>, vector<8x128xf32>
      tpu.vector_store %arg11[%c0_193, %c0_194], %405 {strides = array<i32>} : memref<8x128xf32, #tpu.memory_space<vmem>>, vector<8x128xf32>,
      %407 = arith.select %404, %400, %380 : vector<8x128xi1>, vector<8x128xf32>
      %c0_195 = arith.constant 0 : index
      %c0_196 = arith.constant 0 : index
      %408 = vector.load %arg12[%c0_195, %c0_196] : memref<8x128xf32, #tpu.memory_space<vmem>>, vector<8x128xf32>
      tpu.vector_store %arg12[%c0_195, %c0_196], %407 {strides = array<i32>} : memref<8x128xf32, #tpu.memory_space<vmem>>, vector<8x128xf32>,
      %c16_i32_197 = arith.constant 16 : i32
      %409 = arith.muli %arg1, %c16_i32_197 : i32
      %c12_i32 = arith.constant 12 : i32
      %410 = arith.addi %409, %c12_i32 : i32
      %c0_198 = arith.constant 0 : index
      %c0_199 = arith.constant 0 : index
      %411 = vector.load %arg11[%c0_198, %c0_199] : memref<8x128xf32, #tpu.memory_space<vmem>>, vector<8x128xf32>
      %c0_200 = arith.constant 0 : index
      %c0_201 = arith.constant 0 : index
      %412 = vector.load %arg12[%c0_200, %c0_201] : memref<8x128xf32, #tpu.memory_space<vmem>>, vector<8x128xf32>
      %c12 = arith.constant 12 : index
      %c0_202 = arith.constant 0 : index
      %c0_203 = arith.constant 0 : index
      %413 = vector.load %arg13[%c12, %c0_202, %c0_203] : memref<16x8x512xf32, #tpu.memory_space<vmem>>, vector<1x8x512xf32>
      %414 = vector.shape_cast %413 : vector<1x8x512xf32> to vector<8x512xf32>
      %415 = arith.truncf %411 : vector<8x128xf32> to vector<8x128xbf16>
      %c0_204 = arith.constant 0 : index
      %c0_205 = arith.constant 0 : index
      %416 = vector.load %arg7[%c0_204, %c0_205] : memref<128x512xbf16, #tpu.memory_space<vmem>>, vector<128x512xbf16>
      %cst_206 = arith.constant dense<0.000000e+00> : vector<8x512xf32>
      %417 = tpu.matmul %415, %416, %cst_206 {dimension_numbers = #tpu.dot_dimension_numbers<[1], [0], [0], [1], [0, 0, 1, 1], [], []>} : vector<8x128xbf16>, vector<128x512xbf16>, vector<8x512xf32> -> vector<8x512xf32>
      %418 = arith.addf %414, %417 : vector<8x512xf32>
      %419 = vector.extract_strided_slice %418 {offsets = [0, 0], sizes = [8, 384], strides = [1, 1]} : vector<8x512xf32> to vector<8x384xf32>
      %420 = arith.negf %419 : vector<8x384xf32>
      %421 = math.exp %420 : vector<8x384xf32>
      %cst_207 = arith.constant 1.000000e+00 : f32
      %422 = vector.broadcast %cst_207 : f32 to vector<8x384xf32>
      %423 = arith.addf %422, %421 : vector<8x384xf32>
      %424 = arith.divf %422, %423 : vector<8x384xf32>
      %425 = vector.extract_strided_slice %424 {offsets = [0, 0], sizes = [8, 128], strides = [1, 1]} : vector<8x384xf32> to vector<8x128xf32>
      %426 = vector.extract_strided_slice %424 {offsets = [0, 128], sizes = [8, 128], strides = [1, 1]} : vector<8x384xf32> to vector<8x128xf32>
      %427 = vector.extract_strided_slice %424 {offsets = [0, 256], sizes = [8, 128], strides = [1, 1]} : vector<8x384xf32> to vector<8x128xf32>
      %428 = vector.extract_strided_slice %418 {offsets = [0, 384], sizes = [8, 128], strides = [1, 1]} : vector<8x512xf32> to vector<8x128xf32>
      %429 = math.tanh %428 : vector<8x128xf32>
      %430 = arith.mulf %426, %412 : vector<8x128xf32>
      %431 = arith.mulf %425, %429 : vector<8x128xf32>
      %432 = arith.addf %430, %431 : vector<8x128xf32>
      %433 = math.tanh %432 : vector<8x128xf32>
      %434 = arith.mulf %427, %433 : vector<8x128xf32>
      %435 = vector.broadcast %410 : i32 to vector<8x128xi32>
      %436 = arith.cmpi slt, %435, %24 : vector<8x128xi32>
      %437 = arith.select %436, %434, %411 : vector<8x128xi1>, vector<8x128xf32>
      %c0_208 = arith.constant 0 : index
      %c0_209 = arith.constant 0 : index
      %438 = vector.load %arg11[%c0_208, %c0_209] : memref<8x128xf32, #tpu.memory_space<vmem>>, vector<8x128xf32>
      tpu.vector_store %arg11[%c0_208, %c0_209], %437 {strides = array<i32>} : memref<8x128xf32, #tpu.memory_space<vmem>>, vector<8x128xf32>,
      %439 = arith.select %436, %432, %412 : vector<8x128xi1>, vector<8x128xf32>
      %c0_210 = arith.constant 0 : index
      %c0_211 = arith.constant 0 : index
      %440 = vector.load %arg12[%c0_210, %c0_211] : memref<8x128xf32, #tpu.memory_space<vmem>>, vector<8x128xf32>
      tpu.vector_store %arg12[%c0_210, %c0_211], %439 {strides = array<i32>} : memref<8x128xf32, #tpu.memory_space<vmem>>, vector<8x128xf32>,
      %c16_i32_212 = arith.constant 16 : i32
      %441 = arith.muli %arg1, %c16_i32_212 : i32
      %c13_i32 = arith.constant 13 : i32
      %442 = arith.addi %441, %c13_i32 : i32
      %c0_213 = arith.constant 0 : index
      %c0_214 = arith.constant 0 : index
      %443 = vector.load %arg11[%c0_213, %c0_214] : memref<8x128xf32, #tpu.memory_space<vmem>>, vector<8x128xf32>
      %c0_215 = arith.constant 0 : index
      %c0_216 = arith.constant 0 : index
      %444 = vector.load %arg12[%c0_215, %c0_216] : memref<8x128xf32, #tpu.memory_space<vmem>>, vector<8x128xf32>
      %c13 = arith.constant 13 : index
      %c0_217 = arith.constant 0 : index
      %c0_218 = arith.constant 0 : index
      %445 = vector.load %arg13[%c13, %c0_217, %c0_218] : memref<16x8x512xf32, #tpu.memory_space<vmem>>, vector<1x8x512xf32>
      %446 = vector.shape_cast %445 : vector<1x8x512xf32> to vector<8x512xf32>
      %447 = arith.truncf %443 : vector<8x128xf32> to vector<8x128xbf16>
      %c0_219 = arith.constant 0 : index
      %c0_220 = arith.constant 0 : index
      %448 = vector.load %arg7[%c0_219, %c0_220] : memref<128x512xbf16, #tpu.memory_space<vmem>>, vector<128x512xbf16>
      %cst_221 = arith.constant dense<0.000000e+00> : vector<8x512xf32>
      %449 = tpu.matmul %447, %448, %cst_221 {dimension_numbers = #tpu.dot_dimension_numbers<[1], [0], [0], [1], [0, 0, 1, 1], [], []>} : vector<8x128xbf16>, vector<128x512xbf16>, vector<8x512xf32> -> vector<8x512xf32>
      %450 = arith.addf %446, %449 : vector<8x512xf32>
      %451 = vector.extract_strided_slice %450 {offsets = [0, 0], sizes = [8, 384], strides = [1, 1]} : vector<8x512xf32> to vector<8x384xf32>
      %452 = arith.negf %451 : vector<8x384xf32>
      %453 = math.exp %452 : vector<8x384xf32>
      %cst_222 = arith.constant 1.000000e+00 : f32
      %454 = vector.broadcast %cst_222 : f32 to vector<8x384xf32>
      %455 = arith.addf %454, %453 : vector<8x384xf32>
      %456 = arith.divf %454, %455 : vector<8x384xf32>
      %457 = vector.extract_strided_slice %456 {offsets = [0, 0], sizes = [8, 128], strides = [1, 1]} : vector<8x384xf32> to vector<8x128xf32>
      %458 = vector.extract_strided_slice %456 {offsets = [0, 128], sizes = [8, 128], strides = [1, 1]} : vector<8x384xf32> to vector<8x128xf32>
      %459 = vector.extract_strided_slice %456 {offsets = [0, 256], sizes = [8, 128], strides = [1, 1]} : vector<8x384xf32> to vector<8x128xf32>
      %460 = vector.extract_strided_slice %450 {offsets = [0, 384], sizes = [8, 128], strides = [1, 1]} : vector<8x512xf32> to vector<8x128xf32>
      %461 = math.tanh %460 : vector<8x128xf32>
      %462 = arith.mulf %458, %444 : vector<8x128xf32>
      %463 = arith.mulf %457, %461 : vector<8x128xf32>
      %464 = arith.addf %462, %463 : vector<8x128xf32>
      %465 = math.tanh %464 : vector<8x128xf32>
      %466 = arith.mulf %459, %465 : vector<8x128xf32>
      %467 = vector.broadcast %442 : i32 to vector<8x128xi32>
      %468 = arith.cmpi slt, %467, %24 : vector<8x128xi32>
      %469 = arith.select %468, %466, %443 : vector<8x128xi1>, vector<8x128xf32>
      %c0_223 = arith.constant 0 : index
      %c0_224 = arith.constant 0 : index
      %470 = vector.load %arg11[%c0_223, %c0_224] : memref<8x128xf32, #tpu.memory_space<vmem>>, vector<8x128xf32>
      tpu.vector_store %arg11[%c0_223, %c0_224], %469 {strides = array<i32>} : memref<8x128xf32, #tpu.memory_space<vmem>>, vector<8x128xf32>,
      %471 = arith.select %468, %464, %444 : vector<8x128xi1>, vector<8x128xf32>
      %c0_225 = arith.constant 0 : index
      %c0_226 = arith.constant 0 : index
      %472 = vector.load %arg12[%c0_225, %c0_226] : memref<8x128xf32, #tpu.memory_space<vmem>>, vector<8x128xf32>
      tpu.vector_store %arg12[%c0_225, %c0_226], %471 {strides = array<i32>} : memref<8x128xf32, #tpu.memory_space<vmem>>, vector<8x128xf32>,
      %c16_i32_227 = arith.constant 16 : i32
      %473 = arith.muli %arg1, %c16_i32_227 : i32
      %c14_i32 = arith.constant 14 : i32
      %474 = arith.addi %473, %c14_i32 : i32
      %c0_228 = arith.constant 0 : index
      %c0_229 = arith.constant 0 : index
      %475 = vector.load %arg11[%c0_228, %c0_229] : memref<8x128xf32, #tpu.memory_space<vmem>>, vector<8x128xf32>
      %c0_230 = arith.constant 0 : index
      %c0_231 = arith.constant 0 : index
      %476 = vector.load %arg12[%c0_230, %c0_231] : memref<8x128xf32, #tpu.memory_space<vmem>>, vector<8x128xf32>
      %c14 = arith.constant 14 : index
      %c0_232 = arith.constant 0 : index
      %c0_233 = arith.constant 0 : index
      %477 = vector.load %arg13[%c14, %c0_232, %c0_233] : memref<16x8x512xf32, #tpu.memory_space<vmem>>, vector<1x8x512xf32>
      %478 = vector.shape_cast %477 : vector<1x8x512xf32> to vector<8x512xf32>
      %479 = arith.truncf %475 : vector<8x128xf32> to vector<8x128xbf16>
      %c0_234 = arith.constant 0 : index
      %c0_235 = arith.constant 0 : index
      %480 = vector.load %arg7[%c0_234, %c0_235] : memref<128x512xbf16, #tpu.memory_space<vmem>>, vector<128x512xbf16>
      %cst_236 = arith.constant dense<0.000000e+00> : vector<8x512xf32>
      %481 = tpu.matmul %479, %480, %cst_236 {dimension_numbers = #tpu.dot_dimension_numbers<[1], [0], [0], [1], [0, 0, 1, 1], [], []>} : vector<8x128xbf16>, vector<128x512xbf16>, vector<8x512xf32> -> vector<8x512xf32>
      %482 = arith.addf %478, %481 : vector<8x512xf32>
      %483 = vector.extract_strided_slice %482 {offsets = [0, 0], sizes = [8, 384], strides = [1, 1]} : vector<8x512xf32> to vector<8x384xf32>
      %484 = arith.negf %483 : vector<8x384xf32>
      %485 = math.exp %484 : vector<8x384xf32>
      %cst_237 = arith.constant 1.000000e+00 : f32
      %486 = vector.broadcast %cst_237 : f32 to vector<8x384xf32>
      %487 = arith.addf %486, %485 : vector<8x384xf32>
      %488 = arith.divf %486, %487 : vector<8x384xf32>
      %489 = vector.extract_strided_slice %488 {offsets = [0, 0], sizes = [8, 128], strides = [1, 1]} : vector<8x384xf32> to vector<8x128xf32>
      %490 = vector.extract_strided_slice %488 {offsets = [0, 128], sizes = [8, 128], strides = [1, 1]} : vector<8x384xf32> to vector<8x128xf32>
      %491 = vector.extract_strided_slice %488 {offsets = [0, 256], sizes = [8, 128], strides = [1, 1]} : vector<8x384xf32> to vector<8x128xf32>
      %492 = vector.extract_strided_slice %482 {offsets = [0, 384], sizes = [8, 128], strides = [1, 1]} : vector<8x512xf32> to vector<8x128xf32>
      %493 = math.tanh %492 : vector<8x128xf32>
      %494 = arith.mulf %490, %476 : vector<8x128xf32>
      %495 = arith.mulf %489, %493 : vector<8x128xf32>
      %496 = arith.addf %494, %495 : vector<8x128xf32>
      %497 = math.tanh %496 : vector<8x128xf32>
      %498 = arith.mulf %491, %497 : vector<8x128xf32>
      %499 = vector.broadcast %474 : i32 to vector<8x128xi32>
      %500 = arith.cmpi slt, %499, %24 : vector<8x128xi32>
      %501 = arith.select %500, %498, %475 : vector<8x128xi1>, vector<8x128xf32>
      %c0_238 = arith.constant 0 : index
      %c0_239 = arith.constant 0 : index
      %502 = vector.load %arg11[%c0_238, %c0_239] : memref<8x128xf32, #tpu.memory_space<vmem>>, vector<8x128xf32>
      tpu.vector_store %arg11[%c0_238, %c0_239], %501 {strides = array<i32>} : memref<8x128xf32, #tpu.memory_space<vmem>>, vector<8x128xf32>,
      %503 = arith.select %500, %496, %476 : vector<8x128xi1>, vector<8x128xf32>
      %c0_240 = arith.constant 0 : index
      %c0_241 = arith.constant 0 : index
      %504 = vector.load %arg12[%c0_240, %c0_241] : memref<8x128xf32, #tpu.memory_space<vmem>>, vector<8x128xf32>
      tpu.vector_store %arg12[%c0_240, %c0_241], %503 {strides = array<i32>} : memref<8x128xf32, #tpu.memory_space<vmem>>, vector<8x128xf32>,
      %c16_i32_242 = arith.constant 16 : i32
      %505 = arith.muli %arg1, %c16_i32_242 : i32
      %c15_i32 = arith.constant 15 : i32
      %506 = arith.addi %505, %c15_i32 : i32
      %c0_243 = arith.constant 0 : index
      %c0_244 = arith.constant 0 : index
      %507 = vector.load %arg11[%c0_243, %c0_244] : memref<8x128xf32, #tpu.memory_space<vmem>>, vector<8x128xf32>
      %c0_245 = arith.constant 0 : index
      %c0_246 = arith.constant 0 : index
      %508 = vector.load %arg12[%c0_245, %c0_246] : memref<8x128xf32, #tpu.memory_space<vmem>>, vector<8x128xf32>
      %c15 = arith.constant 15 : index
      %c0_247 = arith.constant 0 : index
      %c0_248 = arith.constant 0 : index
      %509 = vector.load %arg13[%c15, %c0_247, %c0_248] : memref<16x8x512xf32, #tpu.memory_space<vmem>>, vector<1x8x512xf32>
      %510 = vector.shape_cast %509 : vector<1x8x512xf32> to vector<8x512xf32>
      %511 = arith.truncf %507 : vector<8x128xf32> to vector<8x128xbf16>
      %c0_249 = arith.constant 0 : index
      %c0_250 = arith.constant 0 : index
      %512 = vector.load %arg7[%c0_249, %c0_250] : memref<128x512xbf16, #tpu.memory_space<vmem>>, vector<128x512xbf16>
      %cst_251 = arith.constant dense<0.000000e+00> : vector<8x512xf32>
      %513 = tpu.matmul %511, %512, %cst_251 {dimension_numbers = #tpu.dot_dimension_numbers<[1], [0], [0], [1], [0, 0, 1, 1], [], []>} : vector<8x128xbf16>, vector<128x512xbf16>, vector<8x512xf32> -> vector<8x512xf32>
      %514 = arith.addf %510, %513 : vector<8x512xf32>
      %515 = vector.extract_strided_slice %514 {offsets = [0, 0], sizes = [8, 384], strides = [1, 1]} : vector<8x512xf32> to vector<8x384xf32>
      %516 = arith.negf %515 : vector<8x384xf32>
      %517 = math.exp %516 : vector<8x384xf32>
      %cst_252 = arith.constant 1.000000e+00 : f32
      %518 = vector.broadcast %cst_252 : f32 to vector<8x384xf32>
      %519 = arith.addf %518, %517 : vector<8x384xf32>
      %520 = arith.divf %518, %519 : vector<8x384xf32>
      %521 = vector.extract_strided_slice %520 {offsets = [0, 0], sizes = [8, 128], strides = [1, 1]} : vector<8x384xf32> to vector<8x128xf32>
      %522 = vector.extract_strided_slice %520 {offsets = [0, 128], sizes = [8, 128], strides = [1, 1]} : vector<8x384xf32> to vector<8x128xf32>
      %523 = vector.extract_strided_slice %520 {offsets = [0, 256], sizes = [8, 128], strides = [1, 1]} : vector<8x384xf32> to vector<8x128xf32>
      %524 = vector.extract_strided_slice %514 {offsets = [0, 384], sizes = [8, 128], strides = [1, 1]} : vector<8x512xf32> to vector<8x128xf32>
      %525 = math.tanh %524 : vector<8x128xf32>
      %526 = arith.mulf %522, %508 : vector<8x128xf32>
      %527 = arith.mulf %521, %525 : vector<8x128xf32>
      %528 = arith.addf %526, %527 : vector<8x128xf32>
      %529 = math.tanh %528 : vector<8x128xf32>
      %530 = arith.mulf %523, %529 : vector<8x128xf32>
      %531 = vector.broadcast %506 : i32 to vector<8x128xi32>
      %532 = arith.cmpi slt, %531, %24 : vector<8x128xi32>
      %533 = arith.select %532, %530, %507 : vector<8x128xi1>, vector<8x128xf32>
      %c0_253 = arith.constant 0 : index
      %c0_254 = arith.constant 0 : index
      %534 = vector.load %arg11[%c0_253, %c0_254] : memref<8x128xf32, #tpu.memory_space<vmem>>, vector<8x128xf32>
      tpu.vector_store %arg11[%c0_253, %c0_254], %533 {strides = array<i32>} : memref<8x128xf32, #tpu.memory_space<vmem>>, vector<8x128xf32>,
      %535 = arith.select %532, %528, %508 : vector<8x128xi1>, vector<8x128xf32>
      %c0_255 = arith.constant 0 : index
      %c0_256 = arith.constant 0 : index
      %536 = vector.load %arg12[%c0_255, %c0_256] : memref<8x128xf32, #tpu.memory_space<vmem>>, vector<8x128xf32>
      tpu.vector_store %arg12[%c0_255, %c0_256], %535 {strides = array<i32>} : memref<8x128xf32, #tpu.memory_space<vmem>>, vector<8x128xf32>,
    } else {
    }
    %c0_i32_2 = arith.constant 0 : i32
    %9 = arith.cmpi eq, %arg1, %c0_i32_2 : i32
    %10 = arith.extui %9 : i1 to i32
    %c0_i32_3 = arith.constant 0 : i32
    %11 = arith.cmpi ne, %10, %c0_i32_3 : i32
    scf.if %11 {
      %c0 = arith.constant 0 : index
      %c0_4 = arith.constant 0 : index
      %12 = vector.load %arg11[%c0, %c0_4] : memref<8x128xf32, #tpu.memory_space<vmem>>, vector<8x128xf32>
      %c0_5 = arith.constant 0 : index
      %c0_6 = arith.constant 0 : index
      %13 = vector.load %arg8[%c0_5, %c0_6] : memref<128x1xf32, #tpu.memory_space<vmem>>, vector<128x1xf32>
      %cst = arith.constant dense<0.000000e+00> : vector<8x1xf32>
      %14 = tpu.matmul %12, %13, %cst {dimension_numbers = #tpu.dot_dimension_numbers<[1], [0], [0], [1], [0, 0, 1, 1], [], []>} : vector<8x128xf32>, vector<128x1xf32>, vector<8x1xf32> -> vector<8x1xf32>
      %c0_7 = arith.constant 0 : index
      %c0_8 = arith.constant 0 : index
      %15 = vector.load %arg9[%c0_7, %c0_8] : memref<1x1xf32, #tpu.memory_space<vmem>>, vector<1x1xf32>
      %16 = vector.broadcast %15 : vector<1x1xf32> to vector<8x1xf32>
      %17 = arith.addf %14, %16 : vector<8x1xf32>
      %18 = arith.negf %17 : vector<8x1xf32>
      %19 = math.exp %18 : vector<8x1xf32>
      %cst_9 = arith.constant 1.000000e+00 : f32
      %20 = vector.broadcast %cst_9 : f32 to vector<8x1xf32>
      %21 = arith.addf %20, %19 : vector<8x1xf32>
      %22 = arith.divf %20, %21 : vector<8x1xf32>
      %c0_10 = arith.constant 0 : index
      %c0_11 = arith.constant 0 : index
      %23 = vector.load %arg10[%c0_10, %c0_11] : memref<8x1xf32, #tpu.memory_space<vmem>>, vector<8x1xf32>
      tpu.vector_store %arg10[%c0_10, %c0_11], %22 {strides = array<i32>} : memref<8x1xf32, #tpu.memory_space<vmem>>, vector<8x1xf32>,
    } else {
    }
    return
  }
  func.func @transform_0(%arg0: i32, %arg1: i32, %arg2: memref<1xi32, #tpu.memory_space<smem>>) -> (i32, i32) {
    %c0_i32 = arith.constant 0 : i32
    %c0_i32_0 = arith.constant 0 : i32
    return %arg0, %c0_i32 : i32, i32
  }
  func.func @transform_1(%arg0: i32, %arg1: i32, %arg2: memref<1xi32, #tpu.memory_space<smem>>) -> (i32, i32, i32) {
    %c0_i32 = arith.constant 0 : i32
    %c0_i32_0 = arith.constant 0 : i32
    return %arg1, %arg0, %c0_i32 : i32, i32, i32
  }
  func.func @transform_2(%arg0: i32, %arg1: i32, %arg2: memref<1xi32, #tpu.memory_space<smem>>) -> (i32, i32) {
    %c0_i32 = arith.constant 0 : i32
    %c0_i32_0 = arith.constant 0 : i32
    %c0_i32_1 = arith.constant 0 : i32
    return %c0_i32, %c0_i32_0 : i32, i32
  }
  func.func @transform_3(%arg0: i32, %arg1: i32, %arg2: memref<1xi32, #tpu.memory_space<smem>>) -> (i32, i32) {
    %c0_i32 = arith.constant 0 : i32
    %c0_i32_0 = arith.constant 0 : i32
    %c0_i32_1 = arith.constant 0 : i32
    return %c0_i32, %c0_i32_0 : i32, i32
  }
  func.func @transform_4(%arg0: i32, %arg1: i32, %arg2: memref<1xi32, #tpu.memory_space<smem>>) -> (i32, i32) {
    %c0_i32 = arith.constant 0 : i32
    %c0_i32_0 = arith.constant 0 : i32
    %c0_i32_1 = arith.constant 0 : i32
    return %c0_i32, %c0_i32_0 : i32, i32
  }
  func.func @transform_5(%arg0: i32, %arg1: i32, %arg2: memref<1xi32, #tpu.memory_space<smem>>) -> (i32, i32) {
    %c0_i32 = arith.constant 0 : i32
    %c0_i32_0 = arith.constant 0 : i32
    %c0_i32_1 = arith.constant 0 : i32
    return %c0_i32, %c0_i32_0 : i32, i32
  }
  func.func @transform_6(%arg0: i32, %arg1: i32, %arg2: memref<1xi32, #tpu.memory_space<smem>>) -> (i32, i32) {
    %c0_i32 = arith.constant 0 : i32
    %c0_i32_0 = arith.constant 0 : i32
    %c0_i32_1 = arith.constant 0 : i32
    return %c0_i32, %c0_i32_0 : i32, i32
  }
  func.func @transform_7(%arg0: i32, %arg1: i32, %arg2: memref<1xi32, #tpu.memory_space<smem>>) -> (i32, i32) {
    %c0_i32 = arith.constant 0 : i32
    %c0_i32_0 = arith.constant 0 : i32
    return %arg0, %c0_i32 : i32, i32
  }
}

</mosaic_0001>

<llo_original>
// kernel: tpu_custom_call.1
$region0: #{tpu_custom_call.1}
  #allocation0 [shape = 'u32[]', space=smem, size = 0x4, offset = 0x4, fixed_abs, tag = 'smem constant byte address 0x4 - core index']
  #allocation1 [shape = 'u32[144,128]{1,0:T(1,128)}', space=vmem, size = 0x12000, scoped, tag = 'internal scratch']
  #allocation2 [shape = 'f32[8,128]{1,0:T(8,128)}', space=vmem, size = 0x1000, scoped, tag = 'scratch operand']
  #allocation3 [shape = 'f32[8,128]{1,0:T(8,128)}', space=vmem, size = 0x1000, scoped, tag = 'scratch operand']
  #allocation4 [shape = 'f32[16,8,512]{2,1,0:T(8,128)}', space=vmem, size = 0x40000, scoped, tag = 'scratch operand']
  #allocation5 [shape = 's32[1]{0}', space=sflag, size = 0x4, scoped, tag = 'scoped memory for tpu_custom_call.1']
  #allocation6 [shape = 's32[1]{0:T(128)S(6)}', space=smem, size = 0x200, scoped, tag = 'prefetched SMEM operand 0']
  #allocation7 [shape = 'f32[1,1]{1,0:T(1,128)S(1)}', space=vmem, size = 0x200, scoped, tag = 'scoped memory for tpu_custom_call.1']
  %s0 = inlined_call_operand.<no memory space> [shape: s32[1], index: 0, kind: input, shape index: {}]
  %s1 = inlined_call_operand.vmem [shape: s32[8,1], index: 1, kind: input, shape index: {}]
  %s2 = inlined_call_operand.vmem [shape: f32[16,8,16], index: 2, kind: input, shape index: {}]
  %s3 = inlined_call_operand.hbm [shape: bf16[16,512], index: 3, kind: input, shape index: {}]
  %s4 = inlined_call_operand.vmem [shape: f32[1,512], index: 4, kind: input, shape index: {}]
  %s5 = inlined_call_operand.hbm [shape: bf16[128,512], index: 5, kind: input, shape index: {}]
  %s6 = inlined_call_operand.vmem [shape: f32[128,1], index: 6, kind: input, shape index: {}]
  %s7 = inlined_call_operand.<no memory space> [shape: f32[1,1], index: 7, kind: input, shape index: {}]
  %s8 = inlined_call_operand.vmem [shape: f32[8,1], index: 8, kind: output, shape index: {}]
  %s9 = sld [smem:[#allocation0]]
  $region58: #{tpu_custom_call.1} parent=0
    _
  %s11 = ssub.s32 1, %s9
  %s12 = scalar_select 0, %s11, %s9
  %13 = sst [smem:[#allocation6]] %s0
  %v14 = vstv %s7
  %15 = vst [vmem:[#allocation7] sm:$0x1] %v14
  $region1: #{tpu_custom_call.1} parent=0
    #allocation8 [shape = 'u8[16384]{0}', space=vmem, size = 0x4000, scoped, tag = 'input window, operand 3, single buffered']
    #allocation9 [shape = 's32[1]{0}', space=sflag, size = 0x4, scoped, tag = 'scoped memory for tpu_custom_call.1']
    #allocation10 [shape = 'u8[131072]{0}', space=vmem, size = 0x20000, scoped, tag = 'input window, operand 5, single buffered']
    #allocation11 [shape = 's32[1]{0}', space=sflag, size = 0x4, scoped, tag = 'scoped memory for tpu_custom_call.1']
    %16 = vsyncpa [#allocation9], 0
    %17 = vsyncpa [#allocation11], 0
    // Predicated region
    $region2: #{tpu_custom_call.1} parent=1 // pred_check
      _
    $region3: #{tpu_custom_call.1} parent=1 // pred_check_branch
      %19 = sbr.rel (0) target = $region5
    $region4: #{tpu_custom_call.1} parent=1 // pred_region
      _
    $region5: #{tpu_custom_call.1} parent=1 // pred_fallthru
      _
    // Predicated region
    $region6: #{tpu_custom_call.1} parent=1 // pred_check
      _
    $region7: #{tpu_custom_call.1} parent=1 // pred_check_branch
      %21 = sbr.rel (0) target = $region9
    $region8: #{tpu_custom_call.1} parent=1 // pred_region
      _
    $region9: #{tpu_custom_call.1} parent=1 // pred_fallthru
      _
    // Predicated region
    $region10: #{tpu_custom_call.1} parent=1 // pred_check
      _
    $region11: #{tpu_custom_call.1} parent=1 // pred_check_branch
      %23 = sbr.rel (0) target = $region13
    $region12: #{tpu_custom_call.1} parent=1 // pred_region
      %s25 = ssub.s32 512, 512
      %26 = vsyncadd [#allocation9], %s25
      %s27 = sshll.u32 [#allocation8], 4
      %s28 = int_to_ptr.vmem [resolvable:$true] %s27
      %33 = dma.hbm_to_vmem [thread:$0]  %s3, 512, %s28, [#allocation9], 256, 256, 16
    $region13: #{tpu_custom_call.1} parent=1 // pred_fallthru
      _
    // Predicated region
    $region14: #{tpu_custom_call.1} parent=1 // pred_check
      _
    $region15: #{tpu_custom_call.1} parent=1 // pred_check_branch
      %35 = sbr.rel (0) target = $region17
    $region16: #{tpu_custom_call.1} parent=1 // pred_region
      _
    $region17: #{tpu_custom_call.1} parent=1 // pred_fallthru
      _
    // Predicated region
    $region18: #{tpu_custom_call.1} parent=1 // pred_check
      _
    $region19: #{tpu_custom_call.1} parent=1 // pred_check_branch
      %37 = sbr.rel (0) target = $region21
    $region20: #{tpu_custom_call.1} parent=1 // pred_region
      %s39 = ssub.s32 4096, 4096
      %40 = vsyncadd [#allocation11], %s39
      %s41 = sshll.u32 [#allocation10], 4
      %s42 = int_to_ptr.vmem [resolvable:$true] %s41
      %47 = dma.hbm_to_vmem [thread:$0]  %s5, 4096, %s42, [#allocation11], 256, 256, 16
    $region21: #{tpu_custom_call.1} parent=1 // pred_fallthru
      _
    // Predicated region
    $region22: #{tpu_custom_call.1} parent=1 // pred_check
      _
    $region23: #{tpu_custom_call.1} parent=1 // pred_check_branch
      %49 = sbr.rel (0) target = $region25
    $region24: #{tpu_custom_call.1} parent=1 // pred_region
      _
    $region25: #{tpu_custom_call.1} parent=1 // pred_fallthru
      _
    // Predicated region
    $region26: #{tpu_custom_call.1} parent=1 // pred_check
      _
    $region27: #{tpu_custom_call.1} parent=1 // pred_check_branch
      %51 = sbr.rel (0) target = $region29
    $region28: #{tpu_custom_call.1} parent=1 // pred_region
      _
    $region29: #{tpu_custom_call.1} parent=1 // pred_fallthru
      _
    // Predicated region
    $region30: #{tpu_custom_call.1} parent=1 // pred_check
      _
    $region31: #{tpu_custom_call.1} parent=1 // pred_check_branch
      %53 = sbr.rel (0) target = $region33
    $region32: #{tpu_custom_call.1} parent=1 // pred_region
      %54 = dma.done [#allocation9], 512
    $region33: #{tpu_custom_call.1} parent=1 // pred_fallthru
      _
    // Predicated region
    $region34: #{tpu_custom_call.1} parent=1 // pred_check
      _
    $region35: #{tpu_custom_call.1} parent=1 // pred_check_branch
      %56 = sbr.rel (0) target = $region37
    $region36: #{tpu_custom_call.1} parent=1 // pred_region
      %57 = dma.done [#allocation11], 4096
    $region37: #{tpu_custom_call.1} parent=1 // pred_fallthru
      _
    %p59 = scmp.eq.s32.totalorder 0, 0
    // Predicated region
    $region38: #{tpu_custom_call.1} parent=1 // pred_check
      %p60 = pneg %p59
    $region39: #{tpu_custom_call.1} parent=1 // pred_check_branch
      %62 = sbr.rel (%p60) target = $region41
    $region40: #{tpu_custom_call.1} parent=1 // pred_region
      %63 = vst [vmem:[#allocation2] sm:$0xff] 0.0
      %64 = vst [vmem:[#allocation3] sm:$0xff] 0.0
    $region41: #{tpu_custom_call.1} parent=1 // pred_fallthru
      _
    %s65 = smul.u32 0, 16
    %s66 = sld [smem:[#allocation6]]
    %p67 = scmp.lt.s32.totalorder %s65, %s66
    // Predicated region
    $region42: #{tpu_custom_call.1} parent=1 // pred_check
      %p68 = pneg %p67
    $region43: #{tpu_custom_call.1} parent=1 // pred_check_branch
      %70 = sbr.rel (%p68) target = $region45
    $region44: #{tpu_custom_call.1} parent=1 // pred_region
      %v71 = vld [vmem:[%s2] sm:$0xff]
      %v72 = vld [vmem:[%s2 + $0x8] sm:$0xff]
      %v73 = vld [vmem:[%s2 + $0x10] sm:$0xff]
      %v74 = vld [vmem:[%s2 + $0x18] sm:$0xff]
      %v75 = vld [vmem:[%s2 + $0x20] sm:$0xff]
      %v76 = vld [vmem:[%s2 + $0x28] sm:$0xff]
      %v77 = vld [vmem:[%s2 + $0x30] sm:$0xff]
      %v78 = vld [vmem:[%s2 + $0x38] sm:$0xff]
      %v79 = vld [vmem:[%s2 + $0x40] sm:$0xff]
      %v80 = vld [vmem:[%s2 + $0x48] sm:$0xff]
      %v81 = vld [vmem:[%s2 + $0x50] sm:$0xff]
      %v82 = vld [vmem:[%s2 + $0x58] sm:$0xff]
      %v83 = vld [vmem:[%s2 + $0x60] sm:$0xff]
      %v84 = vld [vmem:[%s2 + $0x68] sm:$0xff]
      %v85 = vld [vmem:[%s2 + $0x70] sm:$0xff]
      %v86 = vld [vmem:[%s2 + $0x78] sm:$0xff]
      %v87 = vpack.c.bf16 %v72, %v71
      %v88 = vpack.c.bf16 %v74, %v73
      %v89 = vpack.c.bf16 %v76, %v75
      %v90 = vpack.c.bf16 %v78, %v77
      %v91 = vpack.c.bf16 %v80, %v79
      %v92 = vpack.c.bf16 %v82, %v81
      %v93 = vpack.c.bf16 %v84, %v83
      %v94 = vpack.c.bf16 %v86, %v85
      %v95 = vld [vmem:[#allocation8] sm:$0xff]
      %v96 = vld [vmem:[#allocation8 + $0x8] sm:$0xff]
      %v97 = vld [vmem:[#allocation8 + $0x10] sm:$0xff]
      %v98 = vld [vmem:[#allocation8 + $0x18] sm:$0xff]
      %v99 = vld [vmem:[%s4] sm:$0xf]
      %v101 = vlaneseq
      %v102 = vshrl.u32 %v101, 7
      %v103 = vsub.s32 0, %v102
      %v104 = vrot.slane %v99, %v103
      %v105 = vlaneseq
      %v106 = vshrl.u32 %v105, 7
      %v107 = vsub.s32 1, %v106
      %v108 = vrot.slane %v99, %v107
      %v109 = vlaneseq
      %v110 = vshrl.u32 %v109, 7
      %v111 = vsub.s32 2, %v110
      %v112 = vrot.slane %v99, %v111
      %v113 = vlaneseq
      %v114 = vshrl.u32 %v113, 7
      %v115 = vsub.s32 3, %v114
      %v116 = vrot.slane %v99, %v115
      %v125 = vunpack.c.l.b16 %v95
      %v126 = vunpack.c.h.b16 %v95
      %v127 = vunpack.c.l.b16 %v96
      %v128 = vunpack.c.h.b16 %v96
      %v129 = vunpack.c.l.b16 %v97
      %v130 = vunpack.c.h.b16 %v97
      %v131 = vunpack.c.l.b16 %v98
      %v132 = vunpack.c.h.b16 %v98
      %v133 = vpack.c.b16 %v129, %v125
      %v134 = vpack.c.b16 %v130, %v126
      %v135 = vpack.c.b16 %v131, %v127
      %v136 = vpack.c.b16 %v132, %v128
      %vm141 = vcmask 130048
      %v143 = vsel %vm141, %v87, 0
      %v146 = vsel %vm141, %v88, 0
      %v149 = vsel %vm141, %v89, 0
      %v152 = vsel %vm141, %v90, 0
      %v155 = vsel %vm141, %v91, 0
      %v158 = vsel %vm141, %v92, 0
      %v161 = vsel %vm141, %v93, 0
      %v164 = vsel %vm141, %v94, 0
      %166 = vmatprep.subr.bf16.mxu0 %v134
      %167 = vmatpush1.bf16.msra.mxu0 %v133
      %168 = vmatprep.subr.bf16.mxu0 0
      %169 = vmatpush1.bf16.msra.mxu0 0
      %170 = vmatprep.subr.bf16.mxu0 0
      %171 = vmatpush1.bf16.msra.mxu0 0
      %172 = vmatprep.subr.bf16.mxu0 0
      %173 = vmatpush1.bf16.msra.mxu0 0
      %174 = vmatprep.subr.bf16.mxu0 0
      %175 = vmatpush1.bf16.msra.mxu0 0
      %176 = vmatprep.subr.bf16.mxu0 0
      %177 = vmatpush1.bf16.msra.mxu0 0
      %178 = vmatprep.subr.bf16.mxu0 0
      %179 = vmatpush1.bf16.msra.mxu0 0
      %180 = vmatprep.subr.bf16.mxu0 0
      %181 = vmatpush1.bf16.msra.mxu0 0
      %182 = vmatprep.subr.bf16.mxu0 0
      %183 = vmatpush1.bf16.msra.mxu0 0
      %184 = vmatprep.subr.bf16.mxu0 0
      %185 = vmatpush1.bf16.msra.mxu0 0
      %186 = vmatprep.subr.bf16.mxu0 0
      %187 = vmatpush1.bf16.msra.mxu0 0
      %188 = vmatprep.subr.bf16.mxu0 0
      %189 = vmatpush1.bf16.msra.mxu0 0
      %190 = vmatprep.subr.bf16.mxu0 0
      %191 = vmatpush1.bf16.msra.mxu0 0
      %192 = vmatprep.subr.bf16.mxu0 0
      %193 = vmatpush1.bf16.msra.mxu0 0
      %194 = vmatprep.subr.bf16.mxu0 0
      %195 = vmatpush1.bf16.msra.mxu0 0
      %196 = vmatprep.subr.bf16.mxu0 0
      %197 = vmatpush1.bf16.msra.mxu0 0
      %198 = vmatprep.mubr.bf16.mxu0 0
      %199 = vmatmul.mubr.bf16.gmra.mrb[0].mxu0 %v143
      %v200 = vpop.f32.mrb[0].mxu0
      %v201 = vadd.f32 %v104, %v200
      %v202 = vpop.f32.mrb[0].mxu0
      %v203 = vadd.f32 %v108, %v202
      %v204 = vpop.f32.mrb[0].mxu0
      %v205 = vadd.f32 %v104, %v204
      %v206 = vpop.f32.mrb[0].mxu0
      %v207 = vadd.f32 %v108, %v206
      %208 = vmatprep.mubr.bf16.mxu0 0
      %209 = vmatmul.mubr.bf16.gmra.mrb[0].mxu0 %v146
      %v210 = vpop.f32.mrb[0].mxu0
      %v211 = vadd.f32 %v104, %v210
      %v212 = vpop.f32.mrb[0].mxu0
      %v213 = vadd.f32 %v108, %v212
      %v214 = vpop.f32.mrb[0].mxu0
      %v215 = vadd.f32 %v104, %v214
      %v216 = vpop.f32.mrb[0].mxu0
      %v217 = vadd.f32 %v108, %v216
      %218 = vmatprep.mubr.bf16.mxu0 0
      %219 = vmatmul.mubr.bf16.gmra.mrb[0].mxu0 %v149
      %v220 = vpop.f32.mrb[0].mxu0
      %v221 = vadd.f32 %v104, %v220
      %v222 = vpop.f32.mrb[0].mxu0
      %v223 = vadd.f32 %v108, %v222
      %v224 = vpop.f32.mrb[0].mxu0
      %v225 = vadd.f32 %v104, %v224
      %v226 = vpop.f32.mrb[0].mxu0
      %v227 = vadd.f32 %v108, %v226
      %228 = vmatprep.mubr.bf16.mxu0 0
      %229 = vmatmul.mubr.bf16.gmra.mrb[0].mxu0 %v152
      %v230 = vpop.f32.mrb[0].mxu0
      %v231 = vadd.f32 %v104, %v230
      %v232 = vpop.f32.mrb[0].mxu0
      %v233 = vadd.f32 %v108, %v232
      %v234 = vpop.f32.mrb[0].mxu0
      %v235 = vadd.f32 %v104, %v234
      %v236 = vpop.f32.mrb[0].mxu0
      %v237 = vadd.f32 %v108, %v236
      %238 = vmatprep.mubr.bf16.mxu0 0
      %239 = vmatmul.mubr.bf16.gmra.mrb[0].mxu0 %v155
      %v240 = vpop.f32.mrb[0].mxu0
      %v241 = vadd.f32 %v104, %v240
      %v242 = vpop.f32.mrb[0].mxu0
      %v243 = vadd.f32 %v108, %v242
      %v244 = vpop.f32.mrb[0].mxu0
      %v245 = vadd.f32 %v104, %v244
      %v246 = vpop.f32.mrb[0].mxu0
      %v247 = vadd.f32 %v108, %v246
      %248 = vmatprep.mubr.bf16.mxu0 0
      %249 = vmatmul.mubr.bf16.gmra.mrb[0].mxu0 %v158
      %v250 = vpop.f32.mrb[0].mxu0
      %v251 = vadd.f32 %v104, %v250
      %v252 = vpop.f32.mrb[0].mxu0
      %v253 = vadd.f32 %v108, %v252
      %v254 = vpop.f32.mrb[0].mxu0
      %v255 = vadd.f32 %v104, %v254
      %v256 = vpop.f32.mrb[0].mxu0
      %v257 = vadd.f32 %v108, %v256
      %258 = vmatprep.mubr.bf16.mxu0 0
      %259 = vmatmul.mubr.bf16.gmra.mrb[0].mxu0 %v161
      %v260 = vpop.f32.mrb[0].mxu0
      %v261 = vadd.f32 %v104, %v260
      %v262 = vpop.f32.mrb[0].mxu0
      %v263 = vadd.f32 %v108, %v262
      %v264 = vpop.f32.mrb[0].mxu0
      %v265 = vadd.f32 %v104, %v264
      %v266 = vpop.f32.mrb[0].mxu0
      %v267 = vadd.f32 %v108, %v266
      %268 = vmatprep.mubr.bf16.mxu0 0
      %269 = vmatmul.mubr.bf16.gmra.mrb[0].mxu0 %v164
      %v270 = vpop.f32.mrb[0].mxu0
      %v271 = vadd.f32 %v104, %v270
      %v272 = vpop.f32.mrb[0].mxu0
      %v273 = vadd.f32 %v108, %v272
      %v274 = vpop.f32.mrb[0].mxu0
      %v275 = vadd.f32 %v104, %v274
      %v276 = vpop.f32.mrb[0].mxu0
      %v277 = vadd.f32 %v108, %v276
      %278 = vdwg.mxu0
      %279 = vmatprep.subr.bf16.mxu0 %v136
      %280 = vmatpush1.bf16.msra.mxu0 %v135
      %281 = vmatprep.subr.bf16.mxu0 0
      %282 = vmatpush1.bf16.msra.mxu0 0
      %283 = vmatprep.subr.bf16.mxu0 0
      %284 = vmatpush1.bf16.msra.mxu0 0
      %285 = vmatprep.subr.bf16.mxu0 0
      %286 = vmatpush1.bf16.msra.mxu0 0
      %287 = vmatprep.subr.bf16.mxu0 0
      %288 = vmatpush1.bf16.msra.mxu0 0
      %289 = vmatprep.subr.bf16.mxu0 0
      %290 = vmatpush1.bf16.msra.mxu0 0
      %291 = vmatprep.subr.bf16.mxu0 0
      %292 = vmatpush1.bf16.msra.mxu0 0
      %293 = vmatprep.subr.bf16.mxu0 0
      %294 = vmatpush1.bf16.msra.mxu0 0
      %295 = vmatprep.subr.bf16.mxu0 0
      %296 = vmatpush1.bf16.msra.mxu0 0
      %297 = vmatprep.subr.bf16.mxu0 0
      %298 = vmatpush1.bf16.msra.mxu0 0
      %299 = vmatprep.subr.bf16.mxu0 0
      %300 = vmatpush1.bf16.msra.mxu0 0
      %301 = vmatprep.subr.bf16.mxu0 0
      %302 = vmatpush1.bf16.msra.mxu0 0
      %303 = vmatprep.subr.bf16.mxu0 0
      %304 = vmatpush1.bf16.msra.mxu0 0
      %305 = vmatprep.subr.bf16.mxu0 0
      %306 = vmatpush1.bf16.msra.mxu0 0
      %307 = vmatprep.subr.bf16.mxu0 0
      %308 = vmatpush1.bf16.msra.mxu0 0
      %309 = vmatprep.subr.bf16.mxu0 0
      %310 = vmatpush1.bf16.msra.mxu0 0
      %311 = vmatprep.mubr.bf16.mxu0 0
      %312 = vmatmul.mubr.bf16.gmra.mrb[0].mxu0 %v143
      %v313 = vpop.f32.mrb[0].mxu0
      %v314 = vadd.f32 %v112, %v313
      %v315 = vpop.f32.mrb[0].mxu0
      %v316 = vadd.f32 %v116, %v315
      %v317 = vpop.f32.mrb[0].mxu0
      %v318 = vadd.f32 %v112, %v317
      %v319 = vpop.f32.mrb[0].mxu0
      %v320 = vadd.f32 %v116, %v319
      %321 = vmatprep.mubr.bf16.mxu0 0
      %322 = vmatmul.mubr.bf16.gmra.mrb[0].mxu0 %v146
      %v323 = vpop.f32.mrb[0].mxu0
      %v324 = vadd.f32 %v112, %v323
      %v325 = vpop.f32.mrb[0].mxu0
      %v326 = vadd.f32 %v116, %v325
      %v327 = vpop.f32.mrb[0].mxu0
      %v328 = vadd.f32 %v112, %v327
      %v329 = vpop.f32.mrb[0].mxu0
      %v330 = vadd.f32 %v116, %v329
      %331 = vmatprep.mubr.bf16.mxu0 0
      %332 = vmatmul.mubr.bf16.gmra.mrb[0].mxu0 %v149
      %v333 = vpop.f32.mrb[0].mxu0
      %v334 = vadd.f32 %v112, %v333
      %v335 = vpop.f32.mrb[0].mxu0
      %v336 = vadd.f32 %v116, %v335
      %v337 = vpop.f32.mrb[0].mxu0
      %v338 = vadd.f32 %v112, %v337
      %v339 = vpop.f32.mrb[0].mxu0
      %v340 = vadd.f32 %v116, %v339
      %341 = vmatprep.mubr.bf16.mxu0 0
      %342 = vmatmul.mubr.bf16.gmra.mrb[0].mxu0 %v152
      %v343 = vpop.f32.mrb[0].mxu0
      %v344 = vadd.f32 %v112, %v343
      %v345 = vpop.f32.mrb[0].mxu0
      %v346 = vadd.f32 %v116, %v345
      %v347 = vpop.f32.mrb[0].mxu0
      %v348 = vadd.f32 %v112, %v347
      %v349 = vpop.f32.mrb[0].mxu0
      %v350 = vadd.f32 %v116, %v349
      %351 = vmatprep.mubr.bf16.mxu0 0
      %352 = vmatmul.mubr.bf16.gmra.mrb[0].mxu0 %v155
      %v353 = vpop.f32.mrb[0].mxu0
      %v354 = vadd.f32 %v112, %v353
      %v355 = vpop.f32.mrb[0].mxu0
      %v356 = vadd.f32 %v116, %v355
      %v357 = vpop.f32.mrb[0].mxu0
      %v358 = vadd.f32 %v112, %v357
      %v359 = vpop.f32.mrb[0].mxu0
      %v360 = vadd.f32 %v116, %v359
      %361 = vmatprep.mubr.bf16.mxu0 0
      %362 = vmatmul.mubr.bf16.gmra.mrb[0].mxu0 %v158
      %v363 = vpop.f32.mrb[0].mxu0
      %v364 = vadd.f32 %v112, %v363
      %v365 = vpop.f32.mrb[0].mxu0
      %v366 = vadd.f32 %v116, %v365
      %v367 = vpop.f32.mrb[0].mxu0
      %v368 = vadd.f32 %v112, %v367
      %v369 = vpop.f32.mrb[0].mxu0
      %v370 = vadd.f32 %v116, %v369
      %371 = vmatprep.mubr.bf16.mxu0 0
      %372 = vmatmul.mubr.bf16.gmra.mrb[0].mxu0 %v161
      %v373 = vpop.f32.mrb[0].mxu0
      %v374 = vadd.f32 %v112, %v373
      %v375 = vpop.f32.mrb[0].mxu0
      %v376 = vadd.f32 %v116, %v375
      %v377 = vpop.f32.mrb[0].mxu0
      %v378 = vadd.f32 %v112, %v377
      %v379 = vpop.f32.mrb[0].mxu0
      %v380 = vadd.f32 %v116, %v379
      %381 = vmatprep.mubr.bf16.mxu0 0
      %382 = vmatmul.mubr.bf16.gmra.mrb[0].mxu0 %v164
      %v383 = vpop.f32.mrb[0].mxu0
      %v384 = vadd.f32 %v112, %v383
      %v385 = vpop.f32.mrb[0].mxu0
      %v386 = vadd.f32 %v116, %v385
      %v387 = vpop.f32.mrb[0].mxu0
      %v388 = vadd.f32 %v112, %v387
      %v389 = vpop.f32.mrb[0].mxu0
      %v390 = vadd.f32 %v116, %v389
      %391 = vdwg.mxu0
      %392 = vst [vmem:[#allocation4] sm:$0xff] %v201
      %393 = vst [vmem:[#allocation4 + $0x8] sm:$0xff] %v203
      %394 = vst [vmem:[#allocation4 + $0x10] sm:$0xff] %v314
      %395 = vst [vmem:[#allocation4 + $0x18] sm:$0xff] %v316
      %396 = vst [vmem:[#allocation4 + $0x20] sm:$0xff] %v205
      %397 = vst [vmem:[#allocation4 + $0x28] sm:$0xff] %v207
      %398 = vst [vmem:[#allocation4 + $0x30] sm:$0xff] %v318
      %399 = vst [vmem:[#allocation4 + $0x38] sm:$0xff] %v320
      %400 = vst [vmem:[#allocation4 + $0x40] sm:$0xff] %v211
      %401 = vst [vmem:[#allocation4 + $0x48] sm:$0xff] %v213
      %402 = vst [vmem:[#allocation4 + $0x50] sm:$0xff] %v324
      %403 = vst [vmem:[#allocation4 + $0x58] sm:$0xff] %v326
      %404 = vst [vmem:[#allocation4 + $0x60] sm:$0xff] %v215
      %405 = vst [vmem:[#allocation4 + $0x68] sm:$0xff] %v217
      %406 = vst [vmem:[#allocation4 + $0x70] sm:$0xff] %v328
      %407 = vst [vmem:[#allocation4 + $0x78] sm:$0xff] %v330
      %408 = vst [vmem:[#allocation4 + $0x80] sm:$0xff] %v221
      %409 = vst [vmem:[#allocation4 + $0x88] sm:$0xff] %v223
      %410 = vst [vmem:[#allocation4 + $0x90] sm:$0xff] %v334
      %411 = vst [vmem:[#allocation4 + $0x98] sm:$0xff] %v336
      %412 = vst [vmem:[#allocation4 + $0xa0] sm:$0xff] %v225
      %413 = vst [vmem:[#allocation4 + $0xa8] sm:$0xff] %v227
      %414 = vst [vmem:[#allocation4 + $0xb0] sm:$0xff] %v338
      %415 = vst [vmem:[#allocation4 + $0xb8] sm:$0xff] %v340
      %416 = vst [vmem:[#allocation4 + $0xc0] sm:$0xff] %v231
      %417 = vst [vmem:[#allocation4 + $0xc8] sm:$0xff] %v233
      %418 = vst [vmem:[#allocation4 + $0xd0] sm:$0xff] %v344
      %419 = vst [vmem:[#allocation4 + $0xd8] sm:$0xff] %v346
      %420 = vst [vmem:[#allocation4 + $0xe0] sm:$0xff] %v235
      %421 = vst [vmem:[#allocation4 + $0xe8] sm:$0xff] %v237
      %422 = vst [vmem:[#allocation4 + $0xf0] sm:$0xff] %v348
      %423 = vst [vmem:[#allocation4 + $0xf8] sm:$0xff] %v350
      %424 = vst [vmem:[#allocation4 + $0x100] sm:$0xff] %v241
      %425 = vst [vmem:[#allocation4 + $0x108] sm:$0xff] %v243
      %426 = vst [vmem:[#allocation4 + $0x110] sm:$0xff] %v354
      %427 = vst [vmem:[#allocation4 + $0x118] sm:$0xff] %v356
      %428 = vst [vmem:[#allocation4 + $0x120] sm:$0xff] %v245
      %429 = vst [vmem:[#allocation4 + $0x128] sm:$0xff] %v247
      %430 = vst [vmem:[#allocation4 + $0x130] sm:$0xff] %v358
      %431 = vst [vmem:[#allocation4 + $0x138] sm:$0xff] %v360
      %432 = vst [vmem:[#allocation4 + $0x140] sm:$0xff] %v251
      %433 = vst [vmem:[#allocation4 + $0x148] sm:$0xff] %v253
      %434 = vst [vmem:[#allocation4 + $0x150] sm:$0xff] %v364
      %435 = vst [vmem:[#allocation4 + $0x158] sm:$0xff] %v366
      %436 = vst [vmem:[#allocation4 + $0x160] sm:$0xff] %v255
      %437 = vst [vmem:[#allocation4 + $0x168] sm:$0xff] %v257
      %438 = vst [vmem:[#allocation4 + $0x170] sm:$0xff] %v368
      %439 = vst [vmem:[#allocation4 + $0x178] sm:$0xff] %v370
      %440 = vst [vmem:[#allocation4 + $0x180] sm:$0xff] %v261
      %441 = vst [vmem:[#allocation4 + $0x188] sm:$0xff] %v263
      %442 = vst [vmem:[#allocation4 + $0x190] sm:$0xff] %v374
      %443 = vst [vmem:[#allocation4 + $0x198] sm:$0xff] %v376
      %444 = vst [vmem:[#allocation4 + $0x1a0] sm:$0xff] %v265
      %445 = vst [vmem:[#allocation4 + $0x1a8] sm:$0xff] %v267
      %446 = vst [vmem:[#allocation4 + $0x1b0] sm:$0xff] %v378
      %447 = vst [vmem:[#allocation4 + $0x1b8] sm:$0xff] %v380
      %448 = vst [vmem:[#allocation4 + $0x1c0] sm:$0xff] %v271
      %449 = vst [vmem:[#allocation4 + $0x1c8] sm:$0xff] %v273
      %450 = vst [vmem:[#allocation4 + $0x1d0] sm:$0xff] %v384
      %451 = vst [vmem:[#allocation4 + $0x1d8] sm:$0xff] %v386
      %452 = vst [vmem:[#allocation4 + $0x1e0] sm:$0xff] %v275
      %453 = vst [vmem:[#allocation4 + $0x1e8] sm:$0xff] %v277
      %454 = vst [vmem:[#allocation4 + $0x1f0] sm:$0xff] %v388
      %455 = vst [vmem:[#allocation4 + $0x1f8] sm:$0xff] %v390
      %v456 = vld [vmem:[%s1] sm:$0xff]
      %457 = vset.pattern.permute.xlu0 0
      %458 = vperm.xlu0 %457, %v456
      %v459 = vpop.permute.xlu0 %458
      %v460 = vld [vmem:[#allocation2] sm:$0xff]
      %v461 = vld [vmem:[#allocation3] sm:$0xff]
      %v462 = vld [vmem:[#allocation4] sm:$0xff]
      %v463 = vld [vmem:[#allocation4 + $0x8] sm:$0xff]
      %v464 = vld [vmem:[#allocation4 + $0x10] sm:$0xff]
      %v465 = vld [vmem:[#allocation4 + $0x18] sm:$0xff]
      %v466 = vpack.c.bf16 %v460, %v460
      %v467 = vld [vmem:[#allocation10] sm:$0xff]
      %v468 = vld [vmem:[#allocation10 + $0x8] sm:$0xff]
      %v469 = vld [vmem:[#allocation10 + $0x10] sm:$0xff]
      %v470 = vld [vmem:[#allocation10 + $0x18] sm:$0xff]
      %v471 = vld [vmem:[#allocation10 + $0x20] sm:$0xff]
      %v472 = vld [vmem:[#allocation10 + $0x28] sm:$0xff]
      %v473 = vld [vmem:[#allocation10 + $0x30] sm:$0xff]
      %v474 = vld [vmem:[#allocation10 + $0x38] sm:$0xff]
      %v475 = vld [vmem:[#allocation10 + $0x40] sm:$0xff]
      %v476 = vld [vmem:[#allocation10 + $0x48] sm:$0xff]
      %v477 = vld [vmem:[#allocation10 + $0x50] sm:$0xff]
      %v478 = vld [vmem:[#allocation10 + $0x58] sm:$0xff]
      %v479 = vld [vmem:[#allocation10 + $0x60] sm:$0xff]
      %v480 = vld [vmem:[#allocation10 + $0x68] sm:$0xff]
      %v481 = vld [vmem:[#allocation10 + $0x70] sm:$0xff]
      %v482 = vld [vmem:[#allocation10 + $0x78] sm:$0xff]
      %v483 = vld [vmem:[#allocation10 + $0x80] sm:$0xff]
      %v484 = vld [vmem:[#allocation10 + $0x88] sm:$0xff]
      %v485 = vld [vmem:[#allocation10 + $0x90] sm:$0xff]
      %v486 = vld [vmem:[#allocation10 + $0x98] sm:$0xff]
      %v487 = vld [vmem:[#allocation10 + $0xa0] sm:$0xff]
      %v488 = vld [vmem:[#allocation10 + $0xa8] sm:$0xff]
      %v489 = vld [vmem:[#allocation10 + $0xb0] sm:$0xff]
      %v490 = vld [vmem:[#allocation10 + $0xb8] sm:$0xff]
      %v491 = vld [vmem:[#allocation10 + $0xc0] sm:$0xff]
      %v492 = vld [vmem:[#allocation10 + $0xc8] sm:$0xff]
      %v493 = vld [vmem:[#allocation10 + $0xd0] sm:$0xff]
      %v494 = vld [vmem:[#allocation10 + $0xd8] sm:$0xff]
      %v495 = vld [vmem:[#allocation10 + $0xe0] sm:$0xff]
      %v496 = vld [vmem:[#allocation10 + $0xe8] sm:$0xff]
      %v497 = vld [vmem:[#allocation10 + $0xf0] sm:$0xff]
      %v498 = vld [vmem:[#allocation10 + $0xf8] sm:$0xff]
      %v531 = vunpack.c.l.b16 %v467
      %v532 = vunpack.c.h.b16 %v467
      %v533 = vunpack.c.l.b16 %v468
      %v534 = vunpack.c.h.b16 %v468
      %v535 = vunpack.c.l.b16 %v469
      %v536 = vunpack.c.h.b16 %v469
      %v537 = vunpack.c.l.b16 %v470
      %v538 = vunpack.c.h.b16 %v470
      %v539 = vunpack.c.l.b16 %v471
      %v540 = vunpack.c.h.b16 %v471
      %v541 = vunpack.c.l.b16 %v472
      %v542 = vunpack.c.h.b16 %v472
      %v543 = vunpack.c.l.b16 %v473
      %v544 = vunpack.c.h.b16 %v473
      %v545 = vunpack.c.l.b16 %v474
      %v546 = vunpack.c.h.b16 %v474
      %v547 = vunpack.c.l.b16 %v475
      %v548 = vunpack.c.h.b16 %v475
      %v549 = vunpack.c.l.b16 %v476
      %v550 = vunpack.c.h.b16 %v476
      %v551 = vunpack.c.l.b16 %v477
      %v552 = vunpack.c.h.b16 %v477
      %v553 = vunpack.c.l.b16 %v478
      %v554 = vunpack.c.h.b16 %v478
      %v555 = vunpack.c.l.b16 %v479
      %v556 = vunpack.c.h.b16 %v479
      %v557 = vunpack.c.l.b16 %v480
      %v558 = vunpack.c.h.b16 %v480
      %v559 = vunpack.c.l.b16 %v481
      %v560 = vunpack.c.h.b16 %v481
      %v561 = vunpack.c.l.b16 %v482
      %v562 = vunpack.c.h.b16 %v482
      %v563 = vunpack.c.l.b16 %v483
      %v564 = vunpack.c.h.b16 %v483
      %v565 = vunpack.c.l.b16 %v484
      %v566 = vunpack.c.h.b16 %v484
      %v567 = vunpack.c.l.b16 %v485
      %v568 = vunpack.c.h.b16 %v485
      %v569 = vunpack.c.l.b16 %v486
      %v570 = vunpack.c.h.b16 %v486
      %v571 = vunpack.c.l.b16 %v487
      %v572 = vunpack.c.h.b16 %v487
      %v573 = vunpack.c.l.b16 %v488
      %v574 = vunpack.c.h.b16 %v488
      %v575 = vunpack.c.l.b16 %v489
      %v576 = vunpack.c.h.b16 %v489
      %v577 = vunpack.c.l.b16 %v490
      %v578 = vunpack.c.h.b16 %v490
      %v579 = vunpack.c.l.b16 %v491
      %v580 = vunpack.c.h.b16 %v491
      %v581 = vunpack.c.l.b16 %v492
      %v582 = vunpack.c.h.b16 %v492
      %v583 = vunpack.c.l.b16 %v493
      %v584 = vunpack.c.h.b16 %v493
      %v585 = vunpack.c.l.b16 %v494
      %v586 = vunpack.c.h.b16 %v494
      %v587 = vunpack.c.l.b16 %v495
      %v588 = vunpack.c.h.b16 %v495
      %v589 = vunpack.c.l.b16 %v496
      %v590 = vunpack.c.h.b16 %v496
      %v591 = vunpack.c.l.b16 %v497
      %v592 = vunpack.c.h.b16 %v497
      %v593 = vunpack.c.l.b16 %v498
      %v594 = vunpack.c.h.b16 %v498
      %v595 = vpack.c.b16 %v535, %v531
      %v596 = vpack.c.b16 %v536, %v532
      %v597 = vpack.c.b16 %v537, %v533
      %v598 = vpack.c.b16 %v538, %v534
      %v599 = vpack.c.b16 %v543, %v539
      %v600 = vpack.c.b16 %v544, %v540
      %v601 = vpack.c.b16 %v545, %v541
      %v602 = vpack.c.b16 %v546, %v542
      %v603 = vpack.c.b16 %v551, %v547
      %v604 = vpack.c.b16 %v552, %v548
      %v605 = vpack.c.b16 %v553, %v549
      %v606 = vpack.c.b16 %v554, %v550
      %v607 = vpack.c.b16 %v559, %v555
      %v608 = vpack.c.b16 %v560, %v556
      %v609 = vpack.c.b16 %v561, %v557
      %v610 = vpack.c.b16 %v562, %v558
      %v611 = vpack.c.b16 %v567, %v563
      %v612 = vpack.c.b16 %v568, %v564
      %v613 = vpack.c.b16 %v569, %v565
      %v614 = vpack.c.b16 %v570, %v566
      %v615 = vpack.c.b16 %v575, %v571
      %v616 = vpack.c.b16 %v576, %v572
      %v617 = vpack.c.b16 %v577, %v573
      %v618 = vpack.c.b16 %v578, %v574
      %v619 = vpack.c.b16 %v583, %v579
      %v620 = vpack.c.b16 %v584, %v580
      %v621 = vpack.c.b16 %v585, %v581
      %v622 = vpack.c.b16 %v586, %v582
      %v623 = vpack.c.b16 %v591, %v587
      %v624 = vpack.c.b16 %v592, %v588
      %v625 = vpack.c.b16 %v593, %v589
      %v626 = vpack.c.b16 %v594, %v590
      %659 = vmatprep.subr.bf16.mxu0 %v596
      %660 = vmatpush1.bf16.msra.mxu0 %v595
      %661 = vmatprep.subr.bf16.mxu0 %v600
      %662 = vmatpush1.bf16.msra.mxu0 %v599
      %663 = vmatprep.subr.bf16.mxu0 %v604
      %664 = vmatpush1.bf16.msra.mxu0 %v603
      %665 = vmatprep.subr.bf16.mxu0 %v608
      %666 = vmatpush1.bf16.msra.mxu0 %v607
      %667 = vmatprep.subr.bf16.mxu0 %v612
      %668 = vmatpush1.bf16.msra.mxu0 %v611
      %669 = vmatprep.subr.bf16.mxu0 %v616
      %670 = vmatpush1.bf16.msra.mxu0 %v615
      %671 = vmatprep.subr.bf16.mxu0 %v620
      %672 = vmatpush1.bf16.msra.mxu0 %v619
      %673 = vmatprep.subr.bf16.mxu0 %v624
      %674 = vmatpush1.bf16.msra.mxu0 %v623
      %675 = vmatprep.subr.bf16.mxu0 0
      %676 = vmatpush1.bf16.msra.mxu0 0
      %677 = vmatprep.subr.bf16.mxu0 0
      %678 = vmatpush1.bf16.msra.mxu0 0
      %679 = vmatprep.subr.bf16.mxu0 0
      %680 = vmatpush1.bf16.msra.mxu0 0
      %681 = vmatprep.subr.bf16.mxu0 0
      %682 = vmatpush1.bf16.msra.mxu0 0
      %683 = vmatprep.subr.bf16.mxu0 0
      %684 = vmatpush1.bf16.msra.mxu0 0
      %685 = vmatprep.subr.bf16.mxu0 0
      %686 = vmatpush1.bf16.msra.mxu0 0
      %687 = vmatprep.subr.bf16.mxu0 0
      %688 = vmatpush1.bf16.msra.mxu0 0
      %689 = vmatprep.subr.bf16.mxu0 0
      %690 = vmatpush1.bf16.msra.mxu0 0
      %691 = vmatprep.mubr.bf16.mxu0 0
      %692 = vmatmul.mubr.bf16.gmra.mrb[0].mxu0 %v466
      %v693 = vpop.f32.mrb[0].mxu0
      %v694 = vadd.f32 0.0, %v693
      %v695 = vpop.f32.mrb[0].mxu0
      %v696 = vadd.f32 0.0, %v695
      %v697 = vpop.f32.mrb[0].mxu0
      %v698 = vpop.f32.mrb[0].mxu0
      %699 = vdwg.mxu0
      %700 = vmatprep.subr.bf16.mxu0 %v598
      %701 = vmatpush1.bf16.msra.mxu0 %v597
      %702 = vmatprep.subr.bf16.mxu0 %v602
      %703 = vmatpush1.bf16.msra.mxu0 %v601
      %704 = vmatprep.subr.bf16.mxu0 %v606
      %705 = vmatpush1.bf16.msra.mxu0 %v605
      %706 = vmatprep.subr.bf16.mxu0 %v610
      %707 = vmatpush1.bf16.msra.mxu0 %v609
      %708 = vmatprep.subr.bf16.mxu0 %v614
      %709 = vmatpush1.bf16.msra.mxu0 %v613
      %710 = vmatprep.subr.bf16.mxu0 %v618
      %711 = vmatpush1.bf16.msra.mxu0 %v617
      %712 = vmatprep.subr.bf16.mxu0 %v622
      %713 = vmatpush1.bf16.msra.mxu0 %v621
      %714 = vmatprep.subr.bf16.mxu0 %v626
      %715 = vmatpush1.bf16.msra.mxu0 %v625
      %716 = vmatprep.subr.bf16.mxu0 0
      %717 = vmatpush1.bf16.msra.mxu0 0
      %718 = vmatprep.subr.bf16.mxu0 0
      %719 = vmatpush1.bf16.msra.mxu0 0
      %720 = vmatprep.subr.bf16.mxu0 0
      %721 = vmatpush1.bf16.msra.mxu0 0
      %722 = vmatprep.subr.bf16.mxu0 0
      %723 = vmatpush1.bf16.msra.mxu0 0
      %724 = vmatprep.subr.bf16.mxu0 0
      %725 = vmatpush1.bf16.msra.mxu0 0
      %726 = vmatprep.subr.bf16.mxu0 0
      %727 = vmatpush1.bf16.msra.mxu0 0
      %728 = vmatprep.subr.bf16.mxu0 0
      %729 = vmatpush1.bf16.msra.mxu0 0
      %730 = vmatprep.subr.bf16.mxu0 0
      %731 = vmatpush1.bf16.msra.mxu0 0
      %732 = vmatprep.mubr.bf16.mxu0 0
      %733 = vmatmul.mubr.bf16.gmra.mrb[0].mxu0 %v466
      %v734 = vpop.f32.mrb[0].mxu0
      %v735 = vadd.f32 0.0, %v734
      %v736 = vpop.f32.mrb[0].mxu0
      %v737 = vadd.f32 0.0, %v736
      %v738 = vpop.f32.mrb[0].mxu0
      %v739 = vpop.f32.mrb[0].mxu0
      %740 = vdwg.mxu0
      %v741 = vadd.f32 %v462, %v694
      %v742 = vadd.f32 %v463, %v696
      %v743 = vadd.f32 %v464, %v735
      %v744 = vadd.f32 %v465, %v737
      %v745 = vxor.u32 %v741, 2147483648
      %v746 = vxor.u32 %v742, 2147483648
      %v747 = vxor.u32 %v743, 2147483648
      %v748 = vmul.f32 %v745, 1.442695
      %v749 = vpow.pop %v748
      %v750 = vmul.f32 %v746, 1.442695
      %v751 = vpow.pop %v750
      %v752 = vmul.f32 %v747, 1.442695
      %v753 = vpow.pop %v752
      %v754 = vadd.f32 %v749, 1.0
      %v755 = vadd.f32 %v751, 1.0
      %v756 = vadd.f32 %v753, 1.0
      %v757 = vrcp.pop %v754
      %v758 = vmul.f32 1.0, %v757
      %v759 = vrcp.pop %v755
      %v760 = vmul.f32 1.0, %v759
      %v761 = vrcp.pop %v756
      %v762 = vmul.f32 1.0, %v761
      %v763 = vtanh.pop %v744
      %v764 = vmul.f32 %v760, %v461
      %v765 = vmul.f32 %v758, %v763
      %v766 = vadd.f32 %v764, %v765
      %v767 = vtanh.pop %v766
      %v768 = vmul.f32 %v762, %v767
      %v769 = vstv %s65
      %vm770 = vcmp.lt.s32.totalorder %v769, %v459
      %v771 = vsel %vm770, %v768, %v460
      %772 = vst [vmem:[#allocation2] sm:$0xff] %v771
      %v773 = vsel %vm770, %v766, %v461
      %774 = vst [vmem:[#allocation3] sm:$0xff] %v773
      %s775 = sadd.s32 %s65, 1
      %v776 = vld [vmem:[#allocation2] sm:$0xff]
      %v777 = vld [vmem:[#allocation3] sm:$0xff]
      %s778 = scalar_lea.vmem [#allocation4], 32
      %v779 = vld [vmem:[%s778] sm:$0xff]
      %v780 = vld [vmem:[%s778 + $0x8] sm:$0xff]
      %v781 = vld [vmem:[%s778 + $0x10] sm:$0xff]
      %v782 = vld [vmem:[%s778 + $0x18] sm:$0xff]
      %v783 = vpack.c.bf16 %v776, %v776
      %v784 = vld [vmem:[#allocation10] sm:$0xff]
      %v785 = vld [vmem:[#allocation10 + $0x8] sm:$0xff]
      %v786 = vld [vmem:[#allocation10 + $0x10] sm:$0xff]
      %v787 = vld [vmem:[#allocation10 + $0x18] sm:$0xff]
      %v788 = vld [vmem:[#allocation10 + $0x20] sm:$0xff]
      %v789 = vld [vmem:[#allocation10 + $0x28] sm:$0xff]
      %v790 = vld [vmem:[#allocation10 + $0x30] sm:$0xff]
      %v791 = vld [vmem:[#allocation10 + $0x38] sm:$0xff]
      %v792 = vld [vmem:[#allocation10 + $0x40] sm:$0xff]
      %v793 = vld [vmem:[#allocation10 + $0x48] sm:$0xff]
      %v794 = vld [vmem:[#allocation10 + $0x50] sm:$0xff]
      %v795 = vld [vmem:[#allocation10 + $0x58] sm:$0xff]
      %v796 = vld [vmem:[#allocation10 + $0x60] sm:$0xff]
      %v797 = vld [vmem:[#allocation10 + $0x68] sm:$0xff]
      %v798 = vld [vmem:[#allocation10 + $0x70] sm:$0xff]
      %v799 = vld [vmem:[#allocation10 + $0x78] sm:$0xff]
      %v800 = vld [vmem:[#allocation10 + $0x80] sm:$0xff]
      %v801 = vld [vmem:[#allocation10 + $0x88] sm:$0xff]
      %v802 = vld [vmem:[#allocation10 + $0x90] sm:$0xff]
      %v803 = vld [vmem:[#allocation10 + $0x98] sm:$0xff]
      %v804 = vld [vmem:[#allocation10 + $0xa0] sm:$0xff]
      %v805 = vld [vmem:[#allocation10 + $0xa8] sm:$0xff]
      %v806 = vld [vmem:[#allocation10 + $0xb0] sm:$0xff]
      %v807 = vld [vmem:[#allocation10 + $0xb8] sm:$0xff]
      %v808 = vld [vmem:[#allocation10 + $0xc0] sm:$0xff]
      %v809 = vld [vmem:[#allocation10 + $0xc8] sm:$0xff]
      %v810 = vld [vmem:[#allocation10 + $0xd0] sm:$0xff]
      %v811 = vld [vmem:[#allocation10 + $0xd8] sm:$0xff]
      %v812 = vld [vmem:[#allocation10 + $0xe0] sm:$0xff]
      %v813 = vld [vmem:[#allocation10 + $0xe8] sm:$0xff]
      %v814 = vld [vmem:[#allocation10 + $0xf0] sm:$0xff]
      %v815 = vld [vmem:[#allocation10 + $0xf8] sm:$0xff]
      %v848 = vunpack.c.l.b16 %v784
      %v849 = vunpack.c.h.b16 %v784
      %v850 = vunpack.c.l.b16 %v785
      %v851 = vunpack.c.h.b16 %v785
      %v852 = vunpack.c.l.b16 %v786
      %v853 = vunpack.c.h.b16 %v786
      %v854 = vunpack.c.l.b16 %v787
      %v855 = vunpack.c.h.b16 %v787
      %v856 = vunpack.c.l.b16 %v788
      %v857 = vunpack.c.h.b16 %v788
      %v858 = vunpack.c.l.b16 %v789
      %v859 = vunpack.c.h.b16 %v789
      %v860 = vunpack.c.l.b16 %v790
      %v861 = vunpack.c.h.b16 %v790
      %v862 = vunpack.c.l.b16 %v791
      %v863 = vunpack.c.h.b16 %v791
      %v864 = vunpack.c.l.b16 %v792
      %v865 = vunpack.c.h.b16 %v792
      %v866 = vunpack.c.l.b16 %v793
      %v867 = vunpack.c.h.b16 %v793
      %v868 = vunpack.c.l.b16 %v794
      %v869 = vunpack.c.h.b16 %v794
      %v870 = vunpack.c.l.b16 %v795
      %v871 = vunpack.c.h.b16 %v795
      %v872 = vunpack.c.l.b16 %v796
      %v873 = vunpack.c.h.b16 %v796
      %v874 = vunpack.c.l.b16 %v797
      %v875 = vunpack.c.h.b16 %v797
      %v876 = vunpack.c.l.b16 %v798
      %v877 = vunpack.c.h.b16 %v798
      %v878 = vunpack.c.l.b16 %v799
      %v879 = vunpack.c.h.b16 %v799
      %v880 = vunpack.c.l.b16 %v800
      %v881 = vunpack.c.h.b16 %v800
      %v882 = vunpack.c.l.b16 %v801
      %v883 = vunpack.c.h.b16 %v801
      %v884 = vunpack.c.l.b16 %v802
      %v885 = vunpack.c.h.b16 %v802
      %v886 = vunpack.c.l.b16 %v803
      %v887 = vunpack.c.h.b16 %v803
      %v888 = vunpack.c.l.b16 %v804
      %v889 = vunpack.c.h.b16 %v804
      %v890 = vunpack.c.l.b16 %v805
      %v891 = vunpack.c.h.b16 %v805
      %v892 = vunpack.c.l.b16 %v806
      %v893 = vunpack.c.h.b16 %v806
      %v894 = vunpack.c.l.b16 %v807
      %v895 = vunpack.c.h.b16 %v807
      %v896 = vunpack.c.l.b16 %v808
      %v897 = vunpack.c.h.b16 %v808
      %v898 = vunpack.c.l.b16 %v809
      %v899 = vunpack.c.h.b16 %v809
      %v900 = vunpack.c.l.b16 %v810
      %v901 = vunpack.c.h.b16 %v810
      %v902 = vunpack.c.l.b16 %v811
      %v903 = vunpack.c.h.b16 %v811
      %v904 = vunpack.c.l.b16 %v812
      %v905 = vunpack.c.h.b16 %v812
      %v906 = vunpack.c.l.b16 %v813
      %v907 = vunpack.c.h.b16 %v813
      %v908 = vunpack.c.l.b16 %v814
      %v909 = vunpack.c.h.b16 %v814
      %v910 = vunpack.c.l.b16 %v815
      %v911 = vunpack.c.h.b16 %v815
      %v912 = vpack.c.b16 %v852, %v848
      %v913 = vpack.c.b16 %v853, %v849
      %v914 = vpack.c.b16 %v854, %v850
      %v915 = vpack.c.b16 %v855, %v851
      %v916 = vpack.c.b16 %v860, %v856
      %v917 = vpack.c.b16 %v861, %v857
      %v918 = vpack.c.b16 %v862, %v858
      %v919 = vpack.c.b16 %v863, %v859
      %v920 = vpack.c.b16 %v868, %v864
      %v921 = vpack.c.b16 %v869, %v865
      %v922 = vpack.c.b16 %v870, %v866
      %v923 = vpack.c.b16 %v871, %v867
      %v924 = vpack.c.b16 %v876, %v872
      %v925 = vpack.c.b16 %v877, %v873
      %v926 = vpack.c.b16 %v878, %v874
      %v927 = vpack.c.b16 %v879, %v875
      %v928 = vpack.c.b16 %v884, %v880
      %v929 = vpack.c.b16 %v885, %v881
      %v930 = vpack.c.b16 %v886, %v882
      %v931 = vpack.c.b16 %v887, %v883
      %v932 = vpack.c.b16 %v892, %v888
      %v933 = vpack.c.b16 %v893, %v889
      %v934 = vpack.c.b16 %v894, %v890
      %v935 = vpack.c.b16 %v895, %v891
      %v936 = vpack.c.b16 %v900, %v896
      %v937 = vpack.c.b16 %v901, %v897
      %v938 = vpack.c.b16 %v902, %v898
      %v939 = vpack.c.b16 %v903, %v899
      %v940 = vpack.c.b16 %v908, %v904
      %v941 = vpack.c.b16 %v909, %v905
      %v942 = vpack.c.b16 %v910, %v906
      %v943 = vpack.c.b16 %v911, %v907
      %976 = vmatprep.subr.bf16.mxu0 %v913
      %977 = vmatpush1.bf16.msra.mxu0 %v912
      %978 = vmatprep.subr.bf16.mxu0 %v917
      %979 = vmatpush1.bf16.msra.mxu0 %v916
      %980 = vmatprep.subr.bf16.mxu0 %v921
      %981 = vmatpush1.bf16.msra.mxu0 %v920
      %982 = vmatprep.subr.bf16.mxu0 %v925
      %983 = vmatpush1.bf16.msra.mxu0 %v924
      %984 = vmatprep.subr.bf16.mxu0 %v929
      %985 = vmatpush1.bf16.msra.mxu0 %v928
      %986 = vmatprep.subr.bf16.mxu0 %v933
      %987 = vmatpush1.bf16.msra.mxu0 %v932
      %988 = vmatprep.subr.bf16.mxu0 %v937
      %989 = vmatpush1.bf16.msra.mxu0 %v936
      %990 = vmatprep.subr.bf16.mxu0 %v941
      %991 = vmatpush1.bf16.msra.mxu0 %v940
      %992 = vmatprep.subr.bf16.mxu0 0
      %993 = vmatpush1.bf16.msra.mxu0 0
      %994 = vmatprep.subr.bf16.mxu0 0
      %995 = vmatpush1.bf16.msra.mxu0 0
      %996 = vmatprep.subr.bf16.mxu0 0
      %997 = vmatpush1.bf16.msra.mxu0 0
      %998 = vmatprep.subr.bf16.mxu0 0
      %999 = vmatpush1.bf16.msra.mxu0 0
      %1000 = vmatprep.subr.bf16.mxu0 0
      %1001 = vmatpush1.bf16.msra.mxu0 0
      %1002 = vmatprep.subr.bf16.mxu0 0
      %1003 = vmatpush1.bf16.msra.mxu0 0
      %1004 = vmatprep.subr.bf16.mxu0 0
      %1005 = vmatpush1.bf16.msra.mxu0 0
      %1006 = vmatprep.subr.bf16.mxu0 0
      %1007 = vmatpush1.bf16.msra.mxu0 0
      %1008 = vmatprep.mubr.bf16.mxu0 0
      %1009 = vmatmul.mubr.bf16.gmra.mrb[0].mxu0 %v783
      %v1010 = vpop.f32.mrb[0].mxu0
      %v1011 = vadd.f32 0.0, %v1010
      %v1012 = vpop.f32.mrb[0].mxu0
      %v1013 = vadd.f32 0.0, %v1012
      %v1014 = vpop.f32.mrb[0].mxu0
      %v1015 = vpop.f32.mrb[0].mxu0
      %1016 = vdwg.mxu0
      %1017 = vmatprep.subr.bf16.mxu0 %v915
      %1018 = vmatpush1.bf16.msra.mxu0 %v914
      %1019 = vmatprep.subr.bf16.mxu0 %v919
      %1020 = vmatpush1.bf16.msra.mxu0 %v918
      %1021 = vmatprep.subr.bf16.mxu0 %v923
      %1022 = vmatpush1.bf16.msra.mxu0 %v922
      %1023 = vmatprep.subr.bf16.mxu0 %v927
      %1024 = vmatpush1.bf16.msra.mxu0 %v926
      %1025 = vmatprep.subr.bf16.mxu0 %v931
      %1026 = vmatpush1.bf16.msra.mxu0 %v930
      %1027 = vmatprep.subr.bf16.mxu0 %v935
      %1028 = vmatpush1.bf16.msra.mxu0 %v934
      %1029 = vmatprep.subr.bf16.mxu0 %v939
      %1030 = vmatpush1.bf16.msra.mxu0 %v938
      %1031 = vmatprep.subr.bf16.mxu0 %v943
      %1032 = vmatpush1.bf16.msra.mxu0 %v942
      %1033 = vmatprep.subr.bf16.mxu0 0
      %1034 = vmatpush1.bf16.msra.mxu0 0
      %1035 = vmatprep.subr.bf16.mxu0 0
      %1036 = vmatpush1.bf16.msra.mxu0 0
      %1037 = vmatprep.subr.bf16.mxu0 0
      %1038 = vmatpush1.bf16.msra.mxu0 0
      %1039 = vmatprep.subr.bf16.mxu0 0
      %1040 = vmatpush1.bf16.msra.mxu0 0
      %1041 = vmatprep.subr.bf16.mxu0 0
      %1042 = vmatpush1.bf16.msra.mxu0 0
      %1043 = vmatprep.subr.bf16.mxu0 0
      %1044 = vmatpush1.bf16.msra.mxu0 0
      %1045 = vmatprep.subr.bf16.mxu0 0
      %1046 = vmatpush1.bf16.msra.mxu0 0
      %1047 = vmatprep.subr.bf16.mxu0 0
      %1048 = vmatpush1.bf16.msra.mxu0 0
      %1049 = vmatprep.mubr.bf16.mxu0 0
      %1050 = vmatmul.mubr.bf16.gmra.mrb[0].mxu0 %v783
      %v1051 = vpop.f32.mrb[0].mxu0
      %v1052 = vadd.f32 0.0, %v1051
      %v1053 = vpop.f32.mrb[0].mxu0
      %v1054 = vadd.f32 0.0, %v1053
      %v1055 = vpop.f32.mrb[0].mxu0
      %v1056 = vpop.f32.mrb[0].mxu0
      %1057 = vdwg.mxu0
      %v1058 = vadd.f32 %v779, %v1011
      %v1059 = vadd.f32 %v780, %v1013
      %v1060 = vadd.f32 %v781, %v1052
      %v1061 = vadd.f32 %v782, %v1054
      %v1062 = vxor.u32 %v1058, 2147483648
      %v1063 = vxor.u32 %v1059, 2147483648
      %v1064 = vxor.u32 %v1060, 2147483648
      %v1065 = vmul.f32 %v1062, 1.442695
      %v1066 = vpow.pop %v1065
      %v1067 = vmul.f32 %v1063, 1.442695
      %v1068 = vpow.pop %v1067
      %v1069 = vmul.f32 %v1064, 1.442695
      %v1070 = vpow.pop %v1069
      %v1071 = vadd.f32 %v1066, 1.0
      %v1072 = vadd.f32 %v1068, 1.0
      %v1073 = vadd.f32 %v1070, 1.0
      %v1074 = vrcp.pop %v1071
      %v1075 = vmul.f32 1.0, %v1074
      %v1076 = vrcp.pop %v1072
      %v1077 = vmul.f32 1.0, %v1076
      %v1078 = vrcp.pop %v1073
      %v1079 = vmul.f32 1.0, %v1078
      %v1080 = vtanh.pop %v1061
      %v1081 = vmul.f32 %v1077, %v777
      %v1082 = vmul.f32 %v1075, %v1080
      %v1083 = vadd.f32 %v1081, %v1082
      %v1084 = vtanh.pop %v1083
      %v1085 = vmul.f32 %v1079, %v1084
      %v1086 = vstv %s775
      %vm1087 = vcmp.lt.s32.totalorder %v1086, %v459
      %v1088 = vsel %vm1087, %v1085, %v776
      %1089 = vst [vmem:[#allocation2] sm:$0xff] %v1088
      %v1090 = vsel %vm1087, %v1083, %v777
      %1091 = vst [vmem:[#allocation3] sm:$0xff] %v1090
      %s1092 = sadd.s32 %s65, 2
      %v1093 = vld [vmem:[#allocation2] sm:$0xff]
      %v1094 = vld [vmem:[#allocation3] sm:$0xff]
      %s1095 = scalar_lea.vmem [#allocation4], 64
      %v1096 = vld [vmem:[%s1095] sm:$0xff]
      %v1097 = vld [vmem:[%s1095 + $0x8] sm:$0xff]
      %v1098 = vld [vmem:[%s1095 + $0x10] sm:$0xff]
      %v1099 = vld [vmem:[%s1095 + $0x18] sm:$0xff]
      %v1100 = vpack.c.bf16 %v1093, %v1093
      %v1101 = vld [vmem:[#allocation10] sm:$0xff]
      %v1102 = vld [vmem:[#allocation10 + $0x8] sm:$0xff]
      %v1103 = vld [vmem:[#allocation10 + $0x10] sm:$0xff]
      %v1104 = vld [vmem:[#allocation10 + $0x18] sm:$0xff]
      %v1105 = vld [vmem:[#allocation10 + $0x20] sm:$0xff]
      %v1106 = vld [vmem:[#allocation10 + $0x28] sm:$0xff]
      %v1107 = vld [vmem:[#allocation10 + $0x30] sm:$0xff]
      %v1108 = vld [vmem:[#allocation10 + $0x38] sm:$0xff]
      %v1109 = vld [vmem:[#allocation10 + $0x40] sm:$0xff]
      %v1110 = vld [vmem:[#allocation10 + $0x48] sm:$0xff]
      %v1111 = vld [vmem:[#allocation10 + $0x50] sm:$0xff]
      %v1112 = vld [vmem:[#allocation10 + $0x58] sm:$0xff]
      %v1113 = vld [vmem:[#allocation10 + $0x60] sm:$0xff]
      %v1114 = vld [vmem:[#allocation10 + $0x68] sm:$0xff]
      %v1115 = vld [vmem:[#allocation10 + $0x70] sm:$0xff]
      %v1116 = vld [vmem:[#allocation10 + $0x78] sm:$0xff]
      %v1117 = vld [vmem:[#allocation10 + $0x80] sm:$0xff]
      %v1118 = vld [vmem:[#allocation10 + $0x88] sm:$0xff]
      %v1119 = vld [vmem:[#allocation10 + $0x90] sm:$0xff]
      %v1120 = vld [vmem:[#allocation10 + $0x98] sm:$0xff]
      %v1121 = vld [vmem:[#allocation10 + $0xa0] sm:$0xff]
      %v1122 = vld [vmem:[#allocation10 + $0xa8] sm:$0xff]
      %v1123 = vld [vmem:[#allocation10 + $0xb0] sm:$0xff]
      %v1124 = vld [vmem:[#allocation10 + $0xb8] sm:$0xff]
      %v1125 = vld [vmem:[#allocation10 + $0xc0] sm:$0xff]
      %v1126 = vld [vmem:[#allocation10 + $0xc8] sm:$0xff]
      %v1127 = vld [vmem:[#allocation10 + $0xd0] sm:$0xff]
      %v1128 = vld [vmem:[#allocation10 + $0xd8] sm:$0xff]
      %v1129 = vld [vmem:[#allocation10 + $0xe0] sm:$0xff]
      %v1130 = vld [vmem:[#allocation10 + $0xe8] sm:$0xff]
      %v1131 = vld [vmem:[#allocation10 + $0xf0] sm:$0xff]
      %v1132 = vld [vmem:[#allocation10 + $0xf8] sm:$0xff]
      %v1165 = vunpack.c.l.b16 %v1101
      %v1166 = vunpack.c.h.b16 %v1101
      %v1167 = vunpack.c.l.b16 %v1102
      %v1168 = vunpack.c.h.b16 %v1102
      %v1169 = vunpack.c.l.b16 %v1103
      %v1170 = vunpack.c.h.b16 %v1103
      %v1171 = vunpack.c.l.b16 %v1104
      %v1172 = vunpack.c.h.b16 %v1104
      %v1173 = vunpack.c.l.b16 %v1105
      %v1174 = vunpack.c.h.b16 %v1105
      %v1175 = vunpack.c.l.b16 %v1106
      %v1176 = vunpack.c.h.b16 %v1106
      %v1177 = vunpack.c.l.b16 %v1107
      %v1178 = vunpack.c.h.b16 %v1107
      %v1179 = vunpack.c.l.b16 %v1108
      %v1180 = vunpack.c.h.b16 %v1108
      %v1181 = vunpack.c.l.b16 %v1109
      %v1182 = vunpack.c.h.b16 %v1109
      %v1183 = vunpack.c.l.b16 %v1110
      %v1184 = vunpack.c.h.b16 %v1110
      %v1185 = vunpack.c.l.b16 %v1111
      %v1186 = vunpack.c.h.b16 %v1111
      %v1187 = vunpack.c.l.b16 %v1112
      %v1188 = vunpack.c.h.b16 %v1112
      %v1189 = vunpack.c.l.b16 %v1113
      %v1190 = vunpack.c.h.b16 %v1113
      %v1191 = vunpack.c.l.b16 %v1114
      %v1192 = vunpack.c.h.b16 %v1114
      %v1193 = vunpack.c.l.b16 %v1115
      %v1194 = vunpack.c.h.b16 %v1115
      %v1195 = vunpack.c.l.b16 %v1116
      %v1196 = vunpack.c.h.b16 %v1116
      %v1197 = vunpack.c.l.b16 %v1117
      %v1198 = vunpack.c.h.b16 %v1117
      %v1199 = vunpack.c.l.b16 %v1118
      %v1200 = vunpack.c.h.b16 %v1118
      %v1201 = vunpack.c.l.b16 %v1119
      %v1202 = vunpack.c.h.b16 %v1119
      %v1203 = vunpack.c.l.b16 %v1120
      %v1204 = vunpack.c.h.b16 %v1120
      %v1205 = vunpack.c.l.b16 %v1121
      %v1206 = vunpack.c.h.b16 %v1121
      %v1207 = vunpack.c.l.b16 %v1122
      %v1208 = vunpack.c.h.b16 %v1122
      %v1209 = vunpack.c.l.b16 %v1123
      %v1210 = vunpack.c.h.b16 %v1123
      %v1211 = vunpack.c.l.b16 %v1124
      %v1212 = vunpack.c.h.b16 %v1124
      %v1213 = vunpack.c.l.b16 %v1125
      %v1214 = vunpack.c.h.b16 %v1125
      %v1215 = vunpack.c.l.b16 %v1126
      %v1216 = vunpack.c.h.b16 %v1126
      %v1217 = vunpack.c.l.b16 %v1127
      %v1218 = vunpack.c.h.b16 %v1127
      %v1219 = vunpack.c.l.b16 %v1128
      %v1220 = vunpack.c.h.b16 %v1128
      %v1221 = vunpack.c.l.b16 %v1129
      %v1222 = vunpack.c.h.b16 %v1129
      %v1223 = vunpack.c.l.b16 %v1130
      %v1224 = vunpack.c.h.b16 %v1130
      %v1225 = vunpack.c.l.b16 %v1131
      %v1226 = vunpack.c.h.b16 %v1131
      %v1227 = vunpack.c.l.b16 %v1132
      %v1228 = vunpack.c.h.b16 %v1132
      %v1229 = vpack.c.b16 %v1169, %v1165
      %v1230 = vpack.c.b16 %v1170, %v1166
      %v1231 = vpack.c.b16 %v1171, %v1167
      %v1232 = vpack.c.b16 %v1172, %v1168
      %v1233 = vpack.c.b16 %v1177, %v1173
      %v1234 = vpack.c.b16 %v1178, %v1174
      %v1235 = vpack.c.b16 %v1179, %v1175
      %v1236 = vpack.c.b16 %v1180, %v1176
      %v1237 = vpack.c.b16 %v1185, %v1181
      %v1238 = vpack.c.b16 %v1186, %v1182
      %v1239 = vpack.c.b16 %v1187, %v1183
      %v1240 = vpack.c.b16 %v1188, %v1184
      %v1241 = vpack.c.b16 %v1193, %v1189
      %v1242 = vpack.c.b16 %v1194, %v1190
      %v1243 = vpack.c.b16 %v1195, %v1191
      %v1244 = vpack.c.b16 %v1196, %v1192
      %v1245 = vpack.c.b16 %v1201, %v1197
      %v1246 = vpack.c.b16 %v1202, %v1198
      %v1247 = vpack.c.b16 %v1203, %v1199
      %v1248 = vpack.c.b16 %v1204, %v1200
      %v1249 = vpack.c.b16 %v1209, %v1205
      %v1250 = vpack.c.b16 %v1210, %v1206
      %v1251 = vpack.c.b16 %v1211, %v1207
      %v1252 = vpack.c.b16 %v1212, %v1208
      %v1253 = vpack.c.b16 %v1217, %v1213
      %v1254 = vpack.c.b16 %v1218, %v1214
      %v1255 = vpack.c.b16 %v1219, %v1215
      %v1256 = vpack.c.b16 %v1220, %v1216
      %v1257 = vpack.c.b16 %v1225, %v1221
      %v1258 = vpack.c.b16 %v1226, %v1222
      %v1259 = vpack.c.b16 %v1227, %v1223
      %v1260 = vpack.c.b16 %v1228, %v1224
      %1293 = vmatprep.subr.bf16.mxu0 %v1230
      %1294 = vmatpush1.bf16.msra.mxu0 %v1229
      %1295 = vmatprep.subr.bf16.mxu0 %v1234
      %1296 = vmatpush1.bf16.msra.mxu0 %v1233
      %1297 = vmatprep.subr.bf16.mxu0 %v1238
      %1298 = vmatpush1.bf16.msra.mxu0 %v1237
      %1299 = vmatprep.subr.bf16.mxu0 %v1242
      %1300 = vmatpush1.bf16.msra.mxu0 %v1241
      %1301 = vmatprep.subr.bf16.mxu0 %v1246
      %1302 = vmatpush1.bf16.msra.mxu0 %v1245
      %1303 = vmatprep.subr.bf16.mxu0 %v1250
      %1304 = vmatpush1.bf16.msra.mxu0 %v1249
      %1305 = vmatprep.subr.bf16.mxu0 %v1254
      %1306 = vmatpush1.bf16.msra.mxu0 %v1253
      %1307 = vmatprep.subr.bf16.mxu0 %v1258
      %1308 = vmatpush1.bf16.msra.mxu0 %v1257
      %1309 = vmatprep.subr.bf16.mxu0 0
      %1310 = vmatpush1.bf16.msra.mxu0 0
      %1311 = vmatprep.subr.bf16.mxu0 0
      %1312 = vmatpush1.bf16.msra.mxu0 0
      %1313 = vmatprep.subr.bf16.mxu0 0
      %1314 = vmatpush1.bf16.msra.mxu0 0
      %1315 = vmatprep.subr.bf16.mxu0 0
      %1316 = vmatpush1.bf16.msra.mxu0 0
      %1317 = vmatprep.subr.bf16.mxu0 0
      %1318 = vmatpush1.bf16.msra.mxu0 0
      %1319 = vmatprep.subr.bf16.mxu0 0
      %1320 = vmatpush1.bf16.msra.mxu0 0
      %1321 = vmatprep.subr.bf16.mxu0 0
      %1322 = vmatpush1.bf16.msra.mxu0 0
      %1323 = vmatprep.subr.bf16.mxu0 0
      %1324 = vmatpush1.bf16.msra.mxu0 0
      %1325 = vmatprep.mubr.bf16.mxu0 0
      %1326 = vmatmul.mubr.bf16.gmra.mrb[0].mxu0 %v1100
      %v1327 = vpop.f32.mrb[0].mxu0
      %v1328 = vadd.f32 0.0, %v1327
      %v1329 = vpop.f32.mrb[0].mxu0
      %v1330 = vadd.f32 0.0, %v1329
      %v1331 = vpop.f32.mrb[0].mxu0
      %v1332 = vpop.f32.mrb[0].mxu0
      %1333 = vdwg.mxu0
      %1334 = vmatprep.subr.bf16.mxu0 %v1232
      %1335 = vmatpush1.bf16.msra.mxu0 %v1231
      %1336 = vmatprep.subr.bf16.mxu0 %v1236
      %1337 = vmatpush1.bf16.msra.mxu0 %v1235
      %1338 = vmatprep.subr.bf16.mxu0 %v1240
      %1339 = vmatpush1.bf16.msra.mxu0 %v1239
      %1340 = vmatprep.subr.bf16.mxu0 %v1244
      %1341 = vmatpush1.bf16.msra.mxu0 %v1243
      %1342 = vmatprep.subr.bf16.mxu0 %v1248
      %1343 = vmatpush1.bf16.msra.mxu0 %v1247
      %1344 = vmatprep.subr.bf16.mxu0 %v1252
      %1345 = vmatpush1.bf16.msra.mxu0 %v1251
      %1346 = vmatprep.subr.bf16.mxu0 %v1256
      %1347 = vmatpush1.bf16.msra.mxu0 %v1255
      %1348 = vmatprep.subr.bf16.mxu0 %v1260
      %1349 = vmatpush1.bf16.msra.mxu0 %v1259
      %1350 = vmatprep.subr.bf16.mxu0 0
      %1351 = vmatpush1.bf16.msra.mxu0 0
      %1352 = vmatprep.subr.bf16.mxu0 0
      %1353 = vmatpush1.bf16.msra.mxu0 0
      %1354 = vmatprep.subr.bf16.mxu0 0
      %1355 = vmatpush1.bf16.msra.mxu0 0
      %1356 = vmatprep.subr.bf16.mxu0 0
      %1357 = vmatpush1.bf16.msra.mxu0 0
      %1358 = vmatprep.subr.bf16.mxu0 0
      %1359 = vmatpush1.bf16.msra.mxu0 0
      %1360 = vmatprep.subr.bf16.mxu0 0
      %1361 = vmatpush1.bf16.msra.mxu0 0
      %1362 = vmatprep.subr.bf16.mxu0 0
      %1363 = vmatpush1.bf16.msra.mxu0 0
      %1364 = vmatprep.subr.bf16.mxu0 0
      %1365 = vmatpush1.bf16.msra.mxu0 0
      %1366 = vmatprep.mubr.bf16.mxu0 0
      %1367 = vmatmul.mubr.bf16.gmra.mrb[0].mxu0 %v1100
      %v1368 = vpop.f32.mrb[0].mxu0
      %v1369 = vadd.f32 0.0, %v1368
      %v1370 = vpop.f32.mrb[0].mxu0
      %v1371 = vadd.f32 0.0, %v1370
      %v1372 = vpop.f32.mrb[0].mxu0
      %v1373 = vpop.f32.mrb[0].mxu0
      %1374 = vdwg.mxu0
      %v1375 = vadd.f32 %v1096, %v1328
      %v1376 = vadd.f32 %v1097, %v1330
      %v1377 = vadd.f32 %v1098, %v1369
      %v1378 = vadd.f32 %v1099, %v1371
      %v1379 = vxor.u32 %v1375, 2147483648
      %v1380 = vxor.u32 %v1376, 2147483648
      %v1381 = vxor.u32 %v1377, 2147483648
      %v1382 = vmul.f32 %v1379, 1.442695
      %v1383 = vpow.pop %v1382
      %v1384 = vmul.f32 %v1380, 1.442695
      %v1385 = vpow.pop %v1384
      %v1386 = vmul.f32 %v1381, 1.442695
      %v1387 = vpow.pop %v1386
      %v1388 = vadd.f32 %v1383, 1.0
      %v1389 = vadd.f32 %v1385, 1.0
      %v1390 = vadd.f32 %v1387, 1.0
      %v1391 = vrcp.pop %v1388
      %v1392 = vmul.f32 1.0, %v1391
      %v1393 = vrcp.pop %v1389
      %v1394 = vmul.f32 1.0, %v1393
      %v1395 = vrcp.pop %v1390
      %v1396 = vmul.f32 1.0, %v1395
      %v1397 = vtanh.pop %v1378
      %v1398 = vmul.f32 %v1394, %v1094
      %v1399 = vmul.f32 %v1392, %v1397
      %v1400 = vadd.f32 %v1398, %v1399
      %v1401 = vtanh.pop %v1400
      %v1402 = vmul.f32 %v1396, %v1401
      %v1403 = vstv %s1092
      %vm1404 = vcmp.lt.s32.totalorder %v1403, %v459
      %v1405 = vsel %vm1404, %v1402, %v1093
      %1406 = vst [vmem:[#allocation2] sm:$0xff] %v1405
      %v1407 = vsel %vm1404, %v1400, %v1094
      %1408 = vst [vmem:[#allocation3] sm:$0xff] %v1407
      %s1409 = sadd.s32 %s65, 3
      %v1410 = vld [vmem:[#allocation2] sm:$0xff]
      %v1411 = vld [vmem:[#allocation3] sm:$0xff]
      %s1412 = scalar_lea.vmem [#allocation4], 96
      %v1413 = vld [vmem:[%s1412] sm:$0xff]
      %v1414 = vld [vmem:[%s1412 + $0x8] sm:$0xff]
      %v1415 = vld [vmem:[%s1412 + $0x10] sm:$0xff]
      %v1416 = vld [vmem:[%s1412 + $0x18] sm:$0xff]
      %v1417 = vpack.c.bf16 %v1410, %v1410
      %v1418 = vld [vmem:[#allocation10] sm:$0xff]
      %v1419 = vld [vmem:[#allocation10 + $0x8] sm:$0xff]
      %v1420 = vld [vmem:[#allocation10 + $0x10] sm:$0xff]
      %v1421 = vld [vmem:[#allocation10 + $0x18] sm:$0xff]
      %v1422 = vld [vmem:[#allocation10 + $0x20] sm:$0xff]
      %v1423 = vld [vmem:[#allocation10 + $0x28] sm:$0xff]
      %v1424 = vld [vmem:[#allocation10 + $0x30] sm:$0xff]
      %v1425 = vld [vmem:[#allocation10 + $0x38] sm:$0xff]
      %v1426 = vld [vmem:[#allocation10 + $0x40] sm:$0xff]
      %v1427 = vld [vmem:[#allocation10 + $0x48] sm:$0xff]
      %v1428 = vld [vmem:[#allocation10 + $0x50] sm:$0xff]
      %v1429 = vld [vmem:[#allocation10 + $0x58] sm:$0xff]
      %v1430 = vld [vmem:[#allocation10 + $0x60] sm:$0xff]
      %v1431 = vld [vmem:[#allocation10 + $0x68] sm:$0xff]
      %v1432 = vld [vmem:[#allocation10 + $0x70] sm:$0xff]
      %v1433 = vld [vmem:[#allocation10 + $0x78] sm:$0xff]
      %v1434 = vld [vmem:[#allocation10 + $0x80] sm:$0xff]
      %v1435 = vld [vmem:[#allocation10 + $0x88] sm:$0xff]
      %v1436 = vld [vmem:[#allocation10 + $0x90] sm:$0xff]
      %v1437 = vld [vmem:[#allocation10 + $0x98] sm:$0xff]
      %v1438 = vld [vmem:[#allocation10 + $0xa0] sm:$0xff]
      %v1439 = vld [vmem:[#allocation10 + $0xa8] sm:$0xff]
      %v1440 = vld [vmem:[#allocation10 + $0xb0] sm:$0xff]
      %v1441 = vld [vmem:[#allocation10 + $0xb8] sm:$0xff]
      %v1442 = vld [vmem:[#allocation10 + $0xc0] sm:$0xff]
      %v1443 = vld [vmem:[#allocation10 + $0xc8] sm:$0xff]
      %v1444 = vld [vmem:[#allocation10 + $0xd0] sm:$0xff]
      %v1445 = vld [vmem:[#allocation10 + $0xd8] sm:$0xff]
      %v1446 = vld [vmem:[#allocation10 + $0xe0] sm:$0xff]
      %v1447 = vld [vmem:[#allocation10 + $0xe8] sm:$0xff]
      %v1448 = vld [vmem:[#allocation10 + $0xf0] sm:$0xff]
      %v1449 = vld [vmem:[#allocation10 + $0xf8] sm:$0xff]
      %v1482 = vunpack.c.l.b16 %v1418
      %v1483 = vunpack.c.h.b16 %v1418
      %v1484 = vunpack.c.l.b16 %v1419
      %v1485 = vunpack.c.h.b16 %v1419
      %v1486 = vunpack.c.l.b16 %v1420
      %v1487 = vunpack.c.h.b16 %v1420
      %v1488 = vunpack.c.l.b16 %v1421
      %v1489 = vunpack.c.h.b16 %v1421
      %v1490 = vunpack.c.l.b16 %v1422
      %v1491 = vunpack.c.h.b16 %v1422
      %v1492 = vunpack.c.l.b16 %v1423
      %v1493 = vunpack.c.h.b16 %v1423
      %v1494 = vunpack.c.l.b16 %v1424
      %v1495 = vunpack.c.h.b16 %v1424
      %v1496 = vunpack.c.l.b16 %v1425
      %v1497 = vunpack.c.h.b16 %v1425
      %v1498 = vunpack.c.l.b16 %v1426
      %v1499 = vunpack.c.h.b16 %v1426
      %v1500 = vunpack.c.l.b16 %v1427
      %v1501 = vunpack.c.h.b16 %v1427
      %v1502 = vunpack.c.l.b16 %v1428
      %v1503 = vunpack.c.h.b16 %v1428
      %v1504 = vunpack.c.l.b16 %v1429
      %v1505 = vunpack.c.h.b16 %v1429
      %v1506 = vunpack.c.l.b16 %v1430
      %v1507 = vunpack.c.h.b16 %v1430
      %v1508 = vunpack.c.l.b16 %v1431
      %v1509 = vunpack.c.h.b16 %v1431
      %v1510 = vunpack.c.l.b16 %v1432
      %v1511 = vunpack.c.h.b16 %v1432
      %v1512 = vunpack.c.l.b16 %v1433
      %v1513 = vunpack.c.h.b16 %v1433
      %v1514 = vunpack.c.l.b16 %v1434
      %v1515 = vunpack.c.h.b16 %v1434
      %v1516 = vunpack.c.l.b16 %v1435
      %v1517 = vunpack.c.h.b16 %v1435
      %v1518 = vunpack.c.l.b16 %v1436
      %v1519 = vunpack.c.h.b16 %v1436
      %v1520 = vunpack.c.l.b16 %v1437
      %v1521 = vunpack.c.h.b16 %v1437
      %v1522 = vunpack.c.l.b16 %v1438
      %v1523 = vunpack.c.h.b16 %v1438
      %v1524 = vunpack.c.l.b16 %v1439
      %v1525 = vunpack.c.h.b16 %v1439
      %v1526 = vunpack.c.l.b16 %v1440
      %v1527 = vunpack.c.h.b16 %v1440
      %v1528 = vunpack.c.l.b16 %v1441
      %v1529 = vunpack.c.h.b16 %v1441
      %v1530 = vunpack.c.l.b16 %v1442
      %v1531 = vunpack.c.h.b16 %v1442
      %v1532 = vunpack.c.l.b16 %v1443
      %v1533 = vunpack.c.h.b16 %v1443
      %v1534 = vunpack.c.l.b16 %v1444
      %v1535 = vunpack.c.h.b16 %v1444
      %v1536 = vunpack.c.l.b16 %v1445
      %v1537 = vunpack.c.h.b16 %v1445
      %v1538 = vunpack.c.l.b16 %v1446
      %v1539 = vunpack.c.h.b16 %v1446
      %v1540 = vunpack.c.l.b16 %v1447
      %v1541 = vunpack.c.h.b16 %v1447
      %v1542 = vunpack.c.l.b16 %v1448
      %v1543 = vunpack.c.h.b16 %v1448
      %v1544 = vunpack.c.l.b16 %v1449
      %v1545 = vunpack.c.h.b16 %v1449
      %v1546 = vpack.c.b16 %v1486, %v1482
      %v1547 = vpack.c.b16 %v1487, %v1483
      %v1548 = vpack.c.b16 %v1488, %v1484
      %v1549 = vpack.c.b16 %v1489, %v1485
      %v1550 = vpack.c.b16 %v1494, %v1490
      %v1551 = vpack.c.b16 %v1495, %v1491
      %v1552 = vpack.c.b16 %v1496, %v1492
      %v1553 = vpack.c.b16 %v1497, %v1493
      %v1554 = vpack.c.b16 %v1502, %v1498
      %v1555 = vpack.c.b16 %v1503, %v1499
      %v1556 = vpack.c.b16 %v1504, %v1500
      %v1557 = vpack.c.b16 %v1505, %v1501
      %v1558 = vpack.c.b16 %v1510, %v1506
      %v1559 = vpack.c.b16 %v1511, %v1507
      %v1560 = vpack.c.b16 %v1512, %v1508
      %v1561 = vpack.c.b16 %v1513, %v1509
      %v1562 = vpack.c.b16 %v1518, %v1514
      %v1563 = vpack.c.b16 %v1519, %v1515
      %v1564 = vpack.c.b16 %v1520, %v1516
      %v1565 = vpack.c.b16 %v1521, %v1517
      %v1566 = vpack.c.b16 %v1526, %v1522
      %v1567 = vpack.c.b16 %v1527, %v1523
      %v1568 = vpack.c.b16 %v1528, %v1524
      %v1569 = vpack.c.b16 %v1529, %v1525
      %v1570 = vpack.c.b16 %v1534, %v1530
      %v1571 = vpack.c.b16 %v1535, %v1531
      %v1572 = vpack.c.b16 %v1536, %v1532
      %v1573 = vpack.c.b16 %v1537, %v1533
      %v1574 = vpack.c.b16 %v1542, %v1538
      %v1575 = vpack.c.b16 %v1543, %v1539
      %v1576 = vpack.c.b16 %v1544, %v1540
      %v1577 = vpack.c.b16 %v1545, %v1541
      %1610 = vmatprep.subr.bf16.mxu0 %v1547
      %1611 = vmatpush1.bf16.msra.mxu0 %v1546
      %1612 = vmatprep.subr.bf16.mxu0 %v1551
      %1613 = vmatpush1.bf16.msra.mxu0 %v1550
      %1614 = vmatprep.subr.bf16.mxu0 %v1555
      %1615 = vmatpush1.bf16.msra.mxu0 %v1554
      %1616 = vmatprep.subr.bf16.mxu0 %v1559
      %1617 = vmatpush1.bf16.msra.mxu0 %v1558
      %1618 = vmatprep.subr.bf16.mxu0 %v1563
      %1619 = vmatpush1.bf16.msra.mxu0 %v1562
      %1620 = vmatprep.subr.bf16.mxu0 %v1567
      %1621 = vmatpush1.bf16.msra.mxu0 %v1566
      %1622 = vmatprep.subr.bf16.mxu0 %v1571
      %1623 = vmatpush1.bf16.msra.mxu0 %v1570
      %1624 = vmatprep.subr.bf16.mxu0 %v1575
      %1625 = vmatpush1.bf16.msra.mxu0 %v1574
      %1626 = vmatprep.subr.bf16.mxu0 0
      %1627 = vmatpush1.bf16.msra.mxu0 0
      %1628 = vmatprep.subr.bf16.mxu0 0
      %1629 = vmatpush1.bf16.msra.mxu0 0
      %1630 = vmatprep.subr.bf16.mxu0 0
      %1631 = vmatpush1.bf16.msra.mxu0 0
      %1632 = vmatprep.subr.bf16.mxu0 0
      %1633 = vmatpush1.bf16.msra.mxu0 0
      %1634 = vmatprep.subr.bf16.mxu0 0
      %1635 = vmatpush1.bf16.msra.mxu0 0
      %1636 = vmatprep.subr.bf16.mxu0 0
      %1637 = vmatpush1.bf16.msra.mxu0 0
      %1638 = vmatprep.subr.bf16.mxu0 0
      %1639 = vmatpush1.bf16.msra.mxu0 0
      %1640 = vmatprep.subr.bf16.mxu0 0
      %1641 = vmatpush1.bf16.msra.mxu0 0
      %1642 = vmatprep.mubr.bf16.mxu0 0
      %1643 = vmatmul.mubr.bf16.gmra.mrb[0].mxu0 %v1417
      %v1644 = vpop.f32.mrb[0].mxu0
      %v1645 = vadd.f32 0.0, %v1644
      %v1646 = vpop.f32.mrb[0].mxu0
      %v1647 = vadd.f32 0.0, %v1646
      %v1648 = vpop.f32.mrb[0].mxu0
      %v1649 = vpop.f32.mrb[0].mxu0
      %1650 = vdwg.mxu0
      %1651 = vmatprep.subr.bf16.mxu0 %v1549
      %1652 = vmatpush1.bf16.msra.mxu0 %v1548
      %1653 = vmatprep.subr.bf16.mxu0 %v1553
      %1654 = vmatpush1.bf16.msra.mxu0 %v1552
      %1655 = vmatprep.subr.bf16.mxu0 %v1557
      %1656 = vmatpush1.bf16.msra.mxu0 %v1556
      %1657 = vmatprep.subr.bf16.mxu0 %v1561
      %1658 = vmatpush1.bf16.msra.mxu0 %v1560
      %1659 = vmatprep.subr.bf16.mxu0 %v1565
      %1660 = vmatpush1.bf16.msra.mxu0 %v1564
      %1661 = vmatprep.subr.bf16.mxu0 %v1569
      %1662 = vmatpush1.bf16.msra.mxu0 %v1568
      %1663 = vmatprep.subr.bf16.mxu0 %v1573
      %1664 = vmatpush1.bf16.msra.mxu0 %v1572
      %1665 = vmatprep.subr.bf16.mxu0 %v1577
      %1666 = vmatpush1.bf16.msra.mxu0 %v1576
      %1667 = vmatprep.subr.bf16.mxu0 0
      %1668 = vmatpush1.bf16.msra.mxu0 0
      %1669 = vmatprep.subr.bf16.mxu0 0
      %1670 = vmatpush1.bf16.msra.mxu0 0
      %1671 = vmatprep.subr.bf16.mxu0 0
      %1672 = vmatpush1.bf16.msra.mxu0 0
      %1673 = vmatprep.subr.bf16.mxu0 0
      %1674 = vmatpush1.bf16.msra.mxu0 0
      %1675 = vmatprep.subr.bf16.mxu0 0
      %1676 = vmatpush1.bf16.msra.mxu0 0
      %1677 = vmatprep.subr.bf16.mxu0 0
      %1678 = vmatpush1.bf16.msra.mxu0 0
      %1679 = vmatprep.subr.bf16.mxu0 0
      %1680 = vmatpush1.bf16.msra.mxu0 0
      %1681 = vmatprep.subr.bf16.mxu0 0
      %1682 = vmatpush1.bf16.msra.mxu0 0
      %1683 = vmatprep.mubr.bf16.mxu0 0
      %1684 = vmatmul.mubr.bf16.gmra.mrb[0].mxu0 %v1417
      %v1685 = vpop.f32.mrb[0].mxu0
      %v1686 = vadd.f32 0.0, %v1685
      %v1687 = vpop.f32.mrb[0].mxu0
      %v1688 = vadd.f32 0.0, %v1687
      %v1689 = vpop.f32.mrb[0].mxu0
      %v1690 = vpop.f32.mrb[0].mxu0
      %1691 = vdwg.mxu0
      %v1692 = vadd.f32 %v1413, %v1645
      %v1693 = vadd.f32 %v1414, %v1647
      %v1694 = vadd.f32 %v1415, %v1686
      %v1695 = vadd.f32 %v1416, %v1688
      %v1696 = vxor.u32 %v1692, 2147483648
      %v1697 = vxor.u32 %v1693, 2147483648
      %v1698 = vxor.u32 %v1694, 2147483648
      %v1699 = vmul.f32 %v1696, 1.442695
      %v1700 = vpow.pop %v1699
      %v1701 = vmul.f32 %v1697, 1.442695
      %v1702 = vpow.pop %v1701
      %v1703 = vmul.f32 %v1698, 1.442695
      %v1704 = vpow.pop %v1703
      %v1705 = vadd.f32 %v1700, 1.0
      %v1706 = vadd.f32 %v1702, 1.0
      %v1707 = vadd.f32 %v1704, 1.0
      %v1708 = vrcp.pop %v1705
      %v1709 = vmul.f32 1.0, %v1708
      %v1710 = vrcp.pop %v1706
      %v1711 = vmul.f32 1.0, %v1710
      %v1712 = vrcp.pop %v1707
      %v1713 = vmul.f32 1.0, %v1712
      %v1714 = vtanh.pop %v1695
      %v1715 = vmul.f32 %v1711, %v1411
      %v1716 = vmul.f32 %v1709, %v1714
      %v1717 = vadd.f32 %v1715, %v1716
      %v1718 = vtanh.pop %v1717
      %v1719 = vmul.f32 %v1713, %v1718
      %v1720 = vstv %s1409
      %vm1721 = vcmp.lt.s32.totalorder %v1720, %v459
      %v1722 = vsel %vm1721, %v1719, %v1410
      %1723 = vst [vmem:[#allocation2] sm:$0xff] %v1722
      %v1724 = vsel %vm1721, %v1717, %v1411
      %1725 = vst [vmem:[#allocation3] sm:$0xff] %v1724
      %s1726 = sadd.s32 %s65, 4
      %v1727 = vld [vmem:[#allocation2] sm:$0xff]
      %v1728 = vld [vmem:[#allocation3] sm:$0xff]
      %s1729 = scalar_lea.vmem [#allocation4], 128
      %v1730 = vld [vmem:[%s1729] sm:$0xff]
      %v1731 = vld [vmem:[%s1729 + $0x8] sm:$0xff]
      %v1732 = vld [vmem:[%s1729 + $0x10] sm:$0xff]
      %v1733 = vld [vmem:[%s1729 + $0x18] sm:$0xff]
      %v1734 = vpack.c.bf16 %v1727, %v1727
      %v1735 = vld [vmem:[#allocation10] sm:$0xff]
      %v1736 = vld [vmem:[#allocation10 + $0x8] sm:$0xff]
      %v1737 = vld [vmem:[#allocation10 + $0x10] sm:$0xff]
      %v1738 = vld [vmem:[#allocation10 + $0x18] sm:$0xff]
      %v1739 = vld [vmem:[#allocation10 + $0x20] sm:$0xff]
      %v1740 = vld [vmem:[#allocation10 + $0x28] sm:$0xff]
      %v1741 = vld [vmem:[#allocation10 + $0x30] sm:$0xff]
      %v1742 = vld [vmem:[#allocation10 + $0x38] sm:$0xff]
      %v1743 = vld [vmem:[#allocation10 + $0x40] sm:$0xff]
      %v1744 = vld [vmem:[#allocation10 + $0x48] sm:$0xff]
      %v1745 = vld [vmem:[#allocation10 + $0x50] sm:$0xff]
      %v1746 = vld [vmem:[#allocation10 + $0x58] sm:$0xff]
      %v1747 = vld [vmem:[#allocation10 + $0x60] sm:$0xff]
      %v1748 = vld [vmem:[#allocation10 + $0x68] sm:$0xff]
      %v1749 = vld [vmem:[#allocation10 + $0x70] sm:$0xff]
      %v1750 = vld [vmem:[#allocation10 + $0x78] sm:$0xff]
      %v1751 = vld [vmem:[#allocation10 + $0x80] sm:$0xff]
      %v1752 = vld [vmem:[#allocation10 + $0x88] sm:$0xff]
      %v1753 = vld [vmem:[#allocation10 + $0x90] sm:$0xff]
      %v1754 = vld [vmem:[#allocation10 + $0x98] sm:$0xff]
      %v1755 = vld [vmem:[#allocation10 + $0xa0] sm:$0xff]
      %v1756 = vld [vmem:[#allocation10 + $0xa8] sm:$0xff]
      %v1757 = vld [vmem:[#allocation10 + $0xb0] sm:$0xff]
      %v1758 = vld [vmem:[#allocation10 + $0xb8] sm:$0xff]
      %v1759 = vld [vmem:[#allocation10 + $0xc0] sm:$0xff]
      %v1760 = vld [vmem:[#allocation10 + $0xc8] sm:$0xff]
      %v1761 = vld [vmem:[#allocation10 + $0xd0] sm:$0xff]
      %v1762 = vld [vmem:[#allocation10 + $0xd8] sm:$0xff]
      %v1763 = vld [vmem:[#allocation10 + $0xe0] sm:$0xff]
      %v1764 = vld [vmem:[#allocation10 + $0xe8] sm:$0xff]
      %v1765 = vld [vmem:[#allocation10 + $0xf0] sm:$0xff]
      %v1766 = vld [vmem:[#allocation10 + $0xf8] sm:$0xff]
      %v1799 = vunpack.c.l.b16 %v1735
      %v1800 = vunpack.c.h.b16 %v1735
      %v1801 = vunpack.c.l.b16 %v1736
      %v1802 = vunpack.c.h.b16 %v1736
      %v1803 = vunpack.c.l.b16 %v1737
      %v1804 = vunpack.c.h.b16 %v1737
      %v1805 = vunpack.c.l.b16 %v1738
      %v1806 = vunpack.c.h.b16 %v1738
      %v1807 = vunpack.c.l.b16 %v1739
      %v1808 = vunpack.c.h.b16 %v1739
      %v1809 = vunpack.c.l.b16 %v1740
      %v1810 = vunpack.c.h.b16 %v1740
      %v1811 = vunpack.c.l.b16 %v1741
      %v1812 = vunpack.c.h.b16 %v1741
      %v1813 = vunpack.c.l.b16 %v1742
      %v1814 = vunpack.c.h.b16 %v1742
      %v1815 = vunpack.c.l.b16 %v1743
      %v1816 = vunpack.c.h.b16 %v1743
      %v1817 = vunpack.c.l.b16 %v1744
      %v1818 = vunpack.c.h.b16 %v1744
      %v1819 = vunpack.c.l.b16 %v1745
      %v1820 = vunpack.c.h.b16 %v1745
      %v1821 = vunpack.c.l.b16 %v1746
      %v1822 = vunpack.c.h.b16 %v1746
      %v1823 = vunpack.c.l.b16 %v1747
      %v1824 = vunpack.c.h.b16 %v1747
      %v1825 = vunpack.c.l.b16 %v1748
      %v1826 = vunpack.c.h.b16 %v1748
      %v1827 = vunpack.c.l.b16 %v1749
      %v1828 = vunpack.c.h.b16 %v1749
      %v1829 = vunpack.c.l.b16 %v1750
      %v1830 = vunpack.c.h.b16 %v1750
      %v1831 = vunpack.c.l.b16 %v1751
      %v1832 = vunpack.c.h.b16 %v1751
      %v1833 = vunpack.c.l.b16 %v1752
      %v1834 = vunpack.c.h.b16 %v1752
      %v1835 = vunpack.c.l.b16 %v1753
      %v1836 = vunpack.c.h.b16 %v1753
      %v1837 = vunpack.c.l.b16 %v1754
      %v1838 = vunpack.c.h.b16 %v1754
      %v1839 = vunpack.c.l.b16 %v1755
      %v1840 = vunpack.c.h.b16 %v1755
      %v1841 = vunpack.c.l.b16 %v1756
      %v1842 = vunpack.c.h.b16 %v1756
      %v1843 = vunpack.c.l.b16 %v1757
      %v1844 = vunpack.c.h.b16 %v1757
      %v1845 = vunpack.c.l.b16 %v1758
      %v1846 = vunpack.c.h.b16 %v1758
      %v1847 = vunpack.c.l.b16 %v1759
      %v1848 = vunpack.c.h.b16 %v1759
      %v1849 = vunpack.c.l.b16 %v1760
      %v1850 = vunpack.c.h.b16 %v1760
      %v1851 = vunpack.c.l.b16 %v1761
      %v1852 = vunpack.c.h.b16 %v1761
      %v1853 = vunpack.c.l.b16 %v1762
      %v1854 = vunpack.c.h.b16 %v1762
      %v1855 = vunpack.c.l.b16 %v1763
      %v1856 = vunpack.c.h.b16 %v1763
      %v1857 = vunpack.c.l.b16 %v1764
      %v1858 = vunpack.c.h.b16 %v1764
      %v1859 = vunpack.c.l.b16 %v1765
      %v1860 = vunpack.c.h.b16 %v1765
      %v1861 = vunpack.c.l.b16 %v1766
      %v1862 = vunpack.c.h.b16 %v1766
      %v1863 = vpack.c.b16 %v1803, %v1799
      %v1864 = vpack.c.b16 %v1804, %v1800
      %v1865 = vpack.c.b16 %v1805, %v1801
      %v1866 = vpack.c.b16 %v1806, %v1802
      %v1867 = vpack.c.b16 %v1811, %v1807
      %v1868 = vpack.c.b16 %v1812, %v1808
      %v1869 = vpack.c.b16 %v1813, %v1809
      %v1870 = vpack.c.b16 %v1814, %v1810
      %v1871 = vpack.c.b16 %v1819, %v1815
      %v1872 = vpack.c.b16 %v1820, %v1816
      %v1873 = vpack.c.b16 %v1821, %v1817
      %v1874 = vpack.c.b16 %v1822, %v1818
      %v1875 = vpack.c.b16 %v1827, %v1823
      %v1876 = vpack.c.b16 %v1828, %v1824
      %v1877 = vpack.c.b16 %v1829, %v1825
      %v1878 = vpack.c.b16 %v1830, %v1826
      %v1879 = vpack.c.b16 %v1835, %v1831
      %v1880 = vpack.c.b16 %v1836, %v1832
      %v1881 = vpack.c.b16 %v1837, %v1833
      %v1882 = vpack.c.b16 %v1838, %v1834
      %v1883 = vpack.c.b16 %v1843, %v1839
      %v1884 = vpack.c.b16 %v1844, %v1840
      %v1885 = vpack.c.b16 %v1845, %v1841
      %v1886 = vpack.c.b16 %v1846, %v1842
      %v1887 = vpack.c.b16 %v1851, %v1847
      %v1888 = vpack.c.b16 %v1852, %v1848
      %v1889 = vpack.c.b16 %v1853, %v1849
      %v1890 = vpack.c.b16 %v1854, %v1850
      %v1891 = vpack.c.b16 %v1859, %v1855
      %v1892 = vpack.c.b16 %v1860, %v1856
      %v1893 = vpack.c.b16 %v1861, %v1857
      %v1894 = vpack.c.b16 %v1862, %v1858
      %1927 = vmatprep.subr.bf16.mxu0 %v1864
      %1928 = vmatpush1.bf16.msra.mxu0 %v1863
      %1929 = vmatprep.subr.bf16.mxu0 %v1868
      %1930 = vmatpush1.bf16.msra.mxu0 %v1867
      %1931 = vmatprep.subr.bf16.mxu0 %v1872
      %1932 = vmatpush1.bf16.msra.mxu0 %v1871
      %1933 = vmatprep.subr.bf16.mxu0 %v1876
      %1934 = vmatpush1.bf16.msra.mxu0 %v1875
      %1935 = vmatprep.subr.bf16.mxu0 %v1880
      %1936 = vmatpush1.bf16.msra.mxu0 %v1879
      %1937 = vmatprep.subr.bf16.mxu0 %v1884
      %1938 = vmatpush1.bf16.msra.mxu0 %v1883
      %1939 = vmatprep.subr.bf16.mxu0 %v1888
      %1940 = vmatpush1.bf16.msra.mxu0 %v1887
      %1941 = vmatprep.subr.bf16.mxu0 %v1892
      %1942 = vmatpush1.bf16.msra.mxu0 %v1891
      %1943 = vmatprep.subr.bf16.mxu0 0
      %1944 = vmatpush1.bf16.msra.mxu0 0
      %1945 = vmatprep.subr.bf16.mxu0 0
      %1946 = vmatpush1.bf16.msra.mxu0 0
      %1947 = vmatprep.subr.bf16.mxu0 0
      %1948 = vmatpush1.bf16.msra.mxu0 0
      %1949 = vmatprep.subr.bf16.mxu0 0
      %1950 = vmatpush1.bf16.msra.mxu0 0
      %1951 = vmatprep.subr.bf16.mxu0 0
      %1952 = vmatpush1.bf16.msra.mxu0 0
      %1953 = vmatprep.subr.bf16.mxu0 0
      %1954 = vmatpush1.bf16.msra.mxu0 0
      %1955 = vmatprep.subr.bf16.mxu0 0
      %1956 = vmatpush1.bf16.msra.mxu0 0
      %1957 = vmatprep.subr.bf16.mxu0 0
      %1958 = vmatpush1.bf16.msra.mxu0 0
      %1959 = vmatprep.mubr.bf16.mxu0 0
      %1960 = vmatmul.mubr.bf16.gmra.mrb[0].mxu0 %v1734
      %v1961 = vpop.f32.mrb[0].mxu0
      %v1962 = vadd.f32 0.0, %v1961
      %v1963 = vpop.f32.mrb[0].mxu0
      %v1964 = vadd.f32 0.0, %v1963
      %v1965 = vpop.f32.mrb[0].mxu0
      %v1966 = vpop.f32.mrb[0].mxu0
      %1967 = vdwg.mxu0
      %1968 = vmatprep.subr.bf16.mxu0 %v1866
      %1969 = vmatpush1.bf16.msra.mxu0 %v1865
      %1970 = vmatprep.subr.bf16.mxu0 %v1870
      %1971 = vmatpush1.bf16.msra.mxu0 %v1869
      %1972 = vmatprep.subr.bf16.mxu0 %v1874
      %1973 = vmatpush1.bf16.msra.mxu0 %v1873
      %1974 = vmatprep.subr.bf16.mxu0 %v1878
      %1975 = vmatpush1.bf16.msra.mxu0 %v1877
      %1976 = vmatprep.subr.bf16.mxu0 %v1882
      %1977 = vmatpush1.bf16.msra.mxu0 %v1881
      %1978 = vmatprep.subr.bf16.mxu0 %v1886
      %1979 = vmatpush1.bf16.msra.mxu0 %v1885
      %1980 = vmatprep.subr.bf16.mxu0 %v1890
      %1981 = vmatpush1.bf16.msra.mxu0 %v1889
      %1982 = vmatprep.subr.bf16.mxu0 %v1894
      %1983 = vmatpush1.bf16.msra.mxu0 %v1893
      %1984 = vmatprep.subr.bf16.mxu0 0
      %1985 = vmatpush1.bf16.msra.mxu0 0
      %1986 = vmatprep.subr.bf16.mxu0 0
      %1987 = vmatpush1.bf16.msra.mxu0 0
      %1988 = vmatprep.subr.bf16.mxu0 0
      %1989 = vmatpush1.bf16.msra.mxu0 0
      %1990 = vmatprep.subr.bf16.mxu0 0
      %1991 = vmatpush1.bf16.msra.mxu0 0
      %1992 = vmatprep.subr.bf16.mxu0 0
      %1993 = vmatpush1.bf16.msra.mxu0 0
      %1994 = vmatprep.subr.bf16.mxu0 0
      %1995 = vmatpush1.bf16.msra.mxu0 0
      %1996 = vmatprep.subr.bf16.mxu0 0
      %1997 = vmatpush1.bf16.msra.mxu0 0
      %1998 = vmatprep.subr.bf16.mxu0 0
      %1999 = vmatpush1.bf16.msra.mxu0 0
      %2000 = vmatprep.mubr.bf16.mxu0 0
      %2001 = vmatmul.mubr.bf16.gmra.mrb[0].mxu0 %v1734
      %v2002 = vpop.f32.mrb[0].mxu0
      %v2003 = vadd.f32 0.0, %v2002
      %v2004 = vpop.f32.mrb[0].mxu0
      %v2005 = vadd.f32 0.0, %v2004
      %v2006 = vpop.f32.mrb[0].mxu0
      %v2007 = vpop.f32.mrb[0].mxu0
      %2008 = vdwg.mxu0
      %v2009 = vadd.f32 %v1730, %v1962
      %v2010 = vadd.f32 %v1731, %v1964
      %v2011 = vadd.f32 %v1732, %v2003
      %v2012 = vadd.f32 %v1733, %v2005
      %v2013 = vxor.u32 %v2009, 2147483648
      %v2014 = vxor.u32 %v2010, 2147483648
      %v2015 = vxor.u32 %v2011, 2147483648
      %v2016 = vmul.f32 %v2013, 1.442695
      %v2017 = vpow.pop %v2016
      %v2018 = vmul.f32 %v2014, 1.442695
      %v2019 = vpow.pop %v2018
      %v2020 = vmul.f32 %v2015, 1.442695
      %v2021 = vpow.pop %v2020
      %v2022 = vadd.f32 %v2017, 1.0
      %v2023 = vadd.f32 %v2019, 1.0
      %v2024 = vadd.f32 %v2021, 1.0
      %v2025 = vrcp.pop %v2022
      %v2026 = vmul.f32 1.0, %v2025
      %v2027 = vrcp.pop %v2023
      %v2028 = vmul.f32 1.0, %v2027
      %v2029 = vrcp.pop %v2024
      %v2030 = vmul.f32 1.0, %v2029
      %v2031 = vtanh.pop %v2012
      %v2032 = vmul.f32 %v2028, %v1728
      %v2033 = vmul.f32 %v2026, %v2031
      %v2034 = vadd.f32 %v2032, %v2033
      %v2035 = vtanh.pop %v2034
      %v2036 = vmul.f32 %v2030, %v2035
      %v2037 = vstv %s1726
      %vm2038 = vcmp.lt.s32.totalorder %v2037, %v459
      %v2039 = vsel %vm2038, %v2036, %v1727
      %2040 = vst [vmem:[#allocation2] sm:$0xff] %v2039
      %v2041 = vsel %vm2038, %v2034, %v1728
      %2042 = vst [vmem:[#allocation3] sm:$0xff] %v2041
      %s2043 = sadd.s32 %s65, 5
      %v2044 = vld [vmem:[#allocation2] sm:$0xff]
      %v2045 = vld [vmem:[#allocation3] sm:$0xff]
      %s2046 = scalar_lea.vmem [#allocation4], 160
      %v2047 = vld [vmem:[%s2046] sm:$0xff]
      %v2048 = vld [vmem:[%s2046 + $0x8] sm:$0xff]
      %v2049 = vld [vmem:[%s2046 + $0x10] sm:$0xff]
      %v2050 = vld [vmem:[%s2046 + $0x18] sm:$0xff]
      %v2051 = vpack.c.bf16 %v2044, %v2044
      %v2052 = vld [vmem:[#allocation10] sm:$0xff]
      %v2053 = vld [vmem:[#allocation10 + $0x8] sm:$0xff]
      %v2054 = vld [vmem:[#allocation10 + $0x10] sm:$0xff]
      %v2055 = vld [vmem:[#allocation10 + $0x18] sm:$0xff]
      %v2056 = vld [vmem:[#allocation10 + $0x20] sm:$0xff]
      %v2057 = vld [vmem:[#allocation10 + $0x28] sm:$0xff]
      %v2058 = vld [vmem:[#allocation10 + $0x30] sm:$0xff]
      %v2059 = vld [vmem:[#allocation10 + $0x38] sm:$0xff]
      %v2060 = vld [vmem:[#allocation10 + $0x40] sm:$0xff]
      %v2061 = vld [vmem:[#allocation10 + $0x48] sm:$0xff]
      %v2062 = vld [vmem:[#allocation10 + $0x50] sm:$0xff]
      %v2063 = vld [vmem:[#allocation10 + $0x58] sm:$0xff]
      %v2064 = vld [vmem:[#allocation10 + $0x60] sm:$0xff]
      %v2065 = vld [vmem:[#allocation10 + $0x68] sm:$0xff]
      %v2066 = vld [vmem:[#allocation10 + $0x70] sm:$0xff]
      %v2067 = vld [vmem:[#allocation10 + $0x78] sm:$0xff]
      %v2068 = vld [vmem:[#allocation10 + $0x80] sm:$0xff]
      %v2069 = vld [vmem:[#allocation10 + $0x88] sm:$0xff]
      %v2070 = vld [vmem:[#allocation10 + $0x90] sm:$0xff]
      %v2071 = vld [vmem:[#allocation10 + $0x98] sm:$0xff]
      %v2072 = vld [vmem:[#allocation10 + $0xa0] sm:$0xff]
      %v2073 = vld [vmem:[#allocation10 + $0xa8] sm:$0xff]
      %v2074 = vld [vmem:[#allocation10 + $0xb0] sm:$0xff]
      %v2075 = vld [vmem:[#allocation10 + $0xb8] sm:$0xff]
      %v2076 = vld [vmem:[#allocation10 + $0xc0] sm:$0xff]
      %v2077 = vld [vmem:[#allocation10 + $0xc8] sm:$0xff]
      %v2078 = vld [vmem:[#allocation10 + $0xd0] sm:$0xff]
      %v2079 = vld [vmem:[#allocation10 + $0xd8] sm:$0xff]
      %v2080 = vld [vmem:[#allocation10 + $0xe0] sm:$0xff]
      %v2081 = vld [vmem:[#allocation10 + $0xe8] sm:$0xff]
      %v2082 = vld [vmem:[#allocation10 + $0xf0] sm:$0xff]
      %v2083 = vld [vmem:[#allocation10 + $0xf8] sm:$0xff]
      %v2116 = vunpack.c.l.b16 %v2052
      %v2117 = vunpack.c.h.b16 %v2052
      %v2118 = vunpack.c.l.b16 %v2053
      %v2119 = vunpack.c.h.b16 %v2053
      %v2120 = vunpack.c.l.b16 %v2054
      %v2121 = vunpack.c.h.b16 %v2054
      %v2122 = vunpack.c.l.b16 %v2055
      %v2123 = vunpack.c.h.b16 %v2055
      %v2124 = vunpack.c.l.b16 %v2056
      %v2125 = vunpack.c.h.b16 %v2056
      %v2126 = vunpack.c.l.b16 %v2057
      %v2127 = vunpack.c.h.b16 %v2057
      %v2128 = vunpack.c.l.b16 %v2058
      %v2129 = vunpack.c.h.b16 %v2058
      %v2130 = vunpack.c.l.b16 %v2059
      %v2131 = vunpack.c.h.b16 %v2059
      %v2132 = vunpack.c.l.b16 %v2060
      %v2133 = vunpack.c.h.b16 %v2060
      %v2134 = vunpack.c.l.b16 %v2061
      %v2135 = vunpack.c.h.b16 %v2061
      %v2136 = vunpack.c.l.b16 %v2062
      %v2137 = vunpack.c.h.b16 %v2062
      %v2138 = vunpack.c.l.b16 %v2063
      %v2139 = vunpack.c.h.b16 %v2063
      %v2140 = vunpack.c.l.b16 %v2064
      %v2141 = vunpack.c.h.b16 %v2064
      %v2142 = vunpack.c.l.b16 %v2065
      %v2143 = vunpack.c.h.b16 %v2065
      %v2144 = vunpack.c.l.b16 %v2066
      %v2145 = vunpack.c.h.b16 %v2066
      %v2146 = vunpack.c.l.b16 %v2067
      %v2147 = vunpack.c.h.b16 %v2067
      %v2148 = vunpack.c.l.b16 %v2068
      %v2149 = vunpack.c.h.b16 %v2068
      %v2150 = vunpack.c.l.b16 %v2069
      %v2151 = vunpack.c.h.b16 %v2069
      %v2152 = vunpack.c.l.b16 %v2070
      %v2153 = vunpack.c.h.b16 %v2070
      %v2154 = vunpack.c.l.b16 %v2071
      %v2155 = vunpack.c.h.b16 %v2071
      %v2156 = vunpack.c.l.b16 %v2072
      %v2157 = vunpack.c.h.b16 %v2072
      %v2158 = vunpack.c.l.b16 %v2073
      %v2159 = vunpack.c.h.b16 %v2073
      %v2160 = vunpack.c.l.b16 %v2074
      %v2161 = vunpack.c.h.b16 %v2074
      %v2162 = vunpack.c.l.b16 %v2075
      %v2163 = vunpack.c.h.b16 %v2075
      %v2164 = vunpack.c.l.b16 %v2076
      %v2165 = vunpack.c.h.b16 %v2076
      %v2166 = vunpack.c.l.b16 %v2077
      %v2167 = vunpack.c.h.b16 %v2077
      %v2168 = vunpack.c.l.b16 %v2078
      %v2169 = vunpack.c.h.b16 %v2078
      %v2170 = vunpack.c.l.b16 %v2079
      %v2171 = vunpack.c.h.b16 %v2079
      %v2172 = vunpack.c.l.b16 %v2080
      %v2173 = vunpack.c.h.b16 %v2080
      %v2174 = vunpack.c.l.b16 %v2081
      %v2175 = vunpack.c.h.b16 %v2081
      %v2176 = vunpack.c.l.b16 %v2082
      %v2177 = vunpack.c.h.b16 %v2082
      %v2178 = vunpack.c.l.b16 %v2083
      %v2179 = vunpack.c.h.b16 %v2083
      %v2180 = vpack.c.b16 %v2120, %v2116
      %v2181 = vpack.c.b16 %v2121, %v2117
      %v2182 = vpack.c.b16 %v2122, %v2118
      %v2183 = vpack.c.b16 %v2123, %v2119
      %v2184 = vpack.c.b16 %v2128, %v2124
      %v2185 = vpack.c.b16 %v2129, %v2125
      %v2186 = vpack.c.b16 %v2130, %v2126
      %v2187 = vpack.c.b16 %v2131, %v2127
      %v2188 = vpack.c.b16 %v2136, %v2132
      %v2189 = vpack.c.b16 %v2137, %v2133
      %v2190 = vpack.c.b16 %v2138, %v2134
      %v2191 = vpack.c.b16 %v2139, %v2135
      %v2192 = vpack.c.b16 %v2144, %v2140
      %v2193 = vpack.c.b16 %v2145, %v2141
      %v2194 = vpack.c.b16 %v2146, %v2142
      %v2195 = vpack.c.b16 %v2147, %v2143
      %v2196 = vpack.c.b16 %v2152, %v2148
      %v2197 = vpack.c.b16 %v2153, %v2149
      %v2198 = vpack.c.b16 %v2154, %v2150
      %v2199 = vpack.c.b16 %v2155, %v2151
      %v2200 = vpack.c.b16 %v2160, %v2156
      %v2201 = vpack.c.b16 %v2161, %v2157
      %v2202 = vpack.c.b16 %v2162, %v2158
      %v2203 = vpack.c.b16 %v2163, %v2159
      %v2204 = vpack.c.b16 %v2168, %v2164
      %v2205 = vpack.c.b16 %v2169, %v2165
      %v2206 = vpack.c.b16 %v2170, %v2166
      %v2207 = vpack.c.b16 %v2171, %v2167
      %v2208 = vpack.c.b16 %v2176, %v2172
      %v2209 = vpack.c.b16 %v2177, %v2173
      %v2210 = vpack.c.b16 %v2178, %v2174
      %v2211 = vpack.c.b16 %v2179, %v2175
      %2244 = vmatprep.subr.bf16.mxu0 %v2181
      %2245 = vmatpush1.bf16.msra.mxu0 %v2180
      %2246 = vmatprep.subr.bf16.mxu0 %v2185
      %2247 = vmatpush1.bf16.msra.mxu0 %v2184
      %2248 = vmatprep.subr.bf16.mxu0 %v2189
      %2249 = vmatpush1.bf16.msra.mxu0 %v2188
      %2250 = vmatprep.subr.bf16.mxu0 %v2193
      %2251 = vmatpush1.bf16.msra.mxu0 %v2192
      %2252 = vmatprep.subr.bf16.mxu0 %v2197
      %2253 = vmatpush1.bf16.msra.mxu0 %v2196
      %2254 = vmatprep.subr.bf16.mxu0 %v2201
      %2255 = vmatpush1.bf16.msra.mxu0 %v2200
      %2256 = vmatprep.subr.bf16.mxu0 %v2205
      %2257 = vmatpush1.bf16.msra.mxu0 %v2204
      %2258 = vmatprep.subr.bf16.mxu0 %v2209
      %2259 = vmatpush1.bf16.msra.mxu0 %v2208
      %2260 = vmatprep.subr.bf16.mxu0 0
      %2261 = vmatpush1.bf16.msra.mxu0 0
      %2262 = vmatprep.subr.bf16.mxu0 0
      %2263 = vmatpush1.bf16.msra.mxu0 0
      %2264 = vmatprep.subr.bf16.mxu0 0
      %2265 = vmatpush1.bf16.msra.mxu0 0
      %2266 = vmatprep.subr.bf16.mxu0 0
      %2267 = vmatpush1.bf16.msra.mxu0 0
      %2268 = vmatprep.subr.bf16.mxu0 0
      %2269 = vmatpush1.bf16.msra.mxu0 0
      %2270 = vmatprep.subr.bf16.mxu0 0
      %2271 = vmatpush1.bf16.msra.mxu0 0
      %2272 = vmatprep.subr.bf16.mxu0 0
      %2273 = vmatpush1.bf16.msra.mxu0 0
      %2274 = vmatprep.subr.bf16.mxu0 0
      %2275 = vmatpush1.bf16.msra.mxu0 0
      %2276 = vmatprep.mubr.bf16.mxu0 0
      %2277 = vmatmul.mubr.bf16.gmra.mrb[0].mxu0 %v2051
      %v2278 = vpop.f32.mrb[0].mxu0
      %v2279 = vadd.f32 0.0, %v2278
      %v2280 = vpop.f32.mrb[0].mxu0
      %v2281 = vadd.f32 0.0, %v2280
      %v2282 = vpop.f32.mrb[0].mxu0
      %v2283 = vpop.f32.mrb[0].mxu0
      %2284 = vdwg.mxu0
      %2285 = vmatprep.subr.bf16.mxu0 %v2183
      %2286 = vmatpush1.bf16.msra.mxu0 %v2182
      %2287 = vmatprep.subr.bf16.mxu0 %v2187
      %2288 = vmatpush1.bf16.msra.mxu0 %v2186
      %2289 = vmatprep.subr.bf16.mxu0 %v2191
      %2290 = vmatpush1.bf16.msra.mxu0 %v2190
      %2291 = vmatprep.subr.bf16.mxu0 %v2195
      %2292 = vmatpush1.bf16.msra.mxu0 %v2194
      %2293 = vmatprep.subr.bf16.mxu0 %v2199
      %2294 = vmatpush1.bf16.msra.mxu0 %v2198
      %2295 = vmatprep.subr.bf16.mxu0 %v2203
      %2296 = vmatpush1.bf16.msra.mxu0 %v2202
      %2297 = vmatprep.subr.bf16.mxu0 %v2207
      %2298 = vmatpush1.bf16.msra.mxu0 %v2206
      %2299 = vmatprep.subr.bf16.mxu0 %v2211
      %2300 = vmatpush1.bf16.msra.mxu0 %v2210
      %2301 = vmatprep.subr.bf16.mxu0 0
      %2302 = vmatpush1.bf16.msra.mxu0 0
      %2303 = vmatprep.subr.bf16.mxu0 0
      %2304 = vmatpush1.bf16.msra.mxu0 0
      %2305 = vmatprep.subr.bf16.mxu0 0
      %2306 = vmatpush1.bf16.msra.mxu0 0
      %2307 = vmatprep.subr.bf16.mxu0 0
      %2308 = vmatpush1.bf16.msra.mxu0 0
      %2309 = vmatprep.subr.bf16.mxu0 0
      %2310 = vmatpush1.bf16.msra.mxu0 0
      %2311 = vmatprep.subr.bf16.mxu0 0
      %2312 = vmatpush1.bf16.msra.mxu0 0
      %2313 = vmatprep.subr.bf16.mxu0 0
      %2314 = vmatpush1.bf16.msra.mxu0 0
      %2315 = vmatprep.subr.bf16.mxu0 0
      %2316 = vmatpush1.bf16.msra.mxu0 0
      %2317 = vmatprep.mubr.bf16.mxu0 0
      %2318 = vmatmul.mubr.bf16.gmra.mrb[0].mxu0 %v2051
      %v2319 = vpop.f32.mrb[0].mxu0
      %v2320 = vadd.f32 0.0, %v2319
      %v2321 = vpop.f32.mrb[0].mxu0
      %v2322 = vadd.f32 0.0, %v2321
      %v2323 = vpop.f32.mrb[0].mxu0
      %v2324 = vpop.f32.mrb[0].mxu0
      %2325 = vdwg.mxu0
      %v2326 = vadd.f32 %v2047, %v2279
      %v2327 = vadd.f32 %v2048, %v2281
      %v2328 = vadd.f32 %v2049, %v2320
      %v2329 = vadd.f32 %v2050, %v2322
      %v2330 = vxor.u32 %v2326, 2147483648
      %v2331 = vxor.u32 %v2327, 2147483648
      %v2332 = vxor.u32 %v2328, 2147483648
      %v2333 = vmul.f32 %v2330, 1.442695
      %v2334 = vpow.pop %v2333
      %v2335 = vmul.f32 %v2331, 1.442695
      %v2336 = vpow.pop %v2335
      %v2337 = vmul.f32 %v2332, 1.442695
      %v2338 = vpow.pop %v2337
      %v2339 = vadd.f32 %v2334, 1.0
      %v2340 = vadd.f32 %v2336, 1.0
      %v2341 = vadd.f32 %v2338, 1.0
      %v2342 = vrcp.pop %v2339
      %v2343 = vmul.f32 1.0, %v2342
      %v2344 = vrcp.pop %v2340
      %v2345 = vmul.f32 1.0, %v2344
      %v2346 = vrcp.pop %v2341
      %v2347 = vmul.f32 1.0, %v2346
      %v2348 = vtanh.pop %v2329
      %v2349 = vmul.f32 %v2345, %v2045
      %v2350 = vmul.f32 %v2343, %v2348
      %v2351 = vadd.f32 %v2349, %v2350
      %v2352 = vtanh.pop %v2351
      %v2353 = vmul.f32 %v2347, %v2352
      %v2354 = vstv %s2043
      %vm2355 = vcmp.lt.s32.totalorder %v2354, %v459
      %v2356 = vsel %vm2355, %v2353, %v2044
      %2357 = vst [vmem:[#allocation2] sm:$0xff] %v2356
      %v2358 = vsel %vm2355, %v2351, %v2045
      %2359 = vst [vmem:[#allocation3] sm:$0xff] %v2358
      %s2360 = sadd.s32 %s65, 6
      %v2361 = vld [vmem:[#allocation2] sm:$0xff]
      %v2362 = vld [vmem:[#allocation3] sm:$0xff]
      %s2363 = scalar_lea.vmem [#allocation4], 192
      %v2364 = vld [vmem:[%s2363] sm:$0xff]
      %v2365 = vld [vmem:[%s2363 + $0x8] sm:$0xff]
      %v2366 = vld [vmem:[%s2363 + $0x10] sm:$0xff]
      %v2367 = vld [vmem:[%s2363 + $0x18] sm:$0xff]
      %v2368 = vpack.c.bf16 %v2361, %v2361
      %v2369 = vld [vmem:[#allocation10] sm:$0xff]
      %v2370 = vld [vmem:[#allocation10 + $0x8] sm:$0xff]
      %v2371 = vld [vmem:[#allocation10 + $0x10] sm:$0xff]
      %v2372 = vld [vmem:[#allocation10 + $0x18] sm:$0xff]
      %v2373 = vld [vmem:[#allocation10 + $0x20] sm:$0xff]
      %v2374 = vld [vmem:[#allocation10 + $0x28] sm:$0xff]
      %v2375 = vld [vmem:[#allocation10 + $0x30] sm:$0xff]
      %v2376 = vld [vmem:[#allocation10 + $0x38] sm:$0xff]
      %v2377 = vld [vmem:[#allocation10 + $0x40] sm:$0xff]
      %v2378 = vld [vmem:[#allocation10 + $0x48] sm:$0xff]
      %v2379 = vld [vmem:[#allocation10 + $0x50] sm:$0xff]
      %v2380 = vld [vmem:[#allocation10 + $0x58] sm:$0xff]
      %v2381 = vld [vmem:[#allocation10 + $0x60] sm:$0xff]
      %v2382 = vld [vmem:[#allocation10 + $0x68] sm:$0xff]
      %v2383 = vld [vmem:[#allocation10 + $0x70] sm:$0xff]
      %v2384 = vld [vmem:[#allocation10 + $0x78] sm:$0xff]
      %v2385 = vld [vmem:[#allocation10 + $0x80] sm:$0xff]
      %v2386 = vld [vmem:[#allocation10 + $0x88] sm:$0xff]
      %v2387 = vld [vmem:[#allocation10 + $0x90] sm:$0xff]
      %v2388 = vld [vmem:[#allocation10 + $0x98] sm:$0xff]
      %v2389 = vld [vmem:[#allocation10 + $0xa0] sm:$0xff]
      %v2390 = vld [vmem:[#allocation10 + $0xa8] sm:$0xff]
      %v2391 = vld [vmem:[#allocation10 + $0xb0] sm:$0xff]
      %v2392 = vld [vmem:[#allocation10 + $0xb8] sm:$0xff]
      %v2393 = vld [vmem:[#allocation10 + $0xc0] sm:$0xff]
      %v2394 = vld [vmem:[#allocation10 + $0xc8] sm:$0xff]
      %v2395 = vld [vmem:[#allocation10 + $0xd0] sm:$0xff]
      %v2396 = vld [vmem:[#allocation10 + $0xd8] sm:$0xff]
      %v2397 = vld [vmem:[#allocation10 + $0xe0] sm:$0xff]
      %v2398 = vld [vmem:[#allocation10 + $0xe8] sm:$0xff]
      %v2399 = vld [vmem:[#allocation10 + $0xf0] sm:$0xff]
      %v2400 = vld [vmem:[#allocation10 + $0xf8] sm:$0xff]
      %v2433 = vunpack.c.l.b16 %v2369
      %v2434 = vunpack.c.h.b16 %v2369
      %v2435 = vunpack.c.l.b16 %v2370
      %v2436 = vunpack.c.h.b16 %v2370
      %v2437 = vunpack.c.l.b16 %v2371
      %v2438 = vunpack.c.h.b16 %v2371
      %v2439 = vunpack.c.l.b16 %v2372
      %v2440 = vunpack.c.h.b16 %v2372
      %v2441 = vunpack.c.l.b16 %v2373
      %v2442 = vunpack.c.h.b16 %v2373
      %v2443 = vunpack.c.l.b16 %v2374
      %v2444 = vunpack.c.h.b16 %v2374
      %v2445 = vunpack.c.l.b16 %v2375
      %v2446 = vunpack.c.h.b16 %v2375
      %v2447 = vunpack.c.l.b16 %v2376
      %v2448 = vunpack.c.h.b16 %v2376
      %v2449 = vunpack.c.l.b16 %v2377
      %v2450 = vunpack.c.h.b16 %v2377
      %v2451 = vunpack.c.l.b16 %v2378
      %v2452 = vunpack.c.h.b16 %v2378
      %v2453 = vunpack.c.l.b16 %v2379
      %v2454 = vunpack.c.h.b16 %v2379
      %v2455 = vunpack.c.l.b16 %v2380
      %v2456 = vunpack.c.h.b16 %v2380
      %v2457 = vunpack.c.l.b16 %v2381
      %v2458 = vunpack.c.h.b16 %v2381
      %v2459 = vunpack.c.l.b16 %v2382
      %v2460 = vunpack.c.h.b16 %v2382
      %v2461 = vunpack.c.l.b16 %v2383
      %v2462 = vunpack.c.h.b16 %v2383
      %v2463 = vunpack.c.l.b16 %v2384
      %v2464 = vunpack.c.h.b16 %v2384
      %v2465 = vunpack.c.l.b16 %v2385
      %v2466 = vunpack.c.h.b16 %v2385
      %v2467 = vunpack.c.l.b16 %v2386
      %v2468 = vunpack.c.h.b16 %v2386
      %v2469 = vunpack.c.l.b16 %v2387
      %v2470 = vunpack.c.h.b16 %v2387
      %v2471 = vunpack.c.l.b16 %v2388
      %v2472 = vunpack.c.h.b16 %v2388
      %v2473 = vunpack.c.l.b16 %v2389
      %v2474 = vunpack.c.h.b16 %v2389
      %v2475 = vunpack.c.l.b16 %v2390
      %v2476 = vunpack.c.h.b16 %v2390
      %v2477 = vunpack.c.l.b16 %v2391
      %v2478 = vunpack.c.h.b16 %v2391
      %v2479 = vunpack.c.l.b16 %v2392
      %v2480 = vunpack.c.h.b16 %v2392
      %v2481 = vunpack.c.l.b16 %v2393
      %v2482 = vunpack.c.h.b16 %v2393
      %v2483 = vunpack.c.l.b16 %v2394
      %v2484 = vunpack.c.h.b16 %v2394
      %v2485 = vunpack.c.l.b16 %v2395
      %v2486 = vunpack.c.h.b16 %v2395
      %v2487 = vunpack.c.l.b16 %v2396
      %v2488 = vunpack.c.h.b16 %v2396
      %v2489 = vunpack.c.l.b16 %v2397
      %v2490 = vunpack.c.h.b16 %v2397
      %v2491 = vunpack.c.l.b16 %v2398
      %v2492 = vunpack.c.h.b16 %v2398
      %v2493 = vunpack.c.l.b16 %v2399
      %v2494 = vunpack.c.h.b16 %v2399
      %v2495 = vunpack.c.l.b16 %v2400
      %v2496 = vunpack.c.h.b16 %v2400
      %v2497 = vpack.c.b16 %v2437, %v2433
      %v2498 = vpack.c.b16 %v2438, %v2434
      %v2499 = vpack.c.b16 %v2439, %v2435
      %v2500 = vpack.c.b16 %v2440, %v2436
      %v2501 = vpack.c.b16 %v2445, %v2441
      %v2502 = vpack.c.b16 %v2446, %v2442
      %v2503 = vpack.c.b16 %v2447, %v2443
      %v2504 = vpack.c.b16 %v2448, %v2444
      %v2505 = vpack.c.b16 %v2453, %v2449
      %v2506 = vpack.c.b16 %v2454, %v2450
      %v2507 = vpack.c.b16 %v2455, %v2451
      %v2508 = vpack.c.b16 %v2456, %v2452
      %v2509 = vpack.c.b16 %v2461, %v2457
      %v2510 = vpack.c.b16 %v2462, %v2458
      %v2511 = vpack.c.b16 %v2463, %v2459
      %v2512 = vpack.c.b16 %v2464, %v2460
      %v2513 = vpack.c.b16 %v2469, %v2465
      %v2514 = vpack.c.b16 %v2470, %v2466
      %v2515 = vpack.c.b16 %v2471, %v2467
      %v2516 = vpack.c.b16 %v2472, %v2468
      %v2517 = vpack.c.b16 %v2477, %v2473
      %v2518 = vpack.c.b16 %v2478, %v2474
      %v2519 = vpack.c.b16 %v2479, %v2475
      %v2520 = vpack.c.b16 %v2480, %v2476
      %v2521 = vpack.c.b16 %v2485, %v2481
      %v2522 = vpack.c.b16 %v2486, %v2482
      %v2523 = vpack.c.b16 %v2487, %v2483
      %v2524 = vpack.c.b16 %v2488, %v2484
      %v2525 = vpack.c.b16 %v2493, %v2489
      %v2526 = vpack.c.b16 %v2494, %v2490
      %v2527 = vpack.c.b16 %v2495, %v2491
      %v2528 = vpack.c.b16 %v2496, %v2492
      %2561 = vmatprep.subr.bf16.mxu0 %v2498
      %2562 = vmatpush1.bf16.msra.mxu0 %v2497
      %2563 = vmatprep.subr.bf16.mxu0 %v2502
      %2564 = vmatpush1.bf16.msra.mxu0 %v2501
      %2565 = vmatprep.subr.bf16.mxu0 %v2506
      %2566 = vmatpush1.bf16.msra.mxu0 %v2505
      %2567 = vmatprep.subr.bf16.mxu0 %v2510
      %2568 = vmatpush1.bf16.msra.mxu0 %v2509
      %2569 = vmatprep.subr.bf16.mxu0 %v2514
      %2570 = vmatpush1.bf16.msra.mxu0 %v2513
      %2571 = vmatprep.subr.bf16.mxu0 %v2518
      %2572 = vmatpush1.bf16.msra.mxu0 %v2517
      %2573 = vmatprep.subr.bf16.mxu0 %v2522
      %2574 = vmatpush1.bf16.msra.mxu0 %v2521
      %2575 = vmatprep.subr.bf16.mxu0 %v2526
      %2576 = vmatpush1.bf16.msra.mxu0 %v2525
      %2577 = vmatprep.subr.bf16.mxu0 0
      %2578 = vmatpush1.bf16.msra.mxu0 0
      %2579 = vmatprep.subr.bf16.mxu0 0
      %2580 = vmatpush1.bf16.msra.mxu0 0
      %2581 = vmatprep.subr.bf16.mxu0 0
      %2582 = vmatpush1.bf16.msra.mxu0 0
      %2583 = vmatprep.subr.bf16.mxu0 0
      %2584 = vmatpush1.bf16.msra.mxu0 0
      %2585 = vmatprep.subr.bf16.mxu0 0
      %2586 = vmatpush1.bf16.msra.mxu0 0
      %2587 = vmatprep.subr.bf16.mxu0 0
      %2588 = vmatpush1.bf16.msra.mxu0 0
      %2589 = vmatprep.subr.bf16.mxu0 0
      %2590 = vmatpush1.bf16.msra.mxu0 0
      %2591 = vmatprep.subr.bf16.mxu0 0
      %2592 = vmatpush1.bf16.msra.mxu0 0
      %2593 = vmatprep.mubr.bf16.mxu0 0
      %2594 = vmatmul.mubr.bf16.gmra.mrb[0].mxu0 %v2368
      %v2595 = vpop.f32.mrb[0].mxu0
      %v2596 = vadd.f32 0.0, %v2595
      %v2597 = vpop.f32.mrb[0].mxu0
      %v2598 = vadd.f32 0.0, %v2597
      %v2599 = vpop.f32.mrb[0].mxu0
      %v2600 = vpop.f32.mrb[0].mxu0
      %2601 = vdwg.mxu0
      %2602 = vmatprep.subr.bf16.mxu0 %v2500
      %2603 = vmatpush1.bf16.msra.mxu0 %v2499
      %2604 = vmatprep.subr.bf16.mxu0 %v2504
      %2605 = vmatpush1.bf16.msra.mxu0 %v2503
      %2606 = vmatprep.subr.bf16.mxu0 %v2508
      %2607 = vmatpush1.bf16.msra.mxu0 %v2507
      %2608 = vmatprep.subr.bf16.mxu0 %v2512
      %2609 = vmatpush1.bf16.msra.mxu0 %v2511
      %2610 = vmatprep.subr.bf16.mxu0 %v2516
      %2611 = vmatpush1.bf16.msra.mxu0 %v2515
      %2612 = vmatprep.subr.bf16.mxu0 %v2520
      %2613 = vmatpush1.bf16.msra.mxu0 %v2519
      %2614 = vmatprep.subr.bf16.mxu0 %v2524
      %2615 = vmatpush1.bf16.msra.mxu0 %v2523
      %2616 = vmatprep.subr.bf16.mxu0 %v2528
      %2617 = vmatpush1.bf16.msra.mxu0 %v2527
      %2618 = vmatprep.subr.bf16.mxu0 0
      %2619 = vmatpush1.bf16.msra.mxu0 0
      %2620 = vmatprep.subr.bf16.mxu0 0
      %2621 = vmatpush1.bf16.msra.mxu0 0
      %2622 = vmatprep.subr.bf16.mxu0 0
      %2623 = vmatpush1.bf16.msra.mxu0 0
      %2624 = vmatprep.subr.bf16.mxu0 0
      %2625 = vmatpush1.bf16.msra.mxu0 0
      %2626 = vmatprep.subr.bf16.mxu0 0
      %2627 = vmatpush1.bf16.msra.mxu0 0
      %2628 = vmatprep.subr.bf16.mxu0 0
      %2629 = vmatpush1.bf16.msra.mxu0 0
      %2630 = vmatprep.subr.bf16.mxu0 0
      %2631 = vmatpush1.bf16.msra.mxu0 0
      %2632 = vmatprep.subr.bf16.mxu0 0
      %2633 = vmatpush1.bf16.msra.mxu0 0
      %2634 = vmatprep.mubr.bf16.mxu0 0
      %2635 = vmatmul.mubr.bf16.gmra.mrb[0].mxu0 %v2368
      %v2636 = vpop.f32.mrb[0].mxu0
      %v2637 = vadd.f32 0.0, %v2636
      %v2638 = vpop.f32.mrb[0].mxu0
      %v2639 = vadd.f32 0.0, %v2638
      %v2640 = vpop.f32.mrb[0].mxu0
      %v2641 = vpop.f32.mrb[0].mxu0
      %2642 = vdwg.mxu0
      %v2643 = vadd.f32 %v2364, %v2596
      %v2644 = vadd.f32 %v2365, %v2598
      %v2645 = vadd.f32 %v2366, %v2637
      %v2646 = vadd.f32 %v2367, %v2639
      %v2647 = vxor.u32 %v2643, 2147483648
      %v2648 = vxor.u32 %v2644, 2147483648
      %v2649 = vxor.u32 %v2645, 2147483648
      %v2650 = vmul.f32 %v2647, 1.442695
      %v2651 = vpow.pop %v2650
      %v2652 = vmul.f32 %v2648, 1.442695
      %v2653 = vpow.pop %v2652
      %v2654 = vmul.f32 %v2649, 1.442695
      %v2655 = vpow.pop %v2654
      %v2656 = vadd.f32 %v2651, 1.0
      %v2657 = vadd.f32 %v2653, 1.0
      %v2658 = vadd.f32 %v2655, 1.0
      %v2659 = vrcp.pop %v2656
      %v2660 = vmul.f32 1.0, %v2659
      %v2661 = vrcp.pop %v2657
      %v2662 = vmul.f32 1.0, %v2661
      %v2663 = vrcp.pop %v2658
      %v2664 = vmul.f32 1.0, %v2663
      %v2665 = vtanh.pop %v2646
      %v2666 = vmul.f32 %v2662, %v2362
      %v2667 = vmul.f32 %v2660, %v2665
      %v2668 = vadd.f32 %v2666, %v2667
      %v2669 = vtanh.pop %v2668
      %v2670 = vmul.f32 %v2664, %v2669
      %v2671 = vstv %s2360
      %vm2672 = vcmp.lt.s32.totalorder %v2671, %v459
      %v2673 = vsel %vm2672, %v2670, %v2361
      %2674 = vst [vmem:[#allocation2] sm:$0xff] %v2673
      %v2675 = vsel %vm2672, %v2668, %v2362
      %2676 = vst [vmem:[#allocation3] sm:$0xff] %v2675
      %s2677 = sadd.s32 %s65, 7
      %v2678 = vld [vmem:[#allocation2] sm:$0xff]
      %v2679 = vld [vmem:[#allocation3] sm:$0xff]
      %s2680 = scalar_lea.vmem [#allocation4], 224
      %v2681 = vld [vmem:[%s2680] sm:$0xff]
      %v2682 = vld [vmem:[%s2680 + $0x8] sm:$0xff]
      %v2683 = vld [vmem:[%s2680 + $0x10] sm:$0xff]
      %v2684 = vld [vmem:[%s2680 + $0x18] sm:$0xff]
      %v2685 = vpack.c.bf16 %v2678, %v2678
      %v2686 = vld [vmem:[#allocation10] sm:$0xff]
      %v2687 = vld [vmem:[#allocation10 + $0x8] sm:$0xff]
      %v2688 = vld [vmem:[#allocation10 + $0x10] sm:$0xff]
      %v2689 = vld [vmem:[#allocation10 + $0x18] sm:$0xff]
      %v2690 = vld [vmem:[#allocation10 + $0x20] sm:$0xff]
      %v2691 = vld [vmem:[#allocation10 + $0x28] sm:$0xff]
      %v2692 = vld [vmem:[#allocation10 + $0x30] sm:$0xff]
      %v2693 = vld [vmem:[#allocation10 + $0x38] sm:$0xff]
      %v2694 = vld [vmem:[#allocation10 + $0x40] sm:$0xff]
      %v2695 = vld [vmem:[#allocation10 + $0x48] sm:$0xff]
      %v2696 = vld [vmem:[#allocation10 + $0x50] sm:$0xff]
      %v2697 = vld [vmem:[#allocation10 + $0x58] sm:$0xff]
      %v2698 = vld [vmem:[#allocation10 + $0x60] sm:$0xff]
      %v2699 = vld [vmem:[#allocation10 + $0x68] sm:$0xff]
      %v2700 = vld [vmem:[#allocation10 + $0x70] sm:$0xff]
      %v2701 = vld [vmem:[#allocation10 + $0x78] sm:$0xff]
      %v2702 = vld [vmem:[#allocation10 + $0x80] sm:$0xff]
      %v2703 = vld [vmem:[#allocation10 + $0x88] sm:$0xff]
      %v2704 = vld [vmem:[#allocation10 + $0x90] sm:$0xff]
      %v2705 = vld [vmem:[#allocation10 + $0x98] sm:$0xff]
      %v2706 = vld [vmem:[#allocation10 + $0xa0] sm:$0xff]
      %v2707 = vld [vmem:[#allocation10 + $0xa8] sm:$0xff]
      %v2708 = vld [vmem:[#allocation10 + $0xb0] sm:$0xff]
      %v2709 = vld [vmem:[#allocation10 + $0xb8] sm:$0xff]
      %v2710 = vld [vmem:[#allocation10 + $0xc0] sm:$0xff]
      %v2711 = vld [vmem:[#allocation10 + $0xc8] sm:$0xff]
      %v2712 = vld [vmem:[#allocation10 + $0xd0] sm:$0xff]
      %v2713 = vld [vmem:[#allocation10 + $0xd8] sm:$0xff]
      %v2714 = vld [vmem:[#allocation10 + $0xe0] sm:$0xff]
      %v2715 = vld [vmem:[#allocation10 + $0xe8] sm:$0xff]
      %v2716 = vld [vmem:[#allocation10 + $0xf0] sm:$0xff]
      %v2717 = vld [vmem:[#allocation10 + $0xf8] sm:$0xff]
      %v2750 = vunpack.c.l.b16 %v2686
      %v2751 = vunpack.c.h.b16 %v2686
      %v2752 = vunpack.c.l.b16 %v2687
      %v2753 = vunpack.c.h.b16 %v2687
      %v2754 = vunpack.c.l.b16 %v2688
      %v2755 = vunpack.c.h.b16 %v2688
      %v2756 = vunpack.c.l.b16 %v2689
      %v2757 = vunpack.c.h.b16 %v2689
      %v2758 = vunpack.c.l.b16 %v2690
      %v2759 = vunpack.c.h.b16 %v2690
      %v2760 = vunpack.c.l.b16 %v2691
      %v2761 = vunpack.c.h.b16 %v2691
      %v2762 = vunpack.c.l.b16 %v2692
      %v2763 = vunpack.c.h.b16 %v2692
      %v2764 = vunpack.c.l.b16 %v2693
      %v2765 = vunpack.c.h.b16 %v2693
      %v2766 = vunpack.c.l.b16 %v2694
      %v2767 = vunpack.c.h.b16 %v2694
      %v2768 = vunpack.c.l.b16 %v2695
      %v2769 = vunpack.c.h.b16 %v2695
      %v2770 = vunpack.c.l.b16 %v2696
      %v2771 = vunpack.c.h.b16 %v2696
      %v2772 = vunpack.c.l.b16 %v2697
      %v2773 = vunpack.c.h.b16 %v2697
      %v2774 = vunpack.c.l.b16 %v2698
      %v2775 = vunpack.c.h.b16 %v2698
      %v2776 = vunpack.c.l.b16 %v2699
      %v2777 = vunpack.c.h.b16 %v2699
      %v2778 = vunpack.c.l.b16 %v2700
      %v2779 = vunpack.c.h.b16 %v2700
      %v2780 = vunpack.c.l.b16 %v2701
      %v2781 = vunpack.c.h.b16 %v2701
      %v2782 = vunpack.c.l.b16 %v2702
      %v2783 = vunpack.c.h.b16 %v2702
      %v2784 = vunpack.c.l.b16 %v2703
      %v2785 = vunpack.c.h.b16 %v2703
      %v2786 = vunpack.c.l.b16 %v2704
      %v2787 = vunpack.c.h.b16 %v2704
      %v2788 = vunpack.c.l.b16 %v2705
      %v2789 = vunpack.c.h.b16 %v2705
      %v2790 = vunpack.c.l.b16 %v2706
      %v2791 = vunpack.c.h.b16 %v2706
      %v2792 = vunpack.c.l.b16 %v2707
      %v2793 = vunpack.c.h.b16 %v2707
      %v2794 = vunpack.c.l.b16 %v2708
      %v2795 = vunpack.c.h.b16 %v2708
      %v2796 = vunpack.c.l.b16 %v2709
      %v2797 = vunpack.c.h.b16 %v2709
      %v2798 = vunpack.c.l.b16 %v2710
      %v2799 = vunpack.c.h.b16 %v2710
      %v2800 = vunpack.c.l.b16 %v2711
      %v2801 = vunpack.c.h.b16 %v2711
      %v2802 = vunpack.c.l.b16 %v2712
      %v2803 = vunpack.c.h.b16 %v2712
      %v2804 = vunpack.c.l.b16 %v2713
      %v2805 = vunpack.c.h.b16 %v2713
      %v2806 = vunpack.c.l.b16 %v2714
      %v2807 = vunpack.c.h.b16 %v2714
      %v2808 = vunpack.c.l.b16 %v2715
      %v2809 = vunpack.c.h.b16 %v2715
      %v2810 = vunpack.c.l.b16 %v2716
      %v2811 = vunpack.c.h.b16 %v2716
      %v2812 = vunpack.c.l.b16 %v2717
      %v2813 = vunpack.c.h.b16 %v2717
      %v2814 = vpack.c.b16 %v2754, %v2750
      %v2815 = vpack.c.b16 %v2755, %v2751
      %v2816 = vpack.c.b16 %v2756, %v2752
      %v2817 = vpack.c.b16 %v2757, %v2753
      %v2818 = vpack.c.b16 %v2762, %v2758
      %v2819 = vpack.c.b16 %v2763, %v2759
      %v2820 = vpack.c.b16 %v2764, %v2760
      %v2821 = vpack.c.b16 %v2765, %v2761
      %v2822 = vpack.c.b16 %v2770, %v2766
      %v2823 = vpack.c.b16 %v2771, %v2767
      %v2824 = vpack.c.b16 %v2772, %v2768
      %v2825 = vpack.c.b16 %v2773, %v2769
      %v2826 = vpack.c.b16 %v2778, %v2774
      %v2827 = vpack.c.b16 %v2779, %v2775
      %v2828 = vpack.c.b16 %v2780, %v2776
      %v2829 = vpack.c.b16 %v2781, %v2777
      %v2830 = vpack.c.b16 %v2786, %v2782
      %v2831 = vpack.c.b16 %v2787, %v2783
      %v2832 = vpack.c.b16 %v2788, %v2784
      %v2833 = vpack.c.b16 %v2789, %v2785
      %v2834 = vpack.c.b16 %v2794, %v2790
      %v2835 = vpack.c.b16 %v2795, %v2791
      %v2836 = vpack.c.b16 %v2796, %v2792
      %v2837 = vpack.c.b16 %v2797, %v2793
      %v2838 = vpack.c.b16 %v2802, %v2798
      %v2839 = vpack.c.b16 %v2803, %v2799
      %v2840 = vpack.c.b16 %v2804, %v2800
      %v2841 = vpack.c.b16 %v2805, %v2801
      %v2842 = vpack.c.b16 %v2810, %v2806
      %v2843 = vpack.c.b16 %v2811, %v2807
      %v2844 = vpack.c.b16 %v2812, %v2808
      %v2845 = vpack.c.b16 %v2813, %v2809
      %2878 = vmatprep.subr.bf16.mxu0 %v2815
      %2879 = vmatpush1.bf16.msra.mxu0 %v2814
      %2880 = vmatprep.subr.bf16.mxu0 %v2819
      %2881 = vmatpush1.bf16.msra.mxu0 %v2818
      %2882 = vmatprep.subr.bf16.mxu0 %v2823
      %2883 = vmatpush1.bf16.msra.mxu0 %v2822
      %2884 = vmatprep.subr.bf16.mxu0 %v2827
      %2885 = vmatpush1.bf16.msra.mxu0 %v2826
      %2886 = vmatprep.subr.bf16.mxu0 %v2831
      %2887 = vmatpush1.bf16.msra.mxu0 %v2830
      %2888 = vmatprep.subr.bf16.mxu0 %v2835
      %2889 = vmatpush1.bf16.msra.mxu0 %v2834
      %2890 = vmatprep.subr.bf16.mxu0 %v2839
      %2891 = vmatpush1.bf16.msra.mxu0 %v2838
      %2892 = vmatprep.subr.bf16.mxu0 %v2843
      %2893 = vmatpush1.bf16.msra.mxu0 %v2842
      %2894 = vmatprep.subr.bf16.mxu0 0
      %2895 = vmatpush1.bf16.msra.mxu0 0
      %2896 = vmatprep.subr.bf16.mxu0 0
      %2897 = vmatpush1.bf16.msra.mxu0 0
      %2898 = vmatprep.subr.bf16.mxu0 0
      %2899 = vmatpush1.bf16.msra.mxu0 0
      %2900 = vmatprep.subr.bf16.mxu0 0
      %2901 = vmatpush1.bf16.msra.mxu0 0
      %2902 = vmatprep.subr.bf16.mxu0 0
      %2903 = vmatpush1.bf16.msra.mxu0 0
      %2904 = vmatprep.subr.bf16.mxu0 0
      %2905 = vmatpush1.bf16.msra.mxu0 0
      %2906 = vmatprep.subr.bf16.mxu0 0
      %2907 = vmatpush1.bf16.msra.mxu0 0
      %2908 = vmatprep.subr.bf16.mxu0 0
      %2909 = vmatpush1.bf16.msra.mxu0 0
      %2910 = vmatprep.mubr.bf16.mxu0 0
      %2911 = vmatmul.mubr.bf16.gmra.mrb[0].mxu0 %v2685
      %v2912 = vpop.f32.mrb[0].mxu0
      %v2913 = vadd.f32 0.0, %v2912
      %v2914 = vpop.f32.mrb[0].mxu0
      %v2915 = vadd.f32 0.0, %v2914
      %v2916 = vpop.f32.mrb[0].mxu0
      %v2917 = vpop.f32.mrb[0].mxu0
      %2918 = vdwg.mxu0
      %2919 = vmatprep.subr.bf16.mxu0 %v2817
      %2920 = vmatpush1.bf16.msra.mxu0 %v2816
      %2921 = vmatprep.subr.bf16.mxu0 %v2821
      %2922 = vmatpush1.bf16.msra.mxu0 %v2820
      %2923 = vmatprep.subr.bf16.mxu0 %v2825
      %2924 = vmatpush1.bf16.msra.mxu0 %v2824
      %2925 = vmatprep.subr.bf16.mxu0 %v2829
      %2926 = vmatpush1.bf16.msra.mxu0 %v2828
      %2927 = vmatprep.subr.bf16.mxu0 %v2833
      %2928 = vmatpush1.bf16.msra.mxu0 %v2832
      %2929 = vmatprep.subr.bf16.mxu0 %v2837
      %2930 = vmatpush1.bf16.msra.mxu0 %v2836
      %2931 = vmatprep.subr.bf16.mxu0 %v2841
      %2932 = vmatpush1.bf16.msra.mxu0 %v2840
      %2933 = vmatprep.subr.bf16.mxu0 %v2845
      %2934 = vmatpush1.bf16.msra.mxu0 %v2844
      %2935 = vmatprep.subr.bf16.mxu0 0
      %2936 = vmatpush1.bf16.msra.mxu0 0
      %2937 = vmatprep.subr.bf16.mxu0 0
      %2938 = vmatpush1.bf16.msra.mxu0 0
      %2939 = vmatprep.subr.bf16.mxu0 0
      %2940 = vmatpush1.bf16.msra.mxu0 0
      %2941 = vmatprep.subr.bf16.mxu0 0
      %2942 = vmatpush1.bf16.msra.mxu0 0
      %2943 = vmatprep.subr.bf16.mxu0 0
      %2944 = vmatpush1.bf16.msra.mxu0 0
      %2945 = vmatprep.subr.bf16.mxu0 0
      %2946 = vmatpush1.bf16.msra.mxu0 0
      %2947 = vmatprep.subr.bf16.mxu0 0
      %2948 = vmatpush1.bf16.msra.mxu0 0
      %2949 = vmatprep.subr.bf16.mxu0 0
      %2950 = vmatpush1.bf16.msra.mxu0 0
      %2951 = vmatprep.mubr.bf16.mxu0 0
      %2952 = vmatmul.mubr.bf16.gmra.mrb[0].mxu0 %v2685
      %v2953 = vpop.f32.mrb[0].mxu0
      %v2954 = vadd.f32 0.0, %v2953
      %v2955 = vpop.f32.mrb[0].mxu0
      %v2956 = vadd.f32 0.0, %v2955
      %v2957 = vpop.f32.mrb[0].mxu0
      %v2958 = vpop.f32.mrb[0].mxu0
      %2959 = vdwg.mxu0
      %v2960 = vadd.f32 %v2681, %v2913
      %v2961 = vadd.f32 %v2682, %v2915
      %v2962 = vadd.f32 %v2683, %v2954
      %v2963 = vadd.f32 %v2684, %v2956
      %v2964 = vxor.u32 %v2960, 2147483648
      %v2965 = vxor.u32 %v2961, 2147483648
      %v2966 = vxor.u32 %v2962, 2147483648
      %v2967 = vmul.f32 %v2964, 1.442695
      %v2968 = vpow.pop %v2967
      %v2969 = vmul.f32 %v2965, 1.442695
      %v2970 = vpow.pop %v2969
      %v2971 = vmul.f32 %v2966, 1.442695
      %v2972 = vpow.pop %v2971
      %v2973 = vadd.f32 %v2968, 1.0
      %v2974 = vadd.f32 %v2970, 1.0
      %v2975 = vadd.f32 %v2972, 1.0
      %v2976 = vrcp.pop %v2973
      %v2977 = vmul.f32 1.0, %v2976
      %v2978 = vrcp.pop %v2974
      %v2979 = vmul.f32 1.0, %v2978
      %v2980 = vrcp.pop %v2975
      %v2981 = vmul.f32 1.0, %v2980
      %v2982 = vtanh.pop %v2963
      %v2983 = vmul.f32 %v2979, %v2679
      %v2984 = vmul.f32 %v2977, %v2982
      %v2985 = vadd.f32 %v2983, %v2984
      %v2986 = vtanh.pop %v2985
      %v2987 = vmul.f32 %v2981, %v2986
      %v2988 = vstv %s2677
      %vm2989 = vcmp.lt.s32.totalorder %v2988, %v459
      %v2990 = vsel %vm2989, %v2987, %v2678
      %2991 = vst [vmem:[#allocation2] sm:$0xff] %v2990
      %v2992 = vsel %vm2989, %v2985, %v2679
      %2993 = vst [vmem:[#allocation3] sm:$0xff] %v2992
      %s2994 = sadd.s32 %s65, 8
      %v2995 = vld [vmem:[#allocation2] sm:$0xff]
      %v2996 = vld [vmem:[#allocation3] sm:$0xff]
      %s2997 = scalar_lea.vmem [#allocation4], 256
      %v2998 = vld [vmem:[%s2997] sm:$0xff]
      %v2999 = vld [vmem:[%s2997 + $0x8] sm:$0xff]
      %v3000 = vld [vmem:[%s2997 + $0x10] sm:$0xff]
      %v3001 = vld [vmem:[%s2997 + $0x18] sm:$0xff]
      %v3002 = vpack.c.bf16 %v2995, %v2995
      %v3003 = vld [vmem:[#allocation10] sm:$0xff]
      %v3004 = vld [vmem:[#allocation10 + $0x8] sm:$0xff]
      %v3005 = vld [vmem:[#allocation10 + $0x10] sm:$0xff]
      %v3006 = vld [vmem:[#allocation10 + $0x18] sm:$0xff]
      %v3007 = vld [vmem:[#allocation10 + $0x20] sm:$0xff]
      %v3008 = vld [vmem:[#allocation10 + $0x28] sm:$0xff]
      %v3009 = vld [vmem:[#allocation10 + $0x30] sm:$0xff]
      %v3010 = vld [vmem:[#allocation10 + $0x38] sm:$0xff]
      %v3011 = vld [vmem:[#allocation10 + $0x40] sm:$0xff]
      %v3012 = vld [vmem:[#allocation10 + $0x48] sm:$0xff]
      %v3013 = vld [vmem:[#allocation10 + $0x50] sm:$0xff]
      %v3014 = vld [vmem:[#allocation10 + $0x58] sm:$0xff]
      %v3015 = vld [vmem:[#allocation10 + $0x60] sm:$0xff]
      %v3016 = vld [vmem:[#allocation10 + $0x68] sm:$0xff]
      %v3017 = vld [vmem:[#allocation10 + $0x70] sm:$0xff]
      %v3018 = vld [vmem:[#allocation10 + $0x78] sm:$0xff]
      %v3019 = vld [vmem:[#allocation10 + $0x80] sm:$0xff]
      %v3020 = vld [vmem:[#allocation10 + $0x88] sm:$0xff]
      %v3021 = vld [vmem:[#allocation10 + $0x90] sm:$0xff]
      %v3022 = vld [vmem:[#allocation10 + $0x98] sm:$0xff]
      %v3023 = vld [vmem:[#allocation10 + $0xa0] sm:$0xff]
      %v3024 = vld [vmem:[#allocation10 + $0xa8] sm:$0xff]
      %v3025 = vld [vmem:[#allocation10 + $0xb0] sm:$0xff]
      %v3026 = vld [vmem:[#allocation10 + $0xb8] sm:$0xff]
      %v3027 = vld [vmem:[#allocation10 + $0xc0] sm:$0xff]
      %v3028 = vld [vmem:[#allocation10 + $0xc8] sm:$0xff]
      %v3029 = vld [vmem:[#allocation10 + $0xd0] sm:$0xff]
      %v3030 = vld [vmem:[#allocation10 + $0xd8] sm:$0xff]
      %v3031 = vld [vmem:[#allocation10 + $0xe0] sm:$0xff]
      %v3032 = vld [vmem:[#allocation10 + $0xe8] sm:$0xff]
      %v3033 = vld [vmem:[#allocation10 + $0xf0] sm:$0xff]
      %v3034 = vld [vmem:[#allocation10 + $0xf8] sm:$0xff]
      %v3067 = vunpack.c.l.b16 %v3003
      %v3068 = vunpack.c.h.b16 %v3003
      %v3069 = vunpack.c.l.b16 %v3004
      %v3070 = vunpack.c.h.b16 %v3004
      %v3071 = vunpack.c.l.b16 %v3005
      %v3072 = vunpack.c.h.b16 %v3005
      %v3073 = vunpack.c.l.b16 %v3006
      %v3074 = vunpack.c.h.b16 %v3006
      %v3075 = vunpack.c.l.b16 %v3007
      %v3076 = vunpack.c.h.b16 %v3007
      %v3077 = vunpack.c.l.b16 %v3008
      %v3078 = vunpack.c.h.b16 %v3008
      %v3079 = vunpack.c.l.b16 %v3009
      %v3080 = vunpack.c.h.b16 %v3009
      %v3081 = vunpack.c.l.b16 %v3010
      %v3082 = vunpack.c.h.b16 %v3010
      %v3083 = vunpack.c.l.b16 %v3011
      %v3084 = vunpack.c.h.b16 %v3011
      %v3085 = vunpack.c.l.b16 %v3012
      %v3086 = vunpack.c.h.b16 %v3012
      %v3087 = vunpack.c.l.b16 %v3013
      %v3088 = vunpack.c.h.b16 %v3013
      %v3089 = vunpack.c.l.b16 %v3014
      %v3090 = vunpack.c.h.b16 %v3014
      %v3091 = vunpack.c.l.b16 %v3015
      %v3092 = vunpack.c.h.b16 %v3015
      %v3093 = vunpack.c.l.b16 %v3016
      %v3094 = vunpack.c.h.b16 %v3016
      %v3095 = vunpack.c.l.b16 %v3017
      %v3096 = vunpack.c.h.b16 %v3017
      %v3097 = vunpack.c.l.b16 %v3018
      %v3098 = vunpack.c.h.b16 %v3018
      %v3099 = vunpack.c.l.b16 %v3019
      %v3100 = vunpack.c.h.b16 %v3019
      %v3101 = vunpack.c.l.b16 %v3020
      %v3102 = vunpack.c.h.b16 %v3020
      %v3103 = vunpack.c.l.b16 %v3021
      %v3104 = vunpack.c.h.b16 %v3021
      %v3105 = vunpack.c.l.b16 %v3022
      %v3106 = vunpack.c.h.b16 %v3022
      %v3107 = vunpack.c.l.b16 %v3023
      %v3108 = vunpack.c.h.b16 %v3023
      %v3109 = vunpack.c.l.b16 %v3024
      %v3110 = vunpack.c.h.b16 %v3024
      %v3111 = vunpack.c.l.b16 %v3025
      %v3112 = vunpack.c.h.b16 %v3025
      %v3113 = vunpack.c.l.b16 %v3026
      %v3114 = vunpack.c.h.b16 %v3026
      %v3115 = vunpack.c.l.b16 %v3027
      %v3116 = vunpack.c.h.b16 %v3027
      %v3117 = vunpack.c.l.b16 %v3028
      %v3118 = vunpack.c.h.b16 %v3028
      %v3119 = vunpack.c.l.b16 %v3029
      %v3120 = vunpack.c.h.b16 %v3029
      %v3121 = vunpack.c.l.b16 %v3030
      %v3122 = vunpack.c.h.b16 %v3030
      %v3123 = vunpack.c.l.b16 %v3031
      %v3124 = vunpack.c.h.b16 %v3031
      %v3125 = vunpack.c.l.b16 %v3032
      %v3126 = vunpack.c.h.b16 %v3032
      %v3127 = vunpack.c.l.b16 %v3033
      %v3128 = vunpack.c.h.b16 %v3033
      %v3129 = vunpack.c.l.b16 %v3034
      %v3130 = vunpack.c.h.b16 %v3034
      %v3131 = vpack.c.b16 %v3071, %v3067
      %v3132 = vpack.c.b16 %v3072, %v3068
      %v3133 = vpack.c.b16 %v3073, %v3069
      %v3134 = vpack.c.b16 %v3074, %v3070
      %v3135 = vpack.c.b16 %v3079, %v3075
      %v3136 = vpack.c.b16 %v3080, %v3076
      %v3137 = vpack.c.b16 %v3081, %v3077
      %v3138 = vpack.c.b16 %v3082, %v3078
      %v3139 = vpack.c.b16 %v3087, %v3083
      %v3140 = vpack.c.b16 %v3088, %v3084
      %v3141 = vpack.c.b16 %v3089, %v3085
      %v3142 = vpack.c.b16 %v3090, %v3086
      %v3143 = vpack.c.b16 %v3095, %v3091
      %v3144 = vpack.c.b16 %v3096, %v3092
      %v3145 = vpack.c.b16 %v3097, %v3093
      %v3146 = vpack.c.b16 %v3098, %v3094
      %v3147 = vpack.c.b16 %v3103, %v3099
      %v3148 = vpack.c.b16 %v3104, %v3100
      %v3149 = vpack.c.b16 %v3105, %v3101
      %v3150 = vpack.c.b16 %v3106, %v3102
      %v3151 = vpack.c.b16 %v3111, %v3107
      %v3152 = vpack.c.b16 %v3112, %v3108
      %v3153 = vpack.c.b16 %v3113, %v3109
      %v3154 = vpack.c.b16 %v3114, %v3110
      %v3155 = vpack.c.b16 %v3119, %v3115
      %v3156 = vpack.c.b16 %v3120, %v3116
      %v3157 = vpack.c.b16 %v3121, %v3117
      %v3158 = vpack.c.b16 %v3122, %v3118
      %v3159 = vpack.c.b16 %v3127, %v3123
      %v3160 = vpack.c.b16 %v3128, %v3124
      %v3161 = vpack.c.b16 %v3129, %v3125
      %v3162 = vpack.c.b16 %v3130, %v3126
      %3195 = vmatprep.subr.bf16.mxu0 %v3132
      %3196 = vmatpush1.bf16.msra.mxu0 %v3131
      %3197 = vmatprep.subr.bf16.mxu0 %v3136
      %3198 = vmatpush1.bf16.msra.mxu0 %v3135
      %3199 = vmatprep.subr.bf16.mxu0 %v3140
      %3200 = vmatpush1.bf16.msra.mxu0 %v3139
      %3201 = vmatprep.subr.bf16.mxu0 %v3144
      %3202 = vmatpush1.bf16.msra.mxu0 %v3143
      %3203 = vmatprep.subr.bf16.mxu0 %v3148
      %3204 = vmatpush1.bf16.msra.mxu0 %v3147
      %3205 = vmatprep.subr.bf16.mxu0 %v3152
      %3206 = vmatpush1.bf16.msra.mxu0 %v3151
      %3207 = vmatprep.subr.bf16.mxu0 %v3156
      %3208 = vmatpush1.bf16.msra.mxu0 %v3155
      %3209 = vmatprep.subr.bf16.mxu0 %v3160
      %3210 = vmatpush1.bf16.msra.mxu0 %v3159
      %3211 = vmatprep.subr.bf16.mxu0 0
      %3212 = vmatpush1.bf16.msra.mxu0 0
      %3213 = vmatprep.subr.bf16.mxu0 0
      %3214 = vmatpush1.bf16.msra.mxu0 0
      %3215 = vmatprep.subr.bf16.mxu0 0
      %3216 = vmatpush1.bf16.msra.mxu0 0
      %3217 = vmatprep.subr.bf16.mxu0 0
      %3218 = vmatpush1.bf16.msra.mxu0 0
      %3219 = vmatprep.subr.bf16.mxu0 0
      %3220 = vmatpush1.bf16.msra.mxu0 0
      %3221 = vmatprep.subr.bf16.mxu0 0
      %3222 = vmatpush1.bf16.msra.mxu0 0
      %3223 = vmatprep.subr.bf16.mxu0 0
      %3224 = vmatpush1.bf16.msra.mxu0 0
      %3225 = vmatprep.subr.bf16.mxu0 0
      %3226 = vmatpush1.bf16.msra.mxu0 0
      %3227 = vmatprep.mubr.bf16.mxu0 0
      %3228 = vmatmul.mubr.bf16.gmra.mrb[0].mxu0 %v3002
      %v3229 = vpop.f32.mrb[0].mxu0
      %v3230 = vadd.f32 0.0, %v3229
      %v3231 = vpop.f32.mrb[0].mxu0
      %v3232 = vadd.f32 0.0, %v3231
      %v3233 = vpop.f32.mrb[0].mxu0
      %v3234 = vpop.f32.mrb[0].mxu0
      %3235 = vdwg.mxu0
      %3236 = vmatprep.subr.bf16.mxu0 %v3134
      %3237 = vmatpush1.bf16.msra.mxu0 %v3133
      %3238 = vmatprep.subr.bf16.mxu0 %v3138
      %3239 = vmatpush1.bf16.msra.mxu0 %v3137
      %3240 = vmatprep.subr.bf16.mxu0 %v3142
      %3241 = vmatpush1.bf16.msra.mxu0 %v3141
      %3242 = vmatprep.subr.bf16.mxu0 %v3146
      %3243 = vmatpush1.bf16.msra.mxu0 %v3145
      %3244 = vmatprep.subr.bf16.mxu0 %v3150
      %3245 = vmatpush1.bf16.msra.mxu0 %v3149
      %3246 = vmatprep.subr.bf16.mxu0 %v3154
      %3247 = vmatpush1.bf16.msra.mxu0 %v3153
      %3248 = vmatprep.subr.bf16.mxu0 %v3158
      %3249 = vmatpush1.bf16.msra.mxu0 %v3157
      %3250 = vmatprep.subr.bf16.mxu0 %v3162
      %3251 = vmatpush1.bf16.msra.mxu0 %v3161
      %3252 = vmatprep.subr.bf16.mxu0 0
      %3253 = vmatpush1.bf16.msra.mxu0 0
      %3254 = vmatprep.subr.bf16.mxu0 0
      %3255 = vmatpush1.bf16.msra.mxu0 0
      %3256 = vmatprep.subr.bf16.mxu0 0
      %3257 = vmatpush1.bf16.msra.mxu0 0
      %3258 = vmatprep.subr.bf16.mxu0 0
      %3259 = vmatpush1.bf16.msra.mxu0 0
      %3260 = vmatprep.subr.bf16.mxu0 0
      %3261 = vmatpush1.bf16.msra.mxu0 0
      %3262 = vmatprep.subr.bf16.mxu0 0
      %3263 = vmatpush1.bf16.msra.mxu0 0
      %3264 = vmatprep.subr.bf16.mxu0 0
      %3265 = vmatpush1.bf16.msra.mxu0 0
      %3266 = vmatprep.subr.bf16.mxu0 0
      %3267 = vmatpush1.bf16.msra.mxu0 0
      %3268 = vmatprep.mubr.bf16.mxu0 0
      %3269 = vmatmul.mubr.bf16.gmra.mrb[0].mxu0 %v3002
      %v3270 = vpop.f32.mrb[0].mxu0
      %v3271 = vadd.f32 0.0, %v3270
      %v3272 = vpop.f32.mrb[0].mxu0
      %v3273 = vadd.f32 0.0, %v3272
      %v3274 = vpop.f32.mrb[0].mxu0
      %v3275 = vpop.f32.mrb[0].mxu0
      %3276 = vdwg.mxu0
      %v3277 = vadd.f32 %v2998, %v3230
      %v3278 = vadd.f32 %v2999, %v3232
      %v3279 = vadd.f32 %v3000, %v3271
      %v3280 = vadd.f32 %v3001, %v3273
      %v3281 = vxor.u32 %v3277, 2147483648
      %v3282 = vxor.u32 %v3278, 2147483648
      %v3283 = vxor.u32 %v3279, 2147483648
      %v3284 = vmul.f32 %v3281, 1.442695
      %v3285 = vpow.pop %v3284
      %v3286 = vmul.f32 %v3282, 1.442695
      %v3287 = vpow.pop %v3286
      %v3288 = vmul.f32 %v3283, 1.442695
      %v3289 = vpow.pop %v3288
      %v3290 = vadd.f32 %v3285, 1.0
      %v3291 = vadd.f32 %v3287, 1.0
      %v3292 = vadd.f32 %v3289, 1.0
      %v3293 = vrcp.pop %v3290
      %v3294 = vmul.f32 1.0, %v3293
      %v3295 = vrcp.pop %v3291
      %v3296 = vmul.f32 1.0, %v3295
      %v3297 = vrcp.pop %v3292
      %v3298 = vmul.f32 1.0, %v3297
      %v3299 = vtanh.pop %v3280
      %v3300 = vmul.f32 %v3296, %v2996
      %v3301 = vmul.f32 %v3294, %v3299
      %v3302 = vadd.f32 %v3300, %v3301
      %v3303 = vtanh.pop %v3302
      %v3304 = vmul.f32 %v3298, %v3303
      %v3305 = vstv %s2994
      %vm3306 = vcmp.lt.s32.totalorder %v3305, %v459
      %v3307 = vsel %vm3306, %v3304, %v2995
      %3308 = vst [vmem:[#allocation2] sm:$0xff] %v3307
      %v3309 = vsel %vm3306, %v3302, %v2996
      %3310 = vst [vmem:[#allocation3] sm:$0xff] %v3309
      %s3311 = sadd.s32 %s65, 9
      %v3312 = vld [vmem:[#allocation2] sm:$0xff]
      %v3313 = vld [vmem:[#allocation3] sm:$0xff]
      %s3314 = scalar_lea.vmem [#allocation4], 288
      %v3315 = vld [vmem:[%s3314] sm:$0xff]
      %v3316 = vld [vmem:[%s3314 + $0x8] sm:$0xff]
      %v3317 = vld [vmem:[%s3314 + $0x10] sm:$0xff]
      %v3318 = vld [vmem:[%s3314 + $0x18] sm:$0xff]
      %v3319 = vpack.c.bf16 %v3312, %v3312
      %v3320 = vld [vmem:[#allocation10] sm:$0xff]
      %v3321 = vld [vmem:[#allocation10 + $0x8] sm:$0xff]
      %v3322 = vld [vmem:[#allocation10 + $0x10] sm:$0xff]
      %v3323 = vld [vmem:[#allocation10 + $0x18] sm:$0xff]
      %v3324 = vld [vmem:[#allocation10 + $0x20] sm:$0xff]
      %v3325 = vld [vmem:[#allocation10 + $0x28] sm:$0xff]
      %v3326 = vld [vmem:[#allocation10 + $0x30] sm:$0xff]
      %v3327 = vld [vmem:[#allocation10 + $0x38] sm:$0xff]
      %v3328 = vld [vmem:[#allocation10 + $0x40] sm:$0xff]
      %v3329 = vld [vmem:[#allocation10 + $0x48] sm:$0xff]
      %v3330 = vld [vmem:[#allocation10 + $0x50] sm:$0xff]
      %v3331 = vld [vmem:[#allocation10 + $0x58] sm:$0xff]
      %v3332 = vld [vmem:[#allocation10 + $0x60] sm:$0xff]
      %v3333 = vld [vmem:[#allocation10 + $0x68] sm:$0xff]
      %v3334 = vld [vmem:[#allocation10 + $0x70] sm:$0xff]
      %v3335 = vld [vmem:[#allocation10 + $0x78] sm:$0xff]
      %v3336 = vld [vmem:[#allocation10 + $0x80] sm:$0xff]
      %v3337 = vld [vmem:[#allocation10 + $0x88] sm:$0xff]
      %v3338 = vld [vmem:[#allocation10 + $0x90] sm:$0xff]
      %v3339 = vld [vmem:[#allocation10 + $0x98] sm:$0xff]
      %v3340 = vld [vmem:[#allocation10 + $0xa0] sm:$0xff]
      %v3341 = vld [vmem:[#allocation10 + $0xa8] sm:$0xff]
      %v3342 = vld [vmem:[#allocation10 + $0xb0] sm:$0xff]
      %v3343 = vld [vmem:[#allocation10 + $0xb8] sm:$0xff]
      %v3344 = vld [vmem:[#allocation10 + $0xc0] sm:$0xff]
      %v3345 = vld [vmem:[#allocation10 + $0xc8] sm:$0xff]
      %v3346 = vld [vmem:[#allocation10 + $0xd0] sm:$0xff]
      %v3347 = vld [vmem:[#allocation10 + $0xd8] sm:$0xff]
      %v3348 = vld [vmem:[#allocation10 + $0xe0] sm:$0xff]
      %v3349 = vld [vmem:[#allocation10 + $0xe8] sm:$0xff]
      %v3350 = vld [vmem:[#allocation10 + $0xf0] sm:$0xff]
      %v3351 = vld [vmem:[#allocation10 + $0xf8] sm:$0xff]
      %v3384 = vunpack.c.l.b16 %v3320
      %v3385 = vunpack.c.h.b16 %v3320
      %v3386 = vunpack.c.l.b16 %v3321
      %v3387 = vunpack.c.h.b16 %v3321
      %v3388 = vunpack.c.l.b16 %v3322
      %v3389 = vunpack.c.h.b16 %v3322
      %v3390 = vunpack.c.l.b16 %v3323
      %v3391 = vunpack.c.h.b16 %v3323
      %v3392 = vunpack.c.l.b16 %v3324
      %v3393 = vunpack.c.h.b16 %v3324
      %v3394 = vunpack.c.l.b16 %v3325
      %v3395 = vunpack.c.h.b16 %v3325
      %v3396 = vunpack.c.l.b16 %v3326
      %v3397 = vunpack.c.h.b16 %v3326
      %v3398 = vunpack.c.l.b16 %v3327
      %v3399 = vunpack.c.h.b16 %v3327
      %v3400 = vunpack.c.l.b16 %v3328
      %v3401 = vunpack.c.h.b16 %v3328
      %v3402 = vunpack.c.l.b16 %v3329
      %v3403 = vunpack.c.h.b16 %v3329
      %v3404 = vunpack.c.l.b16 %v3330
      %v3405 = vunpack.c.h.b16 %v3330
      %v3406 = vunpack.c.l.b16 %v3331
      %v3407 = vunpack.c.h.b16 %v3331
      %v3408 = vunpack.c.l.b16 %v3332
      %v3409 = vunpack.c.h.b16 %v3332
      %v3410 = vunpack.c.l.b16 %v3333
      %v3411 = vunpack.c.h.b16 %v3333
      %v3412 = vunpack.c.l.b16 %v3334
      %v3413 = vunpack.c.h.b16 %v3334
      %v3414 = vunpack.c.l.b16 %v3335
      %v3415 = vunpack.c.h.b16 %v3335
      %v3416 = vunpack.c.l.b16 %v3336
      %v3417 = vunpack.c.h.b16 %v3336
      %v3418 = vunpack.c.l.b16 %v3337
      %v3419 = vunpack.c.h.b16 %v3337
      %v3420 = vunpack.c.l.b16 %v3338
      %v3421 = vunpack.c.h.b16 %v3338
      %v3422 = vunpack.c.l.b16 %v3339
      %v3423 = vunpack.c.h.b16 %v3339
      %v3424 = vunpack.c.l.b16 %v3340
      %v3425 = vunpack.c.h.b16 %v3340
      %v3426 = vunpack.c.l.b16 %v3341
      %v3427 = vunpack.c.h.b16 %v3341
      %v3428 = vunpack.c.l.b16 %v3342
      %v3429 = vunpack.c.h.b16 %v3342
      %v3430 = vunpack.c.l.b16 %v3343
      %v3431 = vunpack.c.h.b16 %v3343
      %v3432 = vunpack.c.l.b16 %v3344
      %v3433 = vunpack.c.h.b16 %v3344
      %v3434 = vunpack.c.l.b16 %v3345
      %v3435 = vunpack.c.h.b16 %v3345
      %v3436 = vunpack.c.l.b16 %v3346
      %v3437 = vunpack.c.h.b16 %v3346
      %v3438 = vunpack.c.l.b16 %v3347
      %v3439 = vunpack.c.h.b16 %v3347
      %v3440 = vunpack.c.l.b16 %v3348
      %v3441 = vunpack.c.h.b16 %v3348
      %v3442 = vunpack.c.l.b16 %v3349
      %v3443 = vunpack.c.h.b16 %v3349
      %v3444 = vunpack.c.l.b16 %v3350
      %v3445 = vunpack.c.h.b16 %v3350
      %v3446 = vunpack.c.l.b16 %v3351
      %v3447 = vunpack.c.h.b16 %v3351
      %v3448 = vpack.c.b16 %v3388, %v3384
      %v3449 = vpack.c.b16 %v3389, %v3385
      %v3450 = vpack.c.b16 %v3390, %v3386
      %v3451 = vpack.c.b16 %v3391, %v3387
      %v3452 = vpack.c.b16 %v3396, %v3392
      %v3453 = vpack.c.b16 %v3397, %v3393
      %v3454 = vpack.c.b16 %v3398, %v3394
      %v3455 = vpack.c.b16 %v3399, %v3395
      %v3456 = vpack.c.b16 %v3404, %v3400
      %v3457 = vpack.c.b16 %v3405, %v3401
      %v3458 = vpack.c.b16 %v3406, %v3402
      %v3459 = vpack.c.b16 %v3407, %v3403
      %v3460 = vpack.c.b16 %v3412, %v3408
      %v3461 = vpack.c.b16 %v3413, %v3409
      %v3462 = vpack.c.b16 %v3414, %v3410
      %v3463 = vpack.c.b16 %v3415, %v3411
      %v3464 = vpack.c.b16 %v3420, %v3416
      %v3465 = vpack.c.b16 %v3421, %v3417
      %v3466 = vpack.c.b16 %v3422, %v3418
      %v3467 = vpack.c.b16 %v3423, %v3419
      %v3468 = vpack.c.b16 %v3428, %v3424
      %v3469 = vpack.c.b16 %v3429, %v3425
      %v3470 = vpack.c.b16 %v3430, %v3426
      %v3471 = vpack.c.b16 %v3431, %v3427
      %v3472 = vpack.c.b16 %v3436, %v3432
      %v3473 = vpack.c.b16 %v3437, %v3433
      %v3474 = vpack.c.b16 %v3438, %v3434
      %v3475 = vpack.c.b16 %v3439, %v3435
      %v3476 = vpack.c.b16 %v3444, %v3440
      %v3477 = vpack.c.b16 %v3445, %v3441
      %v3478 = vpack.c.b16 %v3446, %v3442
      %v3479 = vpack.c.b16 %v3447, %v3443
      %3512 = vmatprep.subr.bf16.mxu0 %v3449
      %3513 = vmatpush1.bf16.msra.mxu0 %v3448
      %3514 = vmatprep.subr.bf16.mxu0 %v3453
      %3515 = vmatpush1.bf16.msra.mxu0 %v3452
      %3516 = vmatprep.subr.bf16.mxu0 %v3457
      %3517 = vmatpush1.bf16.msra.mxu0 %v3456
      %3518 = vmatprep.subr.bf16.mxu0 %v3461
      %3519 = vmatpush1.bf16.msra.mxu0 %v3460
      %3520 = vmatprep.subr.bf16.mxu0 %v3465
      %3521 = vmatpush1.bf16.msra.mxu0 %v3464
      %3522 = vmatprep.subr.bf16.mxu0 %v3469
      %3523 = vmatpush1.bf16.msra.mxu0 %v3468
      %3524 = vmatprep.subr.bf16.mxu0 %v3473
      %3525 = vmatpush1.bf16.msra.mxu0 %v3472
      %3526 = vmatprep.subr.bf16.mxu0 %v3477
      %3527 = vmatpush1.bf16.msra.mxu0 %v3476
      %3528 = vmatprep.subr.bf16.mxu0 0
      %3529 = vmatpush1.bf16.msra.mxu0 0
      %3530 = vmatprep.subr.bf16.mxu0 0
      %3531 = vmatpush1.bf16.msra.mxu0 0
      %3532 = vmatprep.subr.bf16.mxu0 0
      %3533 = vmatpush1.bf16.msra.mxu0 0
      %3534 = vmatprep.subr.bf16.mxu0 0
      %3535 = vmatpush1.bf16.msra.mxu0 0
      %3536 = vmatprep.subr.bf16.mxu0 0
      %3537 = vmatpush1.bf16.msra.mxu0 0
      %3538 = vmatprep.subr.bf16.mxu0 0
      %3539 = vmatpush1.bf16.msra.mxu0 0
      %3540 = vmatprep.subr.bf16.mxu0 0
      %3541 = vmatpush1.bf16.msra.mxu0 0
      %3542 = vmatprep.subr.bf16.mxu0 0
      %3543 = vmatpush1.bf16.msra.mxu0 0
      %3544 = vmatprep.mubr.bf16.mxu0 0
      %3545 = vmatmul.mubr.bf16.gmra.mrb[0].mxu0 %v3319
      %v3546 = vpop.f32.mrb[0].mxu0
      %v3547 = vadd.f32 0.0, %v3546
      %v3548 = vpop.f32.mrb[0].mxu0
      %v3549 = vadd.f32 0.0, %v3548
      %v3550 = vpop.f32.mrb[0].mxu0
      %v3551 = vpop.f32.mrb[0].mxu0
      %3552 = vdwg.mxu0
      %3553 = vmatprep.subr.bf16.mxu0 %v3451
      %3554 = vmatpush1.bf16.msra.mxu0 %v3450
      %3555 = vmatprep.subr.bf16.mxu0 %v3455
      %3556 = vmatpush1.bf16.msra.mxu0 %v3454
      %3557 = vmatprep.subr.bf16.mxu0 %v3459
      %3558 = vmatpush1.bf16.msra.mxu0 %v3458
      %3559 = vmatprep.subr.bf16.mxu0 %v3463
      %3560 = vmatpush1.bf16.msra.mxu0 %v3462
      %3561 = vmatprep.subr.bf16.mxu0 %v3467
      %3562 = vmatpush1.bf16.msra.mxu0 %v3466
      %3563 = vmatprep.subr.bf16.mxu0 %v3471
      %3564 = vmatpush1.bf16.msra.mxu0 %v3470
      %3565 = vmatprep.subr.bf16.mxu0 %v3475
      %3566 = vmatpush1.bf16.msra.mxu0 %v3474
      %3567 = vmatprep.subr.bf16.mxu0 %v3479
      %3568 = vmatpush1.bf16.msra.mxu0 %v3478
      %3569 = vmatprep.subr.bf16.mxu0 0
      %3570 = vmatpush1.bf16.msra.mxu0 0
      %3571 = vmatprep.subr.bf16.mxu0 0
      %3572 = vmatpush1.bf16.msra.mxu0 0
      %3573 = vmatprep.subr.bf16.mxu0 0
      %3574 = vmatpush1.bf16.msra.mxu0 0
      %3575 = vmatprep.subr.bf16.mxu0 0
      %3576 = vmatpush1.bf16.msra.mxu0 0
      %3577 = vmatprep.subr.bf16.mxu0 0
      %3578 = vmatpush1.bf16.msra.mxu0 0
      %3579 = vmatprep.subr.bf16.mxu0 0
      %3580 = vmatpush1.bf16.msra.mxu0 0
      %3581 = vmatprep.subr.bf16.mxu0 0
      %3582 = vmatpush1.bf16.msra.mxu0 0
      %3583 = vmatprep.subr.bf16.mxu0 0
      %3584 = vmatpush1.bf16.msra.mxu0 0
      %3585 = vmatprep.mubr.bf16.mxu0 0
      %3586 = vmatmul.mubr.bf16.gmra.mrb[0].mxu0 %v3319
      %v3587 = vpop.f32.mrb[0].mxu0
      %v3588 = vadd.f32 0.0, %v3587
      %v3589 = vpop.f32.mrb[0].mxu0
      %v3590 = vadd.f32 0.0, %v3589
      %v3591 = vpop.f32.mrb[0].mxu0
      %v3592 = vpop.f32.mrb[0].mxu0
      %3593 = vdwg.mxu0
      %v3594 = vadd.f32 %v3315, %v3547
      %v3595 = vadd.f32 %v3316, %v3549
      %v3596 = vadd.f32 %v3317, %v3588
      %v3597 = vadd.f32 %v3318, %v3590
      %v3598 = vxor.u32 %v3594, 2147483648
      %v3599 = vxor.u32 %v3595, 2147483648
      %v3600 = vxor.u32 %v3596, 2147483648
      %v3601 = vmul.f32 %v3598, 1.442695
      %v3602 = vpow.pop %v3601
      %v3603 = vmul.f32 %v3599, 1.442695
      %v3604 = vpow.pop %v3603
      %v3605 = vmul.f32 %v3600, 1.442695
      %v3606 = vpow.pop %v3605
      %v3607 = vadd.f32 %v3602, 1.0
      %v3608 = vadd.f32 %v3604, 1.0
      %v3609 = vadd.f32 %v3606, 1.0
      %v3610 = vrcp.pop %v3607
      %v3611 = vmul.f32 1.0, %v3610
      %v3612 = vrcp.pop %v3608
      %v3613 = vmul.f32 1.0, %v3612
      %v3614 = vrcp.pop %v3609
      %v3615 = vmul.f32 1.0, %v3614
      %v3616 = vtanh.pop %v3597
      %v3617 = vmul.f32 %v3613, %v3313
      %v3618 = vmul.f32 %v3611, %v3616
      %v3619 = vadd.f32 %v3617, %v3618
      %v3620 = vtanh.pop %v3619
      %v3621 = vmul.f32 %v3615, %v3620
      %v3622 = vstv %s3311
      %vm3623 = vcmp.lt.s32.totalorder %v3622, %v459
      %v3624 = vsel %vm3623, %v3621, %v3312
      %3625 = vst [vmem:[#allocation2] sm:$0xff] %v3624
      %v3626 = vsel %vm3623, %v3619, %v3313
      %3627 = vst [vmem:[#allocation3] sm:$0xff] %v3626
      %s3628 = sadd.s32 %s65, 10
      %v3629 = vld [vmem:[#allocation2] sm:$0xff]
      %v3630 = vld [vmem:[#allocation3] sm:$0xff]
      %s3631 = scalar_lea.vmem [#allocation4], 320
      %v3632 = vld [vmem:[%s3631] sm:$0xff]
      %v3633 = vld [vmem:[%s3631 + $0x8] sm:$0xff]
      %v3634 = vld [vmem:[%s3631 + $0x10] sm:$0xff]
      %v3635 = vld [vmem:[%s3631 + $0x18] sm:$0xff]
      %v3636 = vpack.c.bf16 %v3629, %v3629
      %v3637 = vld [vmem:[#allocation10] sm:$0xff]
      %v3638 = vld [vmem:[#allocation10 + $0x8] sm:$0xff]
      %v3639 = vld [vmem:[#allocation10 + $0x10] sm:$0xff]
      %v3640 = vld [vmem:[#allocation10 + $0x18] sm:$0xff]
      %v3641 = vld [vmem:[#allocation10 + $0x20] sm:$0xff]
      %v3642 = vld [vmem:[#allocation10 + $0x28] sm:$0xff]
      %v3643 = vld [vmem:[#allocation10 + $0x30] sm:$0xff]
      %v3644 = vld [vmem:[#allocation10 + $0x38] sm:$0xff]
      %v3645 = vld [vmem:[#allocation10 + $0x40] sm:$0xff]
      %v3646 = vld [vmem:[#allocation10 + $0x48] sm:$0xff]
      %v3647 = vld [vmem:[#allocation10 + $0x50] sm:$0xff]
      %v3648 = vld [vmem:[#allocation10 + $0x58] sm:$0xff]
      %v3649 = vld [vmem:[#allocation10 + $0x60] sm:$0xff]
      %v3650 = vld [vmem:[#allocation10 + $0x68] sm:$0xff]
      %v3651 = vld [vmem:[#allocation10 + $0x70] sm:$0xff]
      %v3652 = vld [vmem:[#allocation10 + $0x78] sm:$0xff]
      %v3653 = vld [vmem:[#allocation10 + $0x80] sm:$0xff]
      %v3654 = vld [vmem:[#allocation10 + $0x88] sm:$0xff]
      %v3655 = vld [vmem:[#allocation10 + $0x90] sm:$0xff]
      %v3656 = vld [vmem:[#allocation10 + $0x98] sm:$0xff]
      %v3657 = vld [vmem:[#allocation10 + $0xa0] sm:$0xff]
      %v3658 = vld [vmem:[#allocation10 + $0xa8] sm:$0xff]
      %v3659 = vld [vmem:[#allocation10 + $0xb0] sm:$0xff]
      %v3660 = vld [vmem:[#allocation10 + $0xb8] sm:$0xff]
      %v3661 = vld [vmem:[#allocation10 + $0xc0] sm:$0xff]
      %v3662 = vld [vmem:[#allocation10 + $0xc8] sm:$0xff]
      %v3663 = vld [vmem:[#allocation10 + $0xd0] sm:$0xff]
      %v3664 = vld [vmem:[#allocation10 + $0xd8] sm:$0xff]
      %v3665 = vld [vmem:[#allocation10 + $0xe0] sm:$0xff]
      %v3666 = vld [vmem:[#allocation10 + $0xe8] sm:$0xff]
      %v3667 = vld [vmem:[#allocation10 + $0xf0] sm:$0xff]
      %v3668 = vld [vmem:[#allocation10 + $0xf8] sm:$0xff]
      %v3701 = vunpack.c.l.b16 %v3637
      %v3702 = vunpack.c.h.b16 %v3637
      %v3703 = vunpack.c.l.b16 %v3638
      %v3704 = vunpack.c.h.b16 %v3638
      %v3705 = vunpack.c.l.b16 %v3639
      %v3706 = vunpack.c.h.b16 %v3639
      %v3707 = vunpack.c.l.b16 %v3640
      %v3708 = vunpack.c.h.b16 %v3640
      %v3709 = vunpack.c.l.b16 %v3641
      %v3710 = vunpack.c.h.b16 %v3641
      %v3711 = vunpack.c.l.b16 %v3642
      %v3712 = vunpack.c.h.b16 %v3642
      %v3713 = vunpack.c.l.b16 %v3643
      %v3714 = vunpack.c.h.b16 %v3643
      %v3715 = vunpack.c.l.b16 %v3644
      %v3716 = vunpack.c.h.b16 %v3644
      %v3717 = vunpack.c.l.b16 %v3645
      %v3718 = vunpack.c.h.b16 %v3645
      %v3719 = vunpack.c.l.b16 %v3646
      %v3720 = vunpack.c.h.b16 %v3646
      %v3721 = vunpack.c.l.b16 %v3647
      %v3722 = vunpack.c.h.b16 %v3647
      %v3723 = vunpack.c.l.b16 %v3648
      %v3724 = vunpack.c.h.b16 %v3648
      %v3725 = vunpack.c.l.b16 %v3649
      %v3726 = vunpack.c.h.b16 %v3649
      %v3727 = vunpack.c.l.b16 %v3650
      %v3728 = vunpack.c.h.b16 %v3650
      %v3729 = vunpack.c.l.b16 %v3651
      %v3730 = vunpack.c.h.b16 %v3651
      %v3731 = vunpack.c.l.b16 %v3652
      %v3732 = vunpack.c.h.b16 %v3652
      %v3733 = vunpack.c.l.b16 %v3653
      %v3734 = vunpack.c.h.b16 %v3653
      %v3735 = vunpack.c.l.b16 %v3654
      %v3736 = vunpack.c.h.b16 %v3654
      %v3737 = vunpack.c.l.b16 %v3655
      %v3738 = vunpack.c.h.b16 %v3655
      %v3739 = vunpack.c.l.b16 %v3656
      %v3740 = vunpack.c.h.b16 %v3656
      %v3741 = vunpack.c.l.b16 %v3657
      %v3742 = vunpack.c.h.b16 %v3657
      %v3743 = vunpack.c.l.b16 %v3658
      %v3744 = vunpack.c.h.b16 %v3658
      %v3745 = vunpack.c.l.b16 %v3659
      %v3746 = vunpack.c.h.b16 %v3659
      %v3747 = vunpack.c.l.b16 %v3660
      %v3748 = vunpack.c.h.b16 %v3660
      %v3749 = vunpack.c.l.b16 %v3661
      %v3750 = vunpack.c.h.b16 %v3661
      %v3751 = vunpack.c.l.b16 %v3662
      %v3752 = vunpack.c.h.b16 %v3662
      %v3753 = vunpack.c.l.b16 %v3663
      %v3754 = vunpack.c.h.b16 %v3663
      %v3755 = vunpack.c.l.b16 %v3664
      %v3756 = vunpack.c.h.b16 %v3664
      %v3757 = vunpack.c.l.b16 %v3665
      %v3758 = vunpack.c.h.b16 %v3665
      %v3759 = vunpack.c.l.b16 %v3666
      %v3760 = vunpack.c.h.b16 %v3666
      %v3761 = vunpack.c.l.b16 %v3667
      %v3762 = vunpack.c.h.b16 %v3667
      %v3763 = vunpack.c.l.b16 %v3668
      %v3764 = vunpack.c.h.b16 %v3668
      %v3765 = vpack.c.b16 %v3705, %v3701
      %v3766 = vpack.c.b16 %v3706, %v3702
      %v3767 = vpack.c.b16 %v3707, %v3703
      %v3768 = vpack.c.b16 %v3708, %v3704
      %v3769 = vpack.c.b16 %v3713, %v3709
      %v3770 = vpack.c.b16 %v3714, %v3710
      %v3771 = vpack.c.b16 %v3715, %v3711
      %v3772 = vpack.c.b16 %v3716, %v3712
      %v3773 = vpack.c.b16 %v3721, %v3717
      %v3774 = vpack.c.b16 %v3722, %v3718
      %v3775 = vpack.c.b16 %v3723, %v3719
      %v3776 = vpack.c.b16 %v3724, %v3720
      %v3777 = vpack.c.b16 %v3729, %v3725
      %v3778 = vpack.c.b16 %v3730, %v3726
      %v3779 = vpack.c.b16 %v3731, %v3727
      %v3780 = vpack.c.b16 %v3732, %v3728
      %v3781 = vpack.c.b16 %v3737, %v3733
      %v3782 = vpack.c.b16 %v3738, %v3734
      %v3783 = vpack.c.b16 %v3739, %v3735
      %v3784 = vpack.c.b16 %v3740, %v3736
      %v3785 = vpack.c.b16 %v3745, %v3741
      %v3786 = vpack.c.b16 %v3746, %v3742
      %v3787 = vpack.c.b16 %v3747, %v3743
      %v3788 = vpack.c.b16 %v3748, %v3744
      %v3789 = vpack.c.b16 %v3753, %v3749
      %v3790 = vpack.c.b16 %v3754, %v3750
      %v3791 = vpack.c.b16 %v3755, %v3751
      %v3792 = vpack.c.b16 %v3756, %v3752
      %v3793 = vpack.c.b16 %v3761, %v3757
      %v3794 = vpack.c.b16 %v3762, %v3758
      %v3795 = vpack.c.b16 %v3763, %v3759
      %v3796 = vpack.c.b16 %v3764, %v3760
      %3829 = vmatprep.subr.bf16.mxu0 %v3766
      %3830 = vmatpush1.bf16.msra.mxu0 %v3765
      %3831 = vmatprep.subr.bf16.mxu0 %v3770
      %3832 = vmatpush1.bf16.msra.mxu0 %v3769
      %3833 = vmatprep.subr.bf16.mxu0 %v3774
      %3834 = vmatpush1.bf16.msra.mxu0 %v3773
      %3835 = vmatprep.subr.bf16.mxu0 %v3778
      %3836 = vmatpush1.bf16.msra.mxu0 %v3777
      %3837 = vmatprep.subr.bf16.mxu0 %v3782
      %3838 = vmatpush1.bf16.msra.mxu0 %v3781
      %3839 = vmatprep.subr.bf16.mxu0 %v3786
      %3840 = vmatpush1.bf16.msra.mxu0 %v3785
      %3841 = vmatprep.subr.bf16.mxu0 %v3790
      %3842 = vmatpush1.bf16.msra.mxu0 %v3789
      %3843 = vmatprep.subr.bf16.mxu0 %v3794
      %3844 = vmatpush1.bf16.msra.mxu0 %v3793
      %3845 = vmatprep.subr.bf16.mxu0 0
      %3846 = vmatpush1.bf16.msra.mxu0 0
      %3847 = vmatprep.subr.bf16.mxu0 0
      %3848 = vmatpush1.bf16.msra.mxu0 0
      %3849 = vmatprep.subr.bf16.mxu0 0
      %3850 = vmatpush1.bf16.msra.mxu0 0
      %3851 = vmatprep.subr.bf16.mxu0 0
      %3852 = vmatpush1.bf16.msra.mxu0 0
      %3853 = vmatprep.subr.bf16.mxu0 0
      %3854 = vmatpush1.bf16.msra.mxu0 0
      %3855 = vmatprep.subr.bf16.mxu0 0
      %3856 = vmatpush1.bf16.msra.mxu0 0
      %3857 = vmatprep.subr.bf16.mxu0 0
      %3858 = vmatpush1.bf16.msra.mxu0 0
      %3859 = vmatprep.subr.bf16.mxu0 0
      %3860 = vmatpush1.bf16.msra.mxu0 0
      %3861 = vmatprep.mubr.bf16.mxu0 0
      %3862 = vmatmul.mubr.bf16.gmra.mrb[0].mxu0 %v3636
      %v3863 = vpop.f32.mrb[0].mxu0
      %v3864 = vadd.f32 0.0, %v3863
      %v3865 = vpop.f32.mrb[0].mxu0
      %v3866 = vadd.f32 0.0, %v3865
      %v3867 = vpop.f32.mrb[0].mxu0
      %v3868 = vpop.f32.mrb[0].mxu0
      %3869 = vdwg.mxu0
      %3870 = vmatprep.subr.bf16.mxu0 %v3768
      %3871 = vmatpush1.bf16.msra.mxu0 %v3767
      %3872 = vmatprep.subr.bf16.mxu0 %v3772
      %3873 = vmatpush1.bf16.msra.mxu0 %v3771
      %3874 = vmatprep.subr.bf16.mxu0 %v3776
      %3875 = vmatpush1.bf16.msra.mxu0 %v3775
      %3876 = vmatprep.subr.bf16.mxu0 %v3780
      %3877 = vmatpush1.bf16.msra.mxu0 %v3779
      %3878 = vmatprep.subr.bf16.mxu0 %v3784
      %3879 = vmatpush1.bf16.msra.mxu0 %v3783
      %3880 = vmatprep.subr.bf16.mxu0 %v3788
      %3881 = vmatpush1.bf16.msra.mxu0 %v3787
      %3882 = vmatprep.subr.bf16.mxu0 %v3792
      %3883 = vmatpush1.bf16.msra.mxu0 %v3791
      %3884 = vmatprep.subr.bf16.mxu0 %v3796
      %3885 = vmatpush1.bf16.msra.mxu0 %v3795
      %3886 = vmatprep.subr.bf16.mxu0 0
      %3887 = vmatpush1.bf16.msra.mxu0 0
      %3888 = vmatprep.subr.bf16.mxu0 0
      %3889 = vmatpush1.bf16.msra.mxu0 0
      %3890 = vmatprep.subr.bf16.mxu0 0
      %3891 = vmatpush1.bf16.msra.mxu0 0
      %3892 = vmatprep.subr.bf16.mxu0 0
      %3893 = vmatpush1.bf16.msra.mxu0 0
      %3894 = vmatprep.subr.bf16.mxu0 0
      %3895 = vmatpush1.bf16.msra.mxu0 0
      %3896 = vmatprep.subr.bf16.mxu0 0
      %3897 = vmatpush1.bf16.msra.mxu0 0
      %3898 = vmatprep.subr.bf16.mxu0 0
      %3899 = vmatpush1.bf16.msra.mxu0 0
      %3900 = vmatprep.subr.bf16.mxu0 0
      %3901 = vmatpush1.bf16.msra.mxu0 0
      %3902 = vmatprep.mubr.bf16.mxu0 0
      %3903 = vmatmul.mubr.bf16.gmra.mrb[0].mxu0 %v3636
      %v3904 = vpop.f32.mrb[0].mxu0
      %v3905 = vadd.f32 0.0, %v3904
      %v3906 = vpop.f32.mrb[0].mxu0
      %v3907 = vadd.f32 0.0, %v3906
      %v3908 = vpop.f32.mrb[0].mxu0
      %v3909 = vpop.f32.mrb[0].mxu0
      %3910 = vdwg.mxu0
      %v3911 = vadd.f32 %v3632, %v3864
      %v3912 = vadd.f32 %v3633, %v3866
      %v3913 = vadd.f32 %v3634, %v3905
      %v3914 = vadd.f32 %v3635, %v3907
      %v3915 = vxor.u32 %v3911, 2147483648
      %v3916 = vxor.u32 %v3912, 2147483648
      %v3917 = vxor.u32 %v3913, 2147483648
      %v3918 = vmul.f32 %v3915, 1.442695
      %v3919 = vpow.pop %v3918
      %v3920 = vmul.f32 %v3916, 1.442695
      %v3921 = vpow.pop %v3920
      %v3922 = vmul.f32 %v3917, 1.442695
      %v3923 = vpow.pop %v3922
      %v3924 = vadd.f32 %v3919, 1.0
      %v3925 = vadd.f32 %v3921, 1.0
      %v3926 = vadd.f32 %v3923, 1.0
      %v3927 = vrcp.pop %v3924
      %v3928 = vmul.f32 1.0, %v3927
      %v3929 = vrcp.pop %v3925
      %v3930 = vmul.f32 1.0, %v3929
      %v3931 = vrcp.pop %v3926
      %v3932 = vmul.f32 1.0, %v3931
      %v3933 = vtanh.pop %v3914
      %v3934 = vmul.f32 %v3930, %v3630
      %v3935 = vmul.f32 %v3928, %v3933
      %v3936 = vadd.f32 %v3934, %v3935
      %v3937 = vtanh.pop %v3936
      %v3938 = vmul.f32 %v3932, %v3937
      %v3939 = vstv %s3628
      %vm3940 = vcmp.lt.s32.totalorder %v3939, %v459
      %v3941 = vsel %vm3940, %v3938, %v3629
      %3942 = vst [vmem:[#allocation2] sm:$0xff] %v3941
      %v3943 = vsel %vm3940, %v3936, %v3630
      %3944 = vst [vmem:[#allocation3] sm:$0xff] %v3943
      %s3945 = sadd.s32 %s65, 11
      %v3946 = vld [vmem:[#allocation2] sm:$0xff]
      %v3947 = vld [vmem:[#allocation3] sm:$0xff]
      %s3948 = scalar_lea.vmem [#allocation4], 352
      %v3949 = vld [vmem:[%s3948] sm:$0xff]
      %v3950 = vld [vmem:[%s3948 + $0x8] sm:$0xff]
      %v3951 = vld [vmem:[%s3948 + $0x10] sm:$0xff]
      %v3952 = vld [vmem:[%s3948 + $0x18] sm:$0xff]
      %v3953 = vpack.c.bf16 %v3946, %v3946
      %v3954 = vld [vmem:[#allocation10] sm:$0xff]
      %v3955 = vld [vmem:[#allocation10 + $0x8] sm:$0xff]
      %v3956 = vld [vmem:[#allocation10 + $0x10] sm:$0xff]
      %v3957 = vld [vmem:[#allocation10 + $0x18] sm:$0xff]
      %v3958 = vld [vmem:[#allocation10 + $0x20] sm:$0xff]
      %v3959 = vld [vmem:[#allocation10 + $0x28] sm:$0xff]
      %v3960 = vld [vmem:[#allocation10 + $0x30] sm:$0xff]
      %v3961 = vld [vmem:[#allocation10 + $0x38] sm:$0xff]
      %v3962 = vld [vmem:[#allocation10 + $0x40] sm:$0xff]
      %v3963 = vld [vmem:[#allocation10 + $0x48] sm:$0xff]
      %v3964 = vld [vmem:[#allocation10 + $0x50] sm:$0xff]
      %v3965 = vld [vmem:[#allocation10 + $0x58] sm:$0xff]
      %v3966 = vld [vmem:[#allocation10 + $0x60] sm:$0xff]
      %v3967 = vld [vmem:[#allocation10 + $0x68] sm:$0xff]
      %v3968 = vld [vmem:[#allocation10 + $0x70] sm:$0xff]
      %v3969 = vld [vmem:[#allocation10 + $0x78] sm:$0xff]
      %v3970 = vld [vmem:[#allocation10 + $0x80] sm:$0xff]
      %v3971 = vld [vmem:[#allocation10 + $0x88] sm:$0xff]
      %v3972 = vld [vmem:[#allocation10 + $0x90] sm:$0xff]
      %v3973 = vld [vmem:[#allocation10 + $0x98] sm:$0xff]
      %v3974 = vld [vmem:[#allocation10 + $0xa0] sm:$0xff]
      %v3975 = vld [vmem:[#allocation10 + $0xa8] sm:$0xff]
      %v3976 = vld [vmem:[#allocation10 + $0xb0] sm:$0xff]
      %v3977 = vld [vmem:[#allocation10 + $0xb8] sm:$0xff]
      %v3978 = vld [vmem:[#allocation10 + $0xc0] sm:$0xff]
      %v3979 = vld [vmem:[#allocation10 + $0xc8] sm:$0xff]
      %v3980 = vld [vmem:[#allocation10 + $0xd0] sm:$0xff]
      %v3981 = vld [vmem:[#allocation10 + $0xd8] sm:$0xff]
      %v3982 = vld [vmem:[#allocation10 + $0xe0] sm:$0xff]
      %v3983 = vld [vmem:[#allocation10 + $0xe8] sm:$0xff]
      %v3984 = vld [vmem:[#allocation10 + $0xf0] sm:$0xff]
      %v3985 = vld [vmem:[#allocation10 + $0xf8] sm:$0xff]
      %v4018 = vunpack.c.l.b16 %v3954
      %v4019 = vunpack.c.h.b16 %v3954
      %v4020 = vunpack.c.l.b16 %v3955
      %v4021 = vunpack.c.h.b16 %v3955
      %v4022 = vunpack.c.l.b16 %v3956
      %v4023 = vunpack.c.h.b16 %v3956
      %v4024 = vunpack.c.l.b16 %v3957
      %v4025 = vunpack.c.h.b16 %v3957
      %v4026 = vunpack.c.l.b16 %v3958
      %v4027 = vunpack.c.h.b16 %v3958
      %v4028 = vunpack.c.l.b16 %v3959
      %v4029 = vunpack.c.h.b16 %v3959
      %v4030 = vunpack.c.l.b16 %v3960
      %v4031 = vunpack.c.h.b16 %v3960
      %v4032 = vunpack.c.l.b16 %v3961
      %v4033 = vunpack.c.h.b16 %v3961
      %v4034 = vunpack.c.l.b16 %v3962
      %v4035 = vunpack.c.h.b16 %v3962
      %v4036 = vunpack.c.l.b16 %v3963
      %v4037 = vunpack.c.h.b16 %v3963
      %v4038 = vunpack.c.l.b16 %v3964
      %v4039 = vunpack.c.h.b16 %v3964
      %v4040 = vunpack.c.l.b16 %v3965
      %v4041 = vunpack.c.h.b16 %v3965
      %v4042 = vunpack.c.l.b16 %v3966
      %v4043 = vunpack.c.h.b16 %v3966
      %v4044 = vunpack.c.l.b16 %v3967
      %v4045 = vunpack.c.h.b16 %v3967
      %v4046 = vunpack.c.l.b16 %v3968
      %v4047 = vunpack.c.h.b16 %v3968
      %v4048 = vunpack.c.l.b16 %v3969
      %v4049 = vunpack.c.h.b16 %v3969
      %v4050 = vunpack.c.l.b16 %v3970
      %v4051 = vunpack.c.h.b16 %v3970
      %v4052 = vunpack.c.l.b16 %v3971
      %v4053 = vunpack.c.h.b16 %v3971
      %v4054 = vunpack.c.l.b16 %v3972
      %v4055 = vunpack.c.h.b16 %v3972
      %v4056 = vunpack.c.l.b16 %v3973
      %v4057 = vunpack.c.h.b16 %v3973
      %v4058 = vunpack.c.l.b16 %v3974
      %v4059 = vunpack.c.h.b16 %v3974
      %v4060 = vunpack.c.l.b16 %v3975
      %v4061 = vunpack.c.h.b16 %v3975
      %v4062 = vunpack.c.l.b16 %v3976
      %v4063 = vunpack.c.h.b16 %v3976
      %v4064 = vunpack.c.l.b16 %v3977
      %v4065 = vunpack.c.h.b16 %v3977
      %v4066 = vunpack.c.l.b16 %v3978
      %v4067 = vunpack.c.h.b16 %v3978
      %v4068 = vunpack.c.l.b16 %v3979
      %v4069 = vunpack.c.h.b16 %v3979
      %v4070 = vunpack.c.l.b16 %v3980
      %v4071 = vunpack.c.h.b16 %v3980
      %v4072 = vunpack.c.l.b16 %v3981
      %v4073 = vunpack.c.h.b16 %v3981
      %v4074 = vunpack.c.l.b16 %v3982
      %v4075 = vunpack.c.h.b16 %v3982
      %v4076 = vunpack.c.l.b16 %v3983
      %v4077 = vunpack.c.h.b16 %v3983
      %v4078 = vunpack.c.l.b16 %v3984
      %v4079 = vunpack.c.h.b16 %v3984
      %v4080 = vunpack.c.l.b16 %v3985
      %v4081 = vunpack.c.h.b16 %v3985
      %v4082 = vpack.c.b16 %v4022, %v4018
      %v4083 = vpack.c.b16 %v4023, %v4019
      %v4084 = vpack.c.b16 %v4024, %v4020
      %v4085 = vpack.c.b16 %v4025, %v4021
      %v4086 = vpack.c.b16 %v4030, %v4026
      %v4087 = vpack.c.b16 %v4031, %v4027
      %v4088 = vpack.c.b16 %v4032, %v4028
      %v4089 = vpack.c.b16 %v4033, %v4029
      %v4090 = vpack.c.b16 %v4038, %v4034
      %v4091 = vpack.c.b16 %v4039, %v4035
      %v4092 = vpack.c.b16 %v4040, %v4036
      %v4093 = vpack.c.b16 %v4041, %v4037
      %v4094 = vpack.c.b16 %v4046, %v4042
      %v4095 = vpack.c.b16 %v4047, %v4043
      %v4096 = vpack.c.b16 %v4048, %v4044
      %v4097 = vpack.c.b16 %v4049, %v4045
      %v4098 = vpack.c.b16 %v4054, %v4050
      %v4099 = vpack.c.b16 %v4055, %v4051
      %v4100 = vpack.c.b16 %v4056, %v4052
      %v4101 = vpack.c.b16 %v4057, %v4053
      %v4102 = vpack.c.b16 %v4062, %v4058
      %v4103 = vpack.c.b16 %v4063, %v4059
      %v4104 = vpack.c.b16 %v4064, %v4060
      %v4105 = vpack.c.b16 %v4065, %v4061
      %v4106 = vpack.c.b16 %v4070, %v4066
      %v4107 = vpack.c.b16 %v4071, %v4067
      %v4108 = vpack.c.b16 %v4072, %v4068
      %v4109 = vpack.c.b16 %v4073, %v4069
      %v4110 = vpack.c.b16 %v4078, %v4074
      %v4111 = vpack.c.b16 %v4079, %v4075
      %v4112 = vpack.c.b16 %v4080, %v4076
      %v4113 = vpack.c.b16 %v4081, %v4077
      %4146 = vmatprep.subr.bf16.mxu0 %v4083
      %4147 = vmatpush1.bf16.msra.mxu0 %v4082
      %4148 = vmatprep.subr.bf16.mxu0 %v4087
      %4149 = vmatpush1.bf16.msra.mxu0 %v4086
      %4150 = vmatprep.subr.bf16.mxu0 %v4091
      %4151 = vmatpush1.bf16.msra.mxu0 %v4090
      %4152 = vmatprep.subr.bf16.mxu0 %v4095
      %4153 = vmatpush1.bf16.msra.mxu0 %v4094
      %4154 = vmatprep.subr.bf16.mxu0 %v4099
      %4155 = vmatpush1.bf16.msra.mxu0 %v4098
      %4156 = vmatprep.subr.bf16.mxu0 %v4103
      %4157 = vmatpush1.bf16.msra.mxu0 %v4102
      %4158 = vmatprep.subr.bf16.mxu0 %v4107
      %4159 = vmatpush1.bf16.msra.mxu0 %v4106
      %4160 = vmatprep.subr.bf16.mxu0 %v4111
      %4161 = vmatpush1.bf16.msra.mxu0 %v4110
      %4162 = vmatprep.subr.bf16.mxu0 0
      %4163 = vmatpush1.bf16.msra.mxu0 0
      %4164 = vmatprep.subr.bf16.mxu0 0
      %4165 = vmatpush1.bf16.msra.mxu0 0
      %4166 = vmatprep.subr.bf16.mxu0 0
      %4167 = vmatpush1.bf16.msra.mxu0 0
      %4168 = vmatprep.subr.bf16.mxu0 0
      %4169 = vmatpush1.bf16.msra.mxu0 0
      %4170 = vmatprep.subr.bf16.mxu0 0
      %4171 = vmatpush1.bf16.msra.mxu0 0
      %4172 = vmatprep.subr.bf16.mxu0 0
      %4173 = vmatpush1.bf16.msra.mxu0 0
      %4174 = vmatprep.subr.bf16.mxu0 0
      %4175 = vmatpush1.bf16.msra.mxu0 0
      %4176 = vmatprep.subr.bf16.mxu0 0
      %4177 = vmatpush1.bf16.msra.mxu0 0
      %4178 = vmatprep.mubr.bf16.mxu0 0
      %4179 = vmatmul.mubr.bf16.gmra.mrb[0].mxu0 %v3953
      %v4180 = vpop.f32.mrb[0].mxu0
      %v4181 = vadd.f32 0.0, %v4180
      %v4182 = vpop.f32.mrb[0].mxu0
      %v4183 = vadd.f32 0.0, %v4182
      %v4184 = vpop.f32.mrb[0].mxu0
      %v4185 = vpop.f32.mrb[0].mxu0
      %4186 = vdwg.mxu0
      %4187 = vmatprep.subr.bf16.mxu0 %v4085
      %4188 = vmatpush1.bf16.msra.mxu0 %v4084
      %4189 = vmatprep.subr.bf16.mxu0 %v4089
      %4190 = vmatpush1.bf16.msra.mxu0 %v4088
      %4191 = vmatprep.subr.bf16.mxu0 %v4093
      %4192 = vmatpush1.bf16.msra.mxu0 %v4092
      %4193 = vmatprep.subr.bf16.mxu0 %v4097
      %4194 = vmatpush1.bf16.msra.mxu0 %v4096
      %4195 = vmatprep.subr.bf16.mxu0 %v4101
      %4196 = vmatpush1.bf16.msra.mxu0 %v4100
      %4197 = vmatprep.subr.bf16.mxu0 %v4105
      %4198 = vmatpush1.bf16.msra.mxu0 %v4104
      %4199 = vmatprep.subr.bf16.mxu0 %v4109
      %4200 = vmatpush1.bf16.msra.mxu0 %v4108
      %4201 = vmatprep.subr.bf16.mxu0 %v4113
      %4202 = vmatpush1.bf16.msra.mxu0 %v4112
      %4203 = vmatprep.subr.bf16.mxu0 0
      %4204 = vmatpush1.bf16.msra.mxu0 0
      %4205 = vmatprep.subr.bf16.mxu0 0
      %4206 = vmatpush1.bf16.msra.mxu0 0
      %4207 = vmatprep.subr.bf16.mxu0 0
      %4208 = vmatpush1.bf16.msra.mxu0 0
      %4209 = vmatprep.subr.bf16.mxu0 0
      %4210 = vmatpush1.bf16.msra.mxu0 0
      %4211 = vmatprep.subr.bf16.mxu0 0
      %4212 = vmatpush1.bf16.msra.mxu0 0
      %4213 = vmatprep.subr.bf16.mxu0 0
      %4214 = vmatpush1.bf16.msra.mxu0 0
      %4215 = vmatprep.subr.bf16.mxu0 0
      %4216 = vmatpush1.bf16.msra.mxu0 0
      %4217 = vmatprep.subr.bf16.mxu0 0
      %4218 = vmatpush1.bf16.msra.mxu0 0
      %4219 = vmatprep.mubr.bf16.mxu0 0
      %4220 = vmatmul.mubr.bf16.gmra.mrb[0].mxu0 %v3953
      %v4221 = vpop.f32.mrb[0].mxu0
      %v4222 = vadd.f32 0.0, %v4221
      %v4223 = vpop.f32.mrb[0].mxu0
      %v4224 = vadd.f32 0.0, %v4223
      %v4225 = vpop.f32.mrb[0].mxu0
      %v4226 = vpop.f32.mrb[0].mxu0
      %4227 = vdwg.mxu0
      %v4228 = vadd.f32 %v3949, %v4181
      %v4229 = vadd.f32 %v3950, %v4183
      %v4230 = vadd.f32 %v3951, %v4222
      %v4231 = vadd.f32 %v3952, %v4224
      %v4232 = vxor.u32 %v4228, 2147483648
      %v4233 = vxor.u32 %v4229, 2147483648
      %v4234 = vxor.u32 %v4230, 2147483648
      %v4235 = vmul.f32 %v4232, 1.442695
      %v4236 = vpow.pop %v4235
      %v4237 = vmul.f32 %v4233, 1.442695
      %v4238 = vpow.pop %v4237
      %v4239 = vmul.f32 %v4234, 1.442695
      %v4240 = vpow.pop %v4239
      %v4241 = vadd.f32 %v4236, 1.0
      %v4242 = vadd.f32 %v4238, 1.0
      %v4243 = vadd.f32 %v4240, 1.0
      %v4244 = vrcp.pop %v4241
      %v4245 = vmul.f32 1.0, %v4244
      %v4246 = vrcp.pop %v4242
      %v4247 = vmul.f32 1.0, %v4246
      %v4248 = vrcp.pop %v4243
      %v4249 = vmul.f32 1.0, %v4248
      %v4250 = vtanh.pop %v4231
      %v4251 = vmul.f32 %v4247, %v3947
      %v4252 = vmul.f32 %v4245, %v4250
      %v4253 = vadd.f32 %v4251, %v4252
      %v4254 = vtanh.pop %v4253
      %v4255 = vmul.f32 %v4249, %v4254
      %v4256 = vstv %s3945
      %vm4257 = vcmp.lt.s32.totalorder %v4256, %v459
      %v4258 = vsel %vm4257, %v4255, %v3946
      %4259 = vst [vmem:[#allocation2] sm:$0xff] %v4258
      %v4260 = vsel %vm4257, %v4253, %v3947
      %4261 = vst [vmem:[#allocation3] sm:$0xff] %v4260
      %s4262 = sadd.s32 %s65, 12
      %v4263 = vld [vmem:[#allocation2] sm:$0xff]
      %v4264 = vld [vmem:[#allocation3] sm:$0xff]
      %s4265 = scalar_lea.vmem [#allocation4], 384
      %v4266 = vld [vmem:[%s4265] sm:$0xff]
      %v4267 = vld [vmem:[%s4265 + $0x8] sm:$0xff]
      %v4268 = vld [vmem:[%s4265 + $0x10] sm:$0xff]
      %v4269 = vld [vmem:[%s4265 + $0x18] sm:$0xff]
      %v4270 = vpack.c.bf16 %v4263, %v4263
      %v4271 = vld [vmem:[#allocation10] sm:$0xff]
      %v4272 = vld [vmem:[#allocation10 + $0x8] sm:$0xff]
      %v4273 = vld [vmem:[#allocation10 + $0x10] sm:$0xff]
      %v4274 = vld [vmem:[#allocation10 + $0x18] sm:$0xff]
      %v4275 = vld [vmem:[#allocation10 + $0x20] sm:$0xff]
      %v4276 = vld [vmem:[#allocation10 + $0x28] sm:$0xff]
      %v4277 = vld [vmem:[#allocation10 + $0x30] sm:$0xff]
      %v4278 = vld [vmem:[#allocation10 + $0x38] sm:$0xff]
      %v4279 = vld [vmem:[#allocation10 + $0x40] sm:$0xff]
      %v4280 = vld [vmem:[#allocation10 + $0x48] sm:$0xff]
      %v4281 = vld [vmem:[#allocation10 + $0x50] sm:$0xff]
      %v4282 = vld [vmem:[#allocation10 + $0x58] sm:$0xff]
      %v4283 = vld [vmem:[#allocation10 + $0x60] sm:$0xff]
      %v4284 = vld [vmem:[#allocation10 + $0x68] sm:$0xff]
      %v4285 = vld [vmem:[#allocation10 + $0x70] sm:$0xff]
      %v4286 = vld [vmem:[#allocation10 + $0x78] sm:$0xff]
      %v4287 = vld [vmem:[#allocation10 + $0x80] sm:$0xff]
      %v4288 = vld [vmem:[#allocation10 + $0x88] sm:$0xff]
      %v4289 = vld [vmem:[#allocation10 + $0x90] sm:$0xff]
      %v4290 = vld [vmem:[#allocation10 + $0x98] sm:$0xff]
      %v4291 = vld [vmem:[#allocation10 + $0xa0] sm:$0xff]
      %v4292 = vld [vmem:[#allocation10 + $0xa8] sm:$0xff]
      %v4293 = vld [vmem:[#allocation10 + $0xb0] sm:$0xff]
      %v4294 = vld [vmem:[#allocation10 + $0xb8] sm:$0xff]
      %v4295 = vld [vmem:[#allocation10 + $0xc0] sm:$0xff]
      %v4296 = vld [vmem:[#allocation10 + $0xc8] sm:$0xff]
      %v4297 = vld [vmem:[#allocation10 + $0xd0] sm:$0xff]
      %v4298 = vld [vmem:[#allocation10 + $0xd8] sm:$0xff]
      %v4299 = vld [vmem:[#allocation10 + $0xe0] sm:$0xff]
      %v4300 = vld [vmem:[#allocation10 + $0xe8] sm:$0xff]
      %v4301 = vld [vmem:[#allocation10 + $0xf0] sm:$0xff]
      %v4302 = vld [vmem:[#allocation10 + $0xf8] sm:$0xff]
      %v4335 = vunpack.c.l.b16 %v4271
      %v4336 = vunpack.c.h.b16 %v4271
      %v4337 = vunpack.c.l.b16 %v4272
      %v4338 = vunpack.c.h.b16 %v4272
      %v4339 = vunpack.c.l.b16 %v4273
      %v4340 = vunpack.c.h.b16 %v4273
      %v4341 = vunpack.c.l.b16 %v4274
      %v4342 = vunpack.c.h.b16 %v4274
      %v4343 = vunpack.c.l.b16 %v4275
      %v4344 = vunpack.c.h.b16 %v4275
      %v4345 = vunpack.c.l.b16 %v4276
      %v4346 = vunpack.c.h.b16 %v4276
      %v4347 = vunpack.c.l.b16 %v4277
      %v4348 = vunpack.c.h.b16 %v4277
      %v4349 = vunpack.c.l.b16 %v4278
      %v4350 = vunpack.c.h.b16 %v4278
      %v4351 = vunpack.c.l.b16 %v4279
      %v4352 = vunpack.c.h.b16 %v4279
      %v4353 = vunpack.c.l.b16 %v4280
      %v4354 = vunpack.c.h.b16 %v4280
      %v4355 = vunpack.c.l.b16 %v4281
      %v4356 = vunpack.c.h.b16 %v4281
      %v4357 = vunpack.c.l.b16 %v4282
      %v4358 = vunpack.c.h.b16 %v4282
      %v4359 = vunpack.c.l.b16 %v4283
      %v4360 = vunpack.c.h.b16 %v4283
      %v4361 = vunpack.c.l.b16 %v4284
      %v4362 = vunpack.c.h.b16 %v4284
      %v4363 = vunpack.c.l.b16 %v4285
      %v4364 = vunpack.c.h.b16 %v4285
      %v4365 = vunpack.c.l.b16 %v4286
      %v4366 = vunpack.c.h.b16 %v4286
      %v4367 = vunpack.c.l.b16 %v4287
      %v4368 = vunpack.c.h.b16 %v4287
      %v4369 = vunpack.c.l.b16 %v4288
      %v4370 = vunpack.c.h.b16 %v4288
      %v4371 = vunpack.c.l.b16 %v4289
      %v4372 = vunpack.c.h.b16 %v4289
      %v4373 = vunpack.c.l.b16 %v4290
      %v4374 = vunpack.c.h.b16 %v4290
      %v4375 = vunpack.c.l.b16 %v4291
      %v4376 = vunpack.c.h.b16 %v4291
      %v4377 = vunpack.c.l.b16 %v4292
      %v4378 = vunpack.c.h.b16 %v4292
      %v4379 = vunpack.c.l.b16 %v4293
      %v4380 = vunpack.c.h.b16 %v4293
      %v4381 = vunpack.c.l.b16 %v4294
      %v4382 = vunpack.c.h.b16 %v4294
      %v4383 = vunpack.c.l.b16 %v4295
      %v4384 = vunpack.c.h.b16 %v4295
      %v4385 = vunpack.c.l.b16 %v4296
      %v4386 = vunpack.c.h.b16 %v4296
      %v4387 = vunpack.c.l.b16 %v4297
      %v4388 = vunpack.c.h.b16 %v4297
      %v4389 = vunpack.c.l.b16 %v4298
      %v4390 = vunpack.c.h.b16 %v4298
      %v4391 = vunpack.c.l.b16 %v4299
      %v4392 = vunpack.c.h.b16 %v4299
      %v4393 = vunpack.c.l.b16 %v4300
      %v4394 = vunpack.c.h.b16 %v4300
      %v4395 = vunpack.c.l.b16 %v4301
      %v4396 = vunpack.c.h.b16 %v4301
      %v4397 = vunpack.c.l.b16 %v4302
      %v4398 = vunpack.c.h.b16 %v4302
      %v4399 = vpack.c.b16 %v4339, %v4335
      %v4400 = vpack.c.b16 %v4340, %v4336
      %v4401 = vpack.c.b16 %v4341, %v4337
      %v4402 = vpack.c.b16 %v4342, %v4338
      %v4403 = vpack.c.b16 %v4347, %v4343
      %v4404 = vpack.c.b16 %v4348, %v4344
      %v4405 = vpack.c.b16 %v4349, %v4345
      %v4406 = vpack.c.b16 %v4350, %v4346
      %v4407 = vpack.c.b16 %v4355, %v4351
      %v4408 = vpack.c.b16 %v4356, %v4352
      %v4409 = vpack.c.b16 %v4357, %v4353
      %v4410 = vpack.c.b16 %v4358, %v4354
      %v4411 = vpack.c.b16 %v4363, %v4359
      %v4412 = vpack.c.b16 %v4364, %v4360
      %v4413 = vpack.c.b16 %v4365, %v4361
      %v4414 = vpack.c.b16 %v4366, %v4362
      %v4415 = vpack.c.b16 %v4371, %v4367
      %v4416 = vpack.c.b16 %v4372, %v4368
      %v4417 = vpack.c.b16 %v4373, %v4369
      %v4418 = vpack.c.b16 %v4374, %v4370
      %v4419 = vpack.c.b16 %v4379, %v4375
      %v4420 = vpack.c.b16 %v4380, %v4376
      %v4421 = vpack.c.b16 %v4381, %v4377
      %v4422 = vpack.c.b16 %v4382, %v4378
      %v4423 = vpack.c.b16 %v4387, %v4383
      %v4424 = vpack.c.b16 %v4388, %v4384
      %v4425 = vpack.c.b16 %v4389, %v4385
      %v4426 = vpack.c.b16 %v4390, %v4386
      %v4427 = vpack.c.b16 %v4395, %v4391
      %v4428 = vpack.c.b16 %v4396, %v4392
      %v4429 = vpack.c.b16 %v4397, %v4393
      %v4430 = vpack.c.b16 %v4398, %v4394
      %4463 = vmatprep.subr.bf16.mxu0 %v4400
      %4464 = vmatpush1.bf16.msra.mxu0 %v4399
      %4465 = vmatprep.subr.bf16.mxu0 %v4404
      %4466 = vmatpush1.bf16.msra.mxu0 %v4403
      %4467 = vmatprep.subr.bf16.mxu0 %v4408
      %4468 = vmatpush1.bf16.msra.mxu0 %v4407
      %4469 = vmatprep.subr.bf16.mxu0 %v4412
      %4470 = vmatpush1.bf16.msra.mxu0 %v4411
      %4471 = vmatprep.subr.bf16.mxu0 %v4416
      %4472 = vmatpush1.bf16.msra.mxu0 %v4415
      %4473 = vmatprep.subr.bf16.mxu0 %v4420
      %4474 = vmatpush1.bf16.msra.mxu0 %v4419
      %4475 = vmatprep.subr.bf16.mxu0 %v4424
      %4476 = vmatpush1.bf16.msra.mxu0 %v4423
      %4477 = vmatprep.subr.bf16.mxu0 %v4428
      %4478 = vmatpush1.bf16.msra.mxu0 %v4427
      %4479 = vmatprep.subr.bf16.mxu0 0
      %4480 = vmatpush1.bf16.msra.mxu0 0
      %4481 = vmatprep.subr.bf16.mxu0 0
      %4482 = vmatpush1.bf16.msra.mxu0 0
      %4483 = vmatprep.subr.bf16.mxu0 0
      %4484 = vmatpush1.bf16.msra.mxu0 0
      %4485 = vmatprep.subr.bf16.mxu0 0
      %4486 = vmatpush1.bf16.msra.mxu0 0
      %4487 = vmatprep.subr.bf16.mxu0 0
      %4488 = vmatpush1.bf16.msra.mxu0 0
      %4489 = vmatprep.subr.bf16.mxu0 0
      %4490 = vmatpush1.bf16.msra.mxu0 0
      %4491 = vmatprep.subr.bf16.mxu0 0
      %4492 = vmatpush1.bf16.msra.mxu0 0
      %4493 = vmatprep.subr.bf16.mxu0 0
      %4494 = vmatpush1.bf16.msra.mxu0 0
      %4495 = vmatprep.mubr.bf16.mxu0 0
      %4496 = vmatmul.mubr.bf16.gmra.mrb[0].mxu0 %v4270
      %v4497 = vpop.f32.mrb[0].mxu0
      %v4498 = vadd.f32 0.0, %v4497
      %v4499 = vpop.f32.mrb[0].mxu0
      %v4500 = vadd.f32 0.0, %v4499
      %v4501 = vpop.f32.mrb[0].mxu0
      %v4502 = vpop.f32.mrb[0].mxu0
      %4503 = vdwg.mxu0
      %4504 = vmatprep.subr.bf16.mxu0 %v4402
      %4505 = vmatpush1.bf16.msra.mxu0 %v4401
      %4506 = vmatprep.subr.bf16.mxu0 %v4406
      %4507 = vmatpush1.bf16.msra.mxu0 %v4405
      %4508 = vmatprep.subr.bf16.mxu0 %v4410
      %4509 = vmatpush1.bf16.msra.mxu0 %v4409
      %4510 = vmatprep.subr.bf16.mxu0 %v4414
      %4511 = vmatpush1.bf16.msra.mxu0 %v4413
      %4512 = vmatprep.subr.bf16.mxu0 %v4418
      %4513 = vmatpush1.bf16.msra.mxu0 %v4417
      %4514 = vmatprep.subr.bf16.mxu0 %v4422
      %4515 = vmatpush1.bf16.msra.mxu0 %v4421
      %4516 = vmatprep.subr.bf16.mxu0 %v4426
      %4517 = vmatpush1.bf16.msra.mxu0 %v4425
      %4518 = vmatprep.subr.bf16.mxu0 %v4430
      %4519 = vmatpush1.bf16.msra.mxu0 %v4429
      %4520 = vmatprep.subr.bf16.mxu0 0
      %4521 = vmatpush1.bf16.msra.mxu0 0
      %4522 = vmatprep.subr.bf16.mxu0 0
      %4523 = vmatpush1.bf16.msra.mxu0 0
      %4524 = vmatprep.subr.bf16.mxu0 0
      %4525 = vmatpush1.bf16.msra.mxu0 0
      %4526 = vmatprep.subr.bf16.mxu0 0
      %4527 = vmatpush1.bf16.msra.mxu0 0
      %4528 = vmatprep.subr.bf16.mxu0 0
      %4529 = vmatpush1.bf16.msra.mxu0 0
      %4530 = vmatprep.subr.bf16.mxu0 0
      %4531 = vmatpush1.bf16.msra.mxu0 0
      %4532 = vmatprep.subr.bf16.mxu0 0
      %4533 = vmatpush1.bf16.msra.mxu0 0
      %4534 = vmatprep.subr.bf16.mxu0 0
      %4535 = vmatpush1.bf16.msra.mxu0 0
      %4536 = vmatprep.mubr.bf16.mxu0 0
      %4537 = vmatmul.mubr.bf16.gmra.mrb[0].mxu0 %v4270
      %v4538 = vpop.f32.mrb[0].mxu0
      %v4539 = vadd.f32 0.0, %v4538
      %v4540 = vpop.f32.mrb[0].mxu0
      %v4541 = vadd.f32 0.0, %v4540
      %v4542 = vpop.f32.mrb[0].mxu0
      %v4543 = vpop.f32.mrb[0].mxu0
      %4544 = vdwg.mxu0
      %v4545 = vadd.f32 %v4266, %v4498
      %v4546 = vadd.f32 %v4267, %v4500
      %v4547 = vadd.f32 %v4268, %v4539
      %v4548 = vadd.f32 %v4269, %v4541
      %v4549 = vxor.u32 %v4545, 2147483648
      %v4550 = vxor.u32 %v4546, 2147483648
      %v4551 = vxor.u32 %v4547, 2147483648
      %v4552 = vmul.f32 %v4549, 1.442695
      %v4553 = vpow.pop %v4552
      %v4554 = vmul.f32 %v4550, 1.442695
      %v4555 = vpow.pop %v4554
      %v4556 = vmul.f32 %v4551, 1.442695
      %v4557 = vpow.pop %v4556
      %v4558 = vadd.f32 %v4553, 1.0
      %v4559 = vadd.f32 %v4555, 1.0
      %v4560 = vadd.f32 %v4557, 1.0
      %v4561 = vrcp.pop %v4558
      %v4562 = vmul.f32 1.0, %v4561
      %v4563 = vrcp.pop %v4559
      %v4564 = vmul.f32 1.0, %v4563
      %v4565 = vrcp.pop %v4560
      %v4566 = vmul.f32 1.0, %v4565
      %v4567 = vtanh.pop %v4548
      %v4568 = vmul.f32 %v4564, %v4264
      %v4569 = vmul.f32 %v4562, %v4567
      %v4570 = vadd.f32 %v4568, %v4569
      %v4571 = vtanh.pop %v4570
      %v4572 = vmul.f32 %v4566, %v4571
      %v4573 = vstv %s4262
      %vm4574 = vcmp.lt.s32.totalorder %v4573, %v459
      %v4575 = vsel %vm4574, %v4572, %v4263
      %4576 = vst [vmem:[#allocation2] sm:$0xff] %v4575
      %v4577 = vsel %vm4574, %v4570, %v4264
      %4578 = vst [vmem:[#allocation3] sm:$0xff] %v4577
      %s4579 = sadd.s32 %s65, 13
      %v4580 = vld [vmem:[#allocation2] sm:$0xff]
      %v4581 = vld [vmem:[#allocation3] sm:$0xff]
      %s4582 = scalar_lea.vmem [#allocation4], 416
      %v4583 = vld [vmem:[%s4582] sm:$0xff]
      %v4584 = vld [vmem:[%s4582 + $0x8] sm:$0xff]
      %v4585 = vld [vmem:[%s4582 + $0x10] sm:$0xff]
      %v4586 = vld [vmem:[%s4582 + $0x18] sm:$0xff]
      %v4587 = vpack.c.bf16 %v4580, %v4580
      %v4588 = vld [vmem:[#allocation10] sm:$0xff]
      %v4589 = vld [vmem:[#allocation10 + $0x8] sm:$0xff]
      %v4590 = vld [vmem:[#allocation10 + $0x10] sm:$0xff]
      %v4591 = vld [vmem:[#allocation10 + $0x18] sm:$0xff]
      %v4592 = vld [vmem:[#allocation10 + $0x20] sm:$0xff]
      %v4593 = vld [vmem:[#allocation10 + $0x28] sm:$0xff]
      %v4594 = vld [vmem:[#allocation10 + $0x30] sm:$0xff]
      %v4595 = vld [vmem:[#allocation10 + $0x38] sm:$0xff]
      %v4596 = vld [vmem:[#allocation10 + $0x40] sm:$0xff]
      %v4597 = vld [vmem:[#allocation10 + $0x48] sm:$0xff]
      %v4598 = vld [vmem:[#allocation10 + $0x50] sm:$0xff]
      %v4599 = vld [vmem:[#allocation10 + $0x58] sm:$0xff]
      %v4600 = vld [vmem:[#allocation10 + $0x60] sm:$0xff]
      %v4601 = vld [vmem:[#allocation10 + $0x68] sm:$0xff]
      %v4602 = vld [vmem:[#allocation10 + $0x70] sm:$0xff]
      %v4603 = vld [vmem:[#allocation10 + $0x78] sm:$0xff]
      %v4604 = vld [vmem:[#allocation10 + $0x80] sm:$0xff]
      %v4605 = vld [vmem:[#allocation10 + $0x88] sm:$0xff]
      %v4606 = vld [vmem:[#allocation10 + $0x90] sm:$0xff]
      %v4607 = vld [vmem:[#allocation10 + $0x98] sm:$0xff]
      %v4608 = vld [vmem:[#allocation10 + $0xa0] sm:$0xff]
      %v4609 = vld [vmem:[#allocation10 + $0xa8] sm:$0xff]
      %v4610 = vld [vmem:[#allocation10 + $0xb0] sm:$0xff]
      %v4611 = vld [vmem:[#allocation10 + $0xb8] sm:$0xff]
      %v4612 = vld [vmem:[#allocation10 + $0xc0] sm:$0xff]
      %v4613 = vld [vmem:[#allocation10 + $0xc8] sm:$0xff]
      %v4614 = vld [vmem:[#allocation10 + $0xd0] sm:$0xff]
      %v4615 = vld [vmem:[#allocation10 + $0xd8] sm:$0xff]
      %v4616 = vld [vmem:[#allocation10 + $0xe0] sm:$0xff]
      %v4617 = vld [vmem:[#allocation10 + $0xe8] sm:$0xff]
      %v4618 = vld [vmem:[#allocation10 + $0xf0] sm:$0xff]
      %v4619 = vld [vmem:[#allocation10 + $0xf8] sm:$0xff]
      %v4652 = vunpack.c.l.b16 %v4588
      %v4653 = vunpack.c.h.b16 %v4588
      %v4654 = vunpack.c.l.b16 %v4589
      %v4655 = vunpack.c.h.b16 %v4589
      %v4656 = vunpack.c.l.b16 %v4590
      %v4657 = vunpack.c.h.b16 %v4590
      %v4658 = vunpack.c.l.b16 %v4591
      %v4659 = vunpack.c.h.b16 %v4591
      %v4660 = vunpack.c.l.b16 %v4592
      %v4661 = vunpack.c.h.b16 %v4592
      %v4662 = vunpack.c.l.b16 %v4593
      %v4663 = vunpack.c.h.b16 %v4593
      %v4664 = vunpack.c.l.b16 %v4594
      %v4665 = vunpack.c.h.b16 %v4594
      %v4666 = vunpack.c.l.b16 %v4595
      %v4667 = vunpack.c.h.b16 %v4595
      %v4668 = vunpack.c.l.b16 %v4596
      %v4669 = vunpack.c.h.b16 %v4596
      %v4670 = vunpack.c.l.b16 %v4597
      %v4671 = vunpack.c.h.b16 %v4597
      %v4672 = vunpack.c.l.b16 %v4598
      %v4673 = vunpack.c.h.b16 %v4598
      %v4674 = vunpack.c.l.b16 %v4599
      %v4675 = vunpack.c.h.b16 %v4599
      %v4676 = vunpack.c.l.b16 %v4600
      %v4677 = vunpack.c.h.b16 %v4600
      %v4678 = vunpack.c.l.b16 %v4601
      %v4679 = vunpack.c.h.b16 %v4601
      %v4680 = vunpack.c.l.b16 %v4602
      %v4681 = vunpack.c.h.b16 %v4602
      %v4682 = vunpack.c.l.b16 %v4603
      %v4683 = vunpack.c.h.b16 %v4603
      %v4684 = vunpack.c.l.b16 %v4604
      %v4685 = vunpack.c.h.b16 %v4604
      %v4686 = vunpack.c.l.b16 %v4605
      %v4687 = vunpack.c.h.b16 %v4605
      %v4688 = vunpack.c.l.b16 %v4606
      %v4689 = vunpack.c.h.b16 %v4606
      %v4690 = vunpack.c.l.b16 %v4607
      %v4691 = vunpack.c.h.b16 %v4607
      %v4692 = vunpack.c.l.b16 %v4608
      %v4693 = vunpack.c.h.b16 %v4608
      %v4694 = vunpack.c.l.b16 %v4609
      %v4695 = vunpack.c.h.b16 %v4609
      %v4696 = vunpack.c.l.b16 %v4610
      %v4697 = vunpack.c.h.b16 %v4610
      %v4698 = vunpack.c.l.b16 %v4611
      %v4699 = vunpack.c.h.b16 %v4611
      %v4700 = vunpack.c.l.b16 %v4612
      %v4701 = vunpack.c.h.b16 %v4612
      %v4702 = vunpack.c.l.b16 %v4613
      %v4703 = vunpack.c.h.b16 %v4613
      %v4704 = vunpack.c.l.b16 %v4614
      %v4705 = vunpack.c.h.b16 %v4614
      %v4706 = vunpack.c.l.b16 %v4615
      %v4707 = vunpack.c.h.b16 %v4615
      %v4708 = vunpack.c.l.b16 %v4616
      %v4709 = vunpack.c.h.b16 %v4616
      %v4710 = vunpack.c.l.b16 %v4617
      %v4711 = vunpack.c.h.b16 %v4617
      %v4712 = vunpack.c.l.b16 %v4618
      %v4713 = vunpack.c.h.b16 %v4618
      %v4714 = vunpack.c.l.b16 %v4619
      %v4715 = vunpack.c.h.b16 %v4619
      %v4716 = vpack.c.b16 %v4656, %v4652
      %v4717 = vpack.c.b16 %v4657, %v4653
      %v4718 = vpack.c.b16 %v4658, %v4654
      %v4719 = vpack.c.b16 %v4659, %v4655
      %v4720 = vpack.c.b16 %v4664, %v4660
      %v4721 = vpack.c.b16 %v4665, %v4661
      %v4722 = vpack.c.b16 %v4666, %v4662
      %v4723 = vpack.c.b16 %v4667, %v4663
      %v4724 = vpack.c.b16 %v4672, %v4668
      %v4725 = vpack.c.b16 %v4673, %v4669
      %v4726 = vpack.c.b16 %v4674, %v4670
      %v4727 = vpack.c.b16 %v4675, %v4671
      %v4728 = vpack.c.b16 %v4680, %v4676
      %v4729 = vpack.c.b16 %v4681, %v4677
      %v4730 = vpack.c.b16 %v4682, %v4678
      %v4731 = vpack.c.b16 %v4683, %v4679
      %v4732 = vpack.c.b16 %v4688, %v4684
      %v4733 = vpack.c.b16 %v4689, %v4685
      %v4734 = vpack.c.b16 %v4690, %v4686
      %v4735 = vpack.c.b16 %v4691, %v4687
      %v4736 = vpack.c.b16 %v4696, %v4692
      %v4737 = vpack.c.b16 %v4697, %v4693
      %v4738 = vpack.c.b16 %v4698, %v4694
      %v4739 = vpack.c.b16 %v4699, %v4695
      %v4740 = vpack.c.b16 %v4704, %v4700
      %v4741 = vpack.c.b16 %v4705, %v4701
      %v4742 = vpack.c.b16 %v4706, %v4702
      %v4743 = vpack.c.b16 %v4707, %v4703
      %v4744 = vpack.c.b16 %v4712, %v4708
      %v4745 = vpack.c.b16 %v4713, %v4709
      %v4746 = vpack.c.b16 %v4714, %v4710
      %v4747 = vpack.c.b16 %v4715, %v4711
      %4780 = vmatprep.subr.bf16.mxu0 %v4717
      %4781 = vmatpush1.bf16.msra.mxu0 %v4716
      %4782 = vmatprep.subr.bf16.mxu0 %v4721
      %4783 = vmatpush1.bf16.msra.mxu0 %v4720
      %4784 = vmatprep.subr.bf16.mxu0 %v4725
      %4785 = vmatpush1.bf16.msra.mxu0 %v4724
      %4786 = vmatprep.subr.bf16.mxu0 %v4729
      %4787 = vmatpush1.bf16.msra.mxu0 %v4728
      %4788 = vmatprep.subr.bf16.mxu0 %v4733
      %4789 = vmatpush1.bf16.msra.mxu0 %v4732
      %4790 = vmatprep.subr.bf16.mxu0 %v4737
      %4791 = vmatpush1.bf16.msra.mxu0 %v4736
      %4792 = vmatprep.subr.bf16.mxu0 %v4741
      %4793 = vmatpush1.bf16.msra.mxu0 %v4740
      %4794 = vmatprep.subr.bf16.mxu0 %v4745
      %4795 = vmatpush1.bf16.msra.mxu0 %v4744
      %4796 = vmatprep.subr.bf16.mxu0 0
      %4797 = vmatpush1.bf16.msra.mxu0 0
      %4798 = vmatprep.subr.bf16.mxu0 0
      %4799 = vmatpush1.bf16.msra.mxu0 0
      %4800 = vmatprep.subr.bf16.mxu0 0
      %4801 = vmatpush1.bf16.msra.mxu0 0
      %4802 = vmatprep.subr.bf16.mxu0 0
      %4803 = vmatpush1.bf16.msra.mxu0 0
      %4804 = vmatprep.subr.bf16.mxu0 0
      %4805 = vmatpush1.bf16.msra.mxu0 0
      %4806 = vmatprep.subr.bf16.mxu0 0
      %4807 = vmatpush1.bf16.msra.mxu0 0
      %4808 = vmatprep.subr.bf16.mxu0 0
      %4809 = vmatpush1.bf16.msra.mxu0 0
      %4810 = vmatprep.subr.bf16.mxu0 0
      %4811 = vmatpush1.bf16.msra.mxu0 0
      %4812 = vmatprep.mubr.bf16.mxu0 0
      %4813 = vmatmul.mubr.bf16.gmra.mrb[0].mxu0 %v4587
      %v4814 = vpop.f32.mrb[0].mxu0
      %v4815 = vadd.f32 0.0, %v4814
      %v4816 = vpop.f32.mrb[0].mxu0
      %v4817 = vadd.f32 0.0, %v4816
      %v4818 = vpop.f32.mrb[0].mxu0
      %v4819 = vpop.f32.mrb[0].mxu0
      %4820 = vdwg.mxu0
      %4821 = vmatprep.subr.bf16.mxu0 %v4719
      %4822 = vmatpush1.bf16.msra.mxu0 %v4718
      %4823 = vmatprep.subr.bf16.mxu0 %v4723
      %4824 = vmatpush1.bf16.msra.mxu0 %v4722
      %4825 = vmatprep.subr.bf16.mxu0 %v4727
      %4826 = vmatpush1.bf16.msra.mxu0 %v4726
      %4827 = vmatprep.subr.bf16.mxu0 %v4731
      %4828 = vmatpush1.bf16.msra.mxu0 %v4730
      %4829 = vmatprep.subr.bf16.mxu0 %v4735
      %4830 = vmatpush1.bf16.msra.mxu0 %v4734
      %4831 = vmatprep.subr.bf16.mxu0 %v4739
      %4832 = vmatpush1.bf16.msra.mxu0 %v4738
      %4833 = vmatprep.subr.bf16.mxu0 %v4743
      %4834 = vmatpush1.bf16.msra.mxu0 %v4742
      %4835 = vmatprep.subr.bf16.mxu0 %v4747
      %4836 = vmatpush1.bf16.msra.mxu0 %v4746
      %4837 = vmatprep.subr.bf16.mxu0 0
      %4838 = vmatpush1.bf16.msra.mxu0 0
      %4839 = vmatprep.subr.bf16.mxu0 0
      %4840 = vmatpush1.bf16.msra.mxu0 0
      %4841 = vmatprep.subr.bf16.mxu0 0
      %4842 = vmatpush1.bf16.msra.mxu0 0
      %4843 = vmatprep.subr.bf16.mxu0 0
      %4844 = vmatpush1.bf16.msra.mxu0 0
      %4845 = vmatprep.subr.bf16.mxu0 0
      %4846 = vmatpush1.bf16.msra.mxu0 0
      %4847 = vmatprep.subr.bf16.mxu0 0
      %4848 = vmatpush1.bf16.msra.mxu0 0
      %4849 = vmatprep.subr.bf16.mxu0 0
      %4850 = vmatpush1.bf16.msra.mxu0 0
      %4851 = vmatprep.subr.bf16.mxu0 0
      %4852 = vmatpush1.bf16.msra.mxu0 0
      %4853 = vmatprep.mubr.bf16.mxu0 0
      %4854 = vmatmul.mubr.bf16.gmra.mrb[0].mxu0 %v4587
      %v4855 = vpop.f32.mrb[0].mxu0
      %v4856 = vadd.f32 0.0, %v4855
      %v4857 = vpop.f32.mrb[0].mxu0
      %v4858 = vadd.f32 0.0, %v4857
      %v4859 = vpop.f32.mrb[0].mxu0
      %v4860 = vpop.f32.mrb[0].mxu0
      %4861 = vdwg.mxu0
      %v4862 = vadd.f32 %v4583, %v4815
      %v4863 = vadd.f32 %v4584, %v4817
      %v4864 = vadd.f32 %v4585, %v4856
      %v4865 = vadd.f32 %v4586, %v4858
      %v4866 = vxor.u32 %v4862, 2147483648
      %v4867 = vxor.u32 %v4863, 2147483648
      %v4868 = vxor.u32 %v4864, 2147483648
      %v4869 = vmul.f32 %v4866, 1.442695
      %v4870 = vpow.pop %v4869
      %v4871 = vmul.f32 %v4867, 1.442695
      %v4872 = vpow.pop %v4871
      %v4873 = vmul.f32 %v4868, 1.442695
      %v4874 = vpow.pop %v4873
      %v4875 = vadd.f32 %v4870, 1.0
      %v4876 = vadd.f32 %v4872, 1.0
      %v4877 = vadd.f32 %v4874, 1.0
      %v4878 = vrcp.pop %v4875
      %v4879 = vmul.f32 1.0, %v4878
      %v4880 = vrcp.pop %v4876
      %v4881 = vmul.f32 1.0, %v4880
      %v4882 = vrcp.pop %v4877
      %v4883 = vmul.f32 1.0, %v4882
      %v4884 = vtanh.pop %v4865
      %v4885 = vmul.f32 %v4881, %v4581
      %v4886 = vmul.f32 %v4879, %v4884
      %v4887 = vadd.f32 %v4885, %v4886
      %v4888 = vtanh.pop %v4887
      %v4889 = vmul.f32 %v4883, %v4888
      %v4890 = vstv %s4579
      %vm4891 = vcmp.lt.s32.totalorder %v4890, %v459
      %v4892 = vsel %vm4891, %v4889, %v4580
      %4893 = vst [vmem:[#allocation2] sm:$0xff] %v4892
      %v4894 = vsel %vm4891, %v4887, %v4581
      %4895 = vst [vmem:[#allocation3] sm:$0xff] %v4894
      %s4896 = sadd.s32 %s65, 14
      %v4897 = vld [vmem:[#allocation2] sm:$0xff]
      %v4898 = vld [vmem:[#allocation3] sm:$0xff]
      %s4899 = scalar_lea.vmem [#allocation4], 448
      %v4900 = vld [vmem:[%s4899] sm:$0xff]
      %v4901 = vld [vmem:[%s4899 + $0x8] sm:$0xff]
      %v4902 = vld [vmem:[%s4899 + $0x10] sm:$0xff]
      %v4903 = vld [vmem:[%s4899 + $0x18] sm:$0xff]
      %v4904 = vpack.c.bf16 %v4897, %v4897
      %v4905 = vld [vmem:[#allocation10] sm:$0xff]
      %v4906 = vld [vmem:[#allocation10 + $0x8] sm:$0xff]
      %v4907 = vld [vmem:[#allocation10 + $0x10] sm:$0xff]
      %v4908 = vld [vmem:[#allocation10 + $0x18] sm:$0xff]
      %v4909 = vld [vmem:[#allocation10 + $0x20] sm:$0xff]
      %v4910 = vld [vmem:[#allocation10 + $0x28] sm:$0xff]
      %v4911 = vld [vmem:[#allocation10 + $0x30] sm:$0xff]
      %v4912 = vld [vmem:[#allocation10 + $0x38] sm:$0xff]
      %v4913 = vld [vmem:[#allocation10 + $0x40] sm:$0xff]
      %v4914 = vld [vmem:[#allocation10 + $0x48] sm:$0xff]
      %v4915 = vld [vmem:[#allocation10 + $0x50] sm:$0xff]
      %v4916 = vld [vmem:[#allocation10 + $0x58] sm:$0xff]
      %v4917 = vld [vmem:[#allocation10 + $0x60] sm:$0xff]
      %v4918 = vld [vmem:[#allocation10 + $0x68] sm:$0xff]
      %v4919 = vld [vmem:[#allocation10 + $0x70] sm:$0xff]
      %v4920 = vld [vmem:[#allocation10 + $0x78] sm:$0xff]
      %v4921 = vld [vmem:[#allocation10 + $0x80] sm:$0xff]
      %v4922 = vld [vmem:[#allocation10 + $0x88] sm:$0xff]
      %v4923 = vld [vmem:[#allocation10 + $0x90] sm:$0xff]
      %v4924 = vld [vmem:[#allocation10 + $0x98] sm:$0xff]
      %v4925 = vld [vmem:[#allocation10 + $0xa0] sm:$0xff]
      %v4926 = vld [vmem:[#allocation10 + $0xa8] sm:$0xff]
      %v4927 = vld [vmem:[#allocation10 + $0xb0] sm:$0xff]
      %v4928 = vld [vmem:[#allocation10 + $0xb8] sm:$0xff]
      %v4929 = vld [vmem:[#allocation10 + $0xc0] sm:$0xff]
      %v4930 = vld [vmem:[#allocation10 + $0xc8] sm:$0xff]
      %v4931 = vld [vmem:[#allocation10 + $0xd0] sm:$0xff]
      %v4932 = vld [vmem:[#allocation10 + $0xd8] sm:$0xff]
      %v4933 = vld [vmem:[#allocation10 + $0xe0] sm:$0xff]
      %v4934 = vld [vmem:[#allocation10 + $0xe8] sm:$0xff]
      %v4935 = vld [vmem:[#allocation10 + $0xf0] sm:$0xff]
      %v4936 = vld [vmem:[#allocation10 + $0xf8] sm:$0xff]
      %v4969 = vunpack.c.l.b16 %v4905
      %v4970 = vunpack.c.h.b16 %v4905
      %v4971 = vunpack.c.l.b16 %v4906
      %v4972 = vunpack.c.h.b16 %v4906
      %v4973 = vunpack.c.l.b16 %v4907
      %v4974 = vunpack.c.h.b16 %v4907
      %v4975 = vunpack.c.l.b16 %v4908
      %v4976 = vunpack.c.h.b16 %v4908
      %v4977 = vunpack.c.l.b16 %v4909
      %v4978 = vunpack.c.h.b16 %v4909
      %v4979 = vunpack.c.l.b16 %v4910
      %v4980 = vunpack.c.h.b16 %v4910
      %v4981 = vunpack.c.l.b16 %v4911
      %v4982 = vunpack.c.h.b16 %v4911
      %v4983 = vunpack.c.l.b16 %v4912
      %v4984 = vunpack.c.h.b16 %v4912
      %v4985 = vunpack.c.l.b16 %v4913
      %v4986 = vunpack.c.h.b16 %v4913
      %v4987 = vunpack.c.l.b16 %v4914
      %v4988 = vunpack.c.h.b16 %v4914
      %v4989 = vunpack.c.l.b16 %v4915
      %v4990 = vunpack.c.h.b16 %v4915
      %v4991 = vunpack.c.l.b16 %v4916
      %v4992 = vunpack.c.h.b16 %v4916
      %v4993 = vunpack.c.l.b16 %v4917
      %v4994 = vunpack.c.h.b16 %v4917
      %v4995 = vunpack.c.l.b16 %v4918
      %v4996 = vunpack.c.h.b16 %v4918
      %v4997 = vunpack.c.l.b16 %v4919
      %v4998 = vunpack.c.h.b16 %v4919
      %v4999 = vunpack.c.l.b16 %v4920
      %v5000 = vunpack.c.h.b16 %v4920
      %v5001 = vunpack.c.l.b16 %v4921
      %v5002 = vunpack.c.h.b16 %v4921
      %v5003 = vunpack.c.l.b16 %v4922
      %v5004 = vunpack.c.h.b16 %v4922
      %v5005 = vunpack.c.l.b16 %v4923
      %v5006 = vunpack.c.h.b16 %v4923
      %v5007 = vunpack.c.l.b16 %v4924
      %v5008 = vunpack.c.h.b16 %v4924
      %v5009 = vunpack.c.l.b16 %v4925
      %v5010 = vunpack.c.h.b16 %v4925
      %v5011 = vunpack.c.l.b16 %v4926
      %v5012 = vunpack.c.h.b16 %v4926
      %v5013 = vunpack.c.l.b16 %v4927
      %v5014 = vunpack.c.h.b16 %v4927
      %v5015 = vunpack.c.l.b16 %v4928
      %v5016 = vunpack.c.h.b16 %v4928
      %v5017 = vunpack.c.l.b16 %v4929
      %v5018 = vunpack.c.h.b16 %v4929
      %v5019 = vunpack.c.l.b16 %v4930
      %v5020 = vunpack.c.h.b16 %v4930
      %v5021 = vunpack.c.l.b16 %v4931
      %v5022 = vunpack.c.h.b16 %v4931
      %v5023 = vunpack.c.l.b16 %v4932
      %v5024 = vunpack.c.h.b16 %v4932
      %v5025 = vunpack.c.l.b16 %v4933
      %v5026 = vunpack.c.h.b16 %v4933
      %v5027 = vunpack.c.l.b16 %v4934
      %v5028 = vunpack.c.h.b16 %v4934
      %v5029 = vunpack.c.l.b16 %v4935
      %v5030 = vunpack.c.h.b16 %v4935
      %v5031 = vunpack.c.l.b16 %v4936
      %v5032 = vunpack.c.h.b16 %v4936
      %v5033 = vpack.c.b16 %v4973, %v4969
      %v5034 = vpack.c.b16 %v4974, %v4970
      %v5035 = vpack.c.b16 %v4975, %v4971
      %v5036 = vpack.c.b16 %v4976, %v4972
      %v5037 = vpack.c.b16 %v4981, %v4977
      %v5038 = vpack.c.b16 %v4982, %v4978
      %v5039 = vpack.c.b16 %v4983, %v4979
      %v5040 = vpack.c.b16 %v4984, %v4980
      %v5041 = vpack.c.b16 %v4989, %v4985
      %v5042 = vpack.c.b16 %v4990, %v4986
      %v5043 = vpack.c.b16 %v4991, %v4987
      %v5044 = vpack.c.b16 %v4992, %v4988
      %v5045 = vpack.c.b16 %v4997, %v4993
      %v5046 = vpack.c.b16 %v4998, %v4994
      %v5047 = vpack.c.b16 %v4999, %v4995
      %v5048 = vpack.c.b16 %v5000, %v4996
      %v5049 = vpack.c.b16 %v5005, %v5001
      %v5050 = vpack.c.b16 %v5006, %v5002
      %v5051 = vpack.c.b16 %v5007, %v5003
      %v5052 = vpack.c.b16 %v5008, %v5004
      %v5053 = vpack.c.b16 %v5013, %v5009
      %v5054 = vpack.c.b16 %v5014, %v5010
      %v5055 = vpack.c.b16 %v5015, %v5011
      %v5056 = vpack.c.b16 %v5016, %v5012
      %v5057 = vpack.c.b16 %v5021, %v5017
      %v5058 = vpack.c.b16 %v5022, %v5018
      %v5059 = vpack.c.b16 %v5023, %v5019
      %v5060 = vpack.c.b16 %v5024, %v5020
      %v5061 = vpack.c.b16 %v5029, %v5025
      %v5062 = vpack.c.b16 %v5030, %v5026
      %v5063 = vpack.c.b16 %v5031, %v5027
      %v5064 = vpack.c.b16 %v5032, %v5028
      %5097 = vmatprep.subr.bf16.mxu0 %v5034
      %5098 = vmatpush1.bf16.msra.mxu0 %v5033
      %5099 = vmatprep.subr.bf16.mxu0 %v5038
      %5100 = vmatpush1.bf16.msra.mxu0 %v5037
      %5101 = vmatprep.subr.bf16.mxu0 %v5042
      %5102 = vmatpush1.bf16.msra.mxu0 %v5041
      %5103 = vmatprep.subr.bf16.mxu0 %v5046
      %5104 = vmatpush1.bf16.msra.mxu0 %v5045
      %5105 = vmatprep.subr.bf16.mxu0 %v5050
      %5106 = vmatpush1.bf16.msra.mxu0 %v5049
      %5107 = vmatprep.subr.bf16.mxu0 %v5054
      %5108 = vmatpush1.bf16.msra.mxu0 %v5053
      %5109 = vmatprep.subr.bf16.mxu0 %v5058
      %5110 = vmatpush1.bf16.msra.mxu0 %v5057
      %5111 = vmatprep.subr.bf16.mxu0 %v5062
      %5112 = vmatpush1.bf16.msra.mxu0 %v5061
      %5113 = vmatprep.subr.bf16.mxu0 0
      %5114 = vmatpush1.bf16.msra.mxu0 0
      %5115 = vmatprep.subr.bf16.mxu0 0
      %5116 = vmatpush1.bf16.msra.mxu0 0
      %5117 = vmatprep.subr.bf16.mxu0 0
      %5118 = vmatpush1.bf16.msra.mxu0 0
      %5119 = vmatprep.subr.bf16.mxu0 0
      %5120 = vmatpush1.bf16.msra.mxu0 0
      %5121 = vmatprep.subr.bf16.mxu0 0
      %5122 = vmatpush1.bf16.msra.mxu0 0
      %5123 = vmatprep.subr.bf16.mxu0 0
      %5124 = vmatpush1.bf16.msra.mxu0 0
      %5125 = vmatprep.subr.bf16.mxu0 0
      %5126 = vmatpush1.bf16.msra.mxu0 0
      %5127 = vmatprep.subr.bf16.mxu0 0
      %5128 = vmatpush1.bf16.msra.mxu0 0
      %5129 = vmatprep.mubr.bf16.mxu0 0
      %5130 = vmatmul.mubr.bf16.gmra.mrb[0].mxu0 %v4904
      %v5131 = vpop.f32.mrb[0].mxu0
      %v5132 = vadd.f32 0.0, %v5131
      %v5133 = vpop.f32.mrb[0].mxu0
      %v5134 = vadd.f32 0.0, %v5133
      %v5135 = vpop.f32.mrb[0].mxu0
      %v5136 = vpop.f32.mrb[0].mxu0
      %5137 = vdwg.mxu0
      %5138 = vmatprep.subr.bf16.mxu0 %v5036
      %5139 = vmatpush1.bf16.msra.mxu0 %v5035
      %5140 = vmatprep.subr.bf16.mxu0 %v5040
      %5141 = vmatpush1.bf16.msra.mxu0 %v5039
      %5142 = vmatprep.subr.bf16.mxu0 %v5044
      %5143 = vmatpush1.bf16.msra.mxu0 %v5043
      %5144 = vmatprep.subr.bf16.mxu0 %v5048
      %5145 = vmatpush1.bf16.msra.mxu0 %v5047
      %5146 = vmatprep.subr.bf16.mxu0 %v5052
      %5147 = vmatpush1.bf16.msra.mxu0 %v5051
      %5148 = vmatprep.subr.bf16.mxu0 %v5056
      %5149 = vmatpush1.bf16.msra.mxu0 %v5055
      %5150 = vmatprep.subr.bf16.mxu0 %v5060
      %5151 = vmatpush1.bf16.msra.mxu0 %v5059
      %5152 = vmatprep.subr.bf16.mxu0 %v5064
      %5153 = vmatpush1.bf16.msra.mxu0 %v5063
      %5154 = vmatprep.subr.bf16.mxu0 0
      %5155 = vmatpush1.bf16.msra.mxu0 0
      %5156 = vmatprep.subr.bf16.mxu0 0
      %5157 = vmatpush1.bf16.msra.mxu0 0
      %5158 = vmatprep.subr.bf16.mxu0 0
      %5159 = vmatpush1.bf16.msra.mxu0 0
      %5160 = vmatprep.subr.bf16.mxu0 0
      %5161 = vmatpush1.bf16.msra.mxu0 0
      %5162 = vmatprep.subr.bf16.mxu0 0
      %5163 = vmatpush1.bf16.msra.mxu0 0
      %5164 = vmatprep.subr.bf16.mxu0 0
      %5165 = vmatpush1.bf16.msra.mxu0 0
      %5166 = vmatprep.subr.bf16.mxu0 0
      %5167 = vmatpush1.bf16.msra.mxu0 0
      %5168 = vmatprep.subr.bf16.mxu0 0
      %5169 = vmatpush1.bf16.msra.mxu0 0
      %5170 = vmatprep.mubr.bf16.mxu0 0
      %5171 = vmatmul.mubr.bf16.gmra.mrb[0].mxu0 %v4904
      %v5172 = vpop.f32.mrb[0].mxu0
      %v5173 = vadd.f32 0.0, %v5172
      %v5174 = vpop.f32.mrb[0].mxu0
      %v5175 = vadd.f32 0.0, %v5174
      %v5176 = vpop.f32.mrb[0].mxu0
      %v5177 = vpop.f32.mrb[0].mxu0
      %5178 = vdwg.mxu0
      %v5179 = vadd.f32 %v4900, %v5132
      %v5180 = vadd.f32 %v4901, %v5134
      %v5181 = vadd.f32 %v4902, %v5173
      %v5182 = vadd.f32 %v4903, %v5175
      %v5183 = vxor.u32 %v5179, 2147483648
      %v5184 = vxor.u32 %v5180, 2147483648
      %v5185 = vxor.u32 %v5181, 2147483648
      %v5186 = vmul.f32 %v5183, 1.442695
      %v5187 = vpow.pop %v5186
      %v5188 = vmul.f32 %v5184, 1.442695
      %v5189 = vpow.pop %v5188
      %v5190 = vmul.f32 %v5185, 1.442695
      %v5191 = vpow.pop %v5190
      %v5192 = vadd.f32 %v5187, 1.0
      %v5193 = vadd.f32 %v5189, 1.0
      %v5194 = vadd.f32 %v5191, 1.0
      %v5195 = vrcp.pop %v5192
      %v5196 = vmul.f32 1.0, %v5195
      %v5197 = vrcp.pop %v5193
      %v5198 = vmul.f32 1.0, %v5197
      %v5199 = vrcp.pop %v5194
      %v5200 = vmul.f32 1.0, %v5199
      %v5201 = vtanh.pop %v5182
      %v5202 = vmul.f32 %v5198, %v4898
      %v5203 = vmul.f32 %v5196, %v5201
      %v5204 = vadd.f32 %v5202, %v5203
      %v5205 = vtanh.pop %v5204
      %v5206 = vmul.f32 %v5200, %v5205
      %v5207 = vstv %s4896
      %vm5208 = vcmp.lt.s32.totalorder %v5207, %v459
      %v5209 = vsel %vm5208, %v5206, %v4897
      %5210 = vst [vmem:[#allocation2] sm:$0xff] %v5209
      %v5211 = vsel %vm5208, %v5204, %v4898
      %5212 = vst [vmem:[#allocation3] sm:$0xff] %v5211
      %s5213 = sadd.s32 %s65, 15
      %v5214 = vld [vmem:[#allocation2] sm:$0xff]
      %v5215 = vld [vmem:[#allocation3] sm:$0xff]
      %s5216 = scalar_lea.vmem [#allocation4], 480
      %v5217 = vld [vmem:[%s5216] sm:$0xff]
      %v5218 = vld [vmem:[%s5216 + $0x8] sm:$0xff]
      %v5219 = vld [vmem:[%s5216 + $0x10] sm:$0xff]
      %v5220 = vld [vmem:[%s5216 + $0x18] sm:$0xff]
      %v5221 = vpack.c.bf16 %v5214, %v5214
      %v5222 = vld [vmem:[#allocation10] sm:$0xff]
      %v5223 = vld [vmem:[#allocation10 + $0x8] sm:$0xff]
      %v5224 = vld [vmem:[#allocation10 + $0x10] sm:$0xff]
      %v5225 = vld [vmem:[#allocation10 + $0x18] sm:$0xff]
      %v5226 = vld [vmem:[#allocation10 + $0x20] sm:$0xff]
      %v5227 = vld [vmem:[#allocation10 + $0x28] sm:$0xff]
      %v5228 = vld [vmem:[#allocation10 + $0x30] sm:$0xff]
      %v5229 = vld [vmem:[#allocation10 + $0x38] sm:$0xff]
      %v5230 = vld [vmem:[#allocation10 + $0x40] sm:$0xff]
      %v5231 = vld [vmem:[#allocation10 + $0x48] sm:$0xff]
      %v5232 = vld [vmem:[#allocation10 + $0x50] sm:$0xff]
      %v5233 = vld [vmem:[#allocation10 + $0x58] sm:$0xff]
      %v5234 = vld [vmem:[#allocation10 + $0x60] sm:$0xff]
      %v5235 = vld [vmem:[#allocation10 + $0x68] sm:$0xff]
      %v5236 = vld [vmem:[#allocation10 + $0x70] sm:$0xff]
      %v5237 = vld [vmem:[#allocation10 + $0x78] sm:$0xff]
      %v5238 = vld [vmem:[#allocation10 + $0x80] sm:$0xff]
      %v5239 = vld [vmem:[#allocation10 + $0x88] sm:$0xff]
      %v5240 = vld [vmem:[#allocation10 + $0x90] sm:$0xff]
      %v5241 = vld [vmem:[#allocation10 + $0x98] sm:$0xff]
      %v5242 = vld [vmem:[#allocation10 + $0xa0] sm:$0xff]
      %v5243 = vld [vmem:[#allocation10 + $0xa8] sm:$0xff]
      %v5244 = vld [vmem:[#allocation10 + $0xb0] sm:$0xff]
      %v5245 = vld [vmem:[#allocation10 + $0xb8] sm:$0xff]
      %v5246 = vld [vmem:[#allocation10 + $0xc0] sm:$0xff]
      %v5247 = vld [vmem:[#allocation10 + $0xc8] sm:$0xff]
      %v5248 = vld [vmem:[#allocation10 + $0xd0] sm:$0xff]
      %v5249 = vld [vmem:[#allocation10 + $0xd8] sm:$0xff]
      %v5250 = vld [vmem:[#allocation10 + $0xe0] sm:$0xff]
      %v5251 = vld [vmem:[#allocation10 + $0xe8] sm:$0xff]
      %v5252 = vld [vmem:[#allocation10 + $0xf0] sm:$0xff]
      %v5253 = vld [vmem:[#allocation10 + $0xf8] sm:$0xff]
      %v5286 = vunpack.c.l.b16 %v5222
      %v5287 = vunpack.c.h.b16 %v5222
      %v5288 = vunpack.c.l.b16 %v5223
      %v5289 = vunpack.c.h.b16 %v5223
      %v5290 = vunpack.c.l.b16 %v5224
      %v5291 = vunpack.c.h.b16 %v5224
      %v5292 = vunpack.c.l.b16 %v5225
      %v5293 = vunpack.c.h.b16 %v5225
      %v5294 = vunpack.c.l.b16 %v5226
      %v5295 = vunpack.c.h.b16 %v5226
      %v5296 = vunpack.c.l.b16 %v5227
      %v5297 = vunpack.c.h.b16 %v5227
      %v5298 = vunpack.c.l.b16 %v5228
      %v5299 = vunpack.c.h.b16 %v5228
      %v5300 = vunpack.c.l.b16 %v5229
      %v5301 = vunpack.c.h.b16 %v5229
      %v5302 = vunpack.c.l.b16 %v5230
      %v5303 = vunpack.c.h.b16 %v5230
      %v5304 = vunpack.c.l.b16 %v5231
      %v5305 = vunpack.c.h.b16 %v5231
      %v5306 = vunpack.c.l.b16 %v5232
      %v5307 = vunpack.c.h.b16 %v5232
      %v5308 = vunpack.c.l.b16 %v5233
      %v5309 = vunpack.c.h.b16 %v5233
      %v5310 = vunpack.c.l.b16 %v5234
      %v5311 = vunpack.c.h.b16 %v5234
      %v5312 = vunpack.c.l.b16 %v5235
      %v5313 = vunpack.c.h.b16 %v5235
      %v5314 = vunpack.c.l.b16 %v5236
      %v5315 = vunpack.c.h.b16 %v5236
      %v5316 = vunpack.c.l.b16 %v5237
      %v5317 = vunpack.c.h.b16 %v5237
      %v5318 = vunpack.c.l.b16 %v5238
      %v5319 = vunpack.c.h.b16 %v5238
      %v5320 = vunpack.c.l.b16 %v5239
      %v5321 = vunpack.c.h.b16 %v5239
      %v5322 = vunpack.c.l.b16 %v5240
      %v5323 = vunpack.c.h.b16 %v5240
      %v5324 = vunpack.c.l.b16 %v5241
      %v5325 = vunpack.c.h.b16 %v5241
      %v5326 = vunpack.c.l.b16 %v5242
      %v5327 = vunpack.c.h.b16 %v5242
      %v5328 = vunpack.c.l.b16 %v5243
      %v5329 = vunpack.c.h.b16 %v5243
      %v5330 = vunpack.c.l.b16 %v5244
      %v5331 = vunpack.c.h.b16 %v5244
      %v5332 = vunpack.c.l.b16 %v5245
      %v5333 = vunpack.c.h.b16 %v5245
      %v5334 = vunpack.c.l.b16 %v5246
      %v5335 = vunpack.c.h.b16 %v5246
      %v5336 = vunpack.c.l.b16 %v5247
      %v5337 = vunpack.c.h.b16 %v5247
      %v5338 = vunpack.c.l.b16 %v5248
      %v5339 = vunpack.c.h.b16 %v5248
      %v5340 = vunpack.c.l.b16 %v5249
      %v5341 = vunpack.c.h.b16 %v5249
      %v5342 = vunpack.c.l.b16 %v5250
      %v5343 = vunpack.c.h.b16 %v5250
      %v5344 = vunpack.c.l.b16 %v5251
      %v5345 = vunpack.c.h.b16 %v5251
      %v5346 = vunpack.c.l.b16 %v5252
      %v5347 = vunpack.c.h.b16 %v5252
      %v5348 = vunpack.c.l.b16 %v5253
      %v5349 = vunpack.c.h.b16 %v5253
      %v5350 = vpack.c.b16 %v5290, %v5286
      %v5351 = vpack.c.b16 %v5291, %v5287
      %v5352 = vpack.c.b16 %v5292, %v5288
      %v5353 = vpack.c.b16 %v5293, %v5289
      %v5354 = vpack.c.b16 %v5298, %v5294
      %v5355 = vpack.c.b16 %v5299, %v5295
      %v5356 = vpack.c.b16 %v5300, %v5296
      %v5357 = vpack.c.b16 %v5301, %v5297
      %v5358 = vpack.c.b16 %v5306, %v5302
      %v5359 = vpack.c.b16 %v5307, %v5303
      %v5360 = vpack.c.b16 %v5308, %v5304
      %v5361 = vpack.c.b16 %v5309, %v5305
      %v5362 = vpack.c.b16 %v5314, %v5310
      %v5363 = vpack.c.b16 %v5315, %v5311
      %v5364 = vpack.c.b16 %v5316, %v5312
      %v5365 = vpack.c.b16 %v5317, %v5313
      %v5366 = vpack.c.b16 %v5322, %v5318
      %v5367 = vpack.c.b16 %v5323, %v5319
      %v5368 = vpack.c.b16 %v5324, %v5320
      %v5369 = vpack.c.b16 %v5325, %v5321
      %v5370 = vpack.c.b16 %v5330, %v5326
      %v5371 = vpack.c.b16 %v5331, %v5327
      %v5372 = vpack.c.b16 %v5332, %v5328
      %v5373 = vpack.c.b16 %v5333, %v5329
      %v5374 = vpack.c.b16 %v5338, %v5334
      %v5375 = vpack.c.b16 %v5339, %v5335
      %v5376 = vpack.c.b16 %v5340, %v5336
      %v5377 = vpack.c.b16 %v5341, %v5337
      %v5378 = vpack.c.b16 %v5346, %v5342
      %v5379 = vpack.c.b16 %v5347, %v5343
      %v5380 = vpack.c.b16 %v5348, %v5344
      %v5381 = vpack.c.b16 %v5349, %v5345
      %5414 = vmatprep.subr.bf16.mxu0 %v5351
      %5415 = vmatpush1.bf16.msra.mxu0 %v5350
      %5416 = vmatprep.subr.bf16.mxu0 %v5355
      %5417 = vmatpush1.bf16.msra.mxu0 %v5354
      %5418 = vmatprep.subr.bf16.mxu0 %v5359
      %5419 = vmatpush1.bf16.msra.mxu0 %v5358
      %5420 = vmatprep.subr.bf16.mxu0 %v5363
      %5421 = vmatpush1.bf16.msra.mxu0 %v5362
      %5422 = vmatprep.subr.bf16.mxu0 %v5367
      %5423 = vmatpush1.bf16.msra.mxu0 %v5366
      %5424 = vmatprep.subr.bf16.mxu0 %v5371
      %5425 = vmatpush1.bf16.msra.mxu0 %v5370
      %5426 = vmatprep.subr.bf16.mxu0 %v5375
      %5427 = vmatpush1.bf16.msra.mxu0 %v5374
      %5428 = vmatprep.subr.bf16.mxu0 %v5379
      %5429 = vmatpush1.bf16.msra.mxu0 %v5378
      %5430 = vmatprep.subr.bf16.mxu0 0
      %5431 = vmatpush1.bf16.msra.mxu0 0
      %5432 = vmatprep.subr.bf16.mxu0 0
      %5433 = vmatpush1.bf16.msra.mxu0 0
      %5434 = vmatprep.subr.bf16.mxu0 0
      %5435 = vmatpush1.bf16.msra.mxu0 0
      %5436 = vmatprep.subr.bf16.mxu0 0
      %5437 = vmatpush1.bf16.msra.mxu0 0
      %5438 = vmatprep.subr.bf16.mxu0 0
      %5439 = vmatpush1.bf16.msra.mxu0 0
      %5440 = vmatprep.subr.bf16.mxu0 0
      %5441 = vmatpush1.bf16.msra.mxu0 0
      %5442 = vmatprep.subr.bf16.mxu0 0
      %5443 = vmatpush1.bf16.msra.mxu0 0
      %5444 = vmatprep.subr.bf16.mxu0 0
      %5445 = vmatpush1.bf16.msra.mxu0 0
      %5446 = vmatprep.mubr.bf16.mxu0 0
      %5447 = vmatmul.mubr.bf16.gmra.mrb[0].mxu0 %v5221
      %v5448 = vpop.f32.mrb[0].mxu0
      %v5449 = vadd.f32 0.0, %v5448
      %v5450 = vpop.f32.mrb[0].mxu0
      %v5451 = vadd.f32 0.0, %v5450
      %v5452 = vpop.f32.mrb[0].mxu0
      %v5453 = vpop.f32.mrb[0].mxu0
      %5454 = vdwg.mxu0
      %5455 = vmatprep.subr.bf16.mxu0 %v5353
      %5456 = vmatpush1.bf16.msra.mxu0 %v5352
      %5457 = vmatprep.subr.bf16.mxu0 %v5357
      %5458 = vmatpush1.bf16.msra.mxu0 %v5356
      %5459 = vmatprep.subr.bf16.mxu0 %v5361
      %5460 = vmatpush1.bf16.msra.mxu0 %v5360
      %5461 = vmatprep.subr.bf16.mxu0 %v5365
      %5462 = vmatpush1.bf16.msra.mxu0 %v5364
      %5463 = vmatprep.subr.bf16.mxu0 %v5369
      %5464 = vmatpush1.bf16.msra.mxu0 %v5368
      %5465 = vmatprep.subr.bf16.mxu0 %v5373
      %5466 = vmatpush1.bf16.msra.mxu0 %v5372
      %5467 = vmatprep.subr.bf16.mxu0 %v5377
      %5468 = vmatpush1.bf16.msra.mxu0 %v5376
      %5469 = vmatprep.subr.bf16.mxu0 %v5381
      %5470 = vmatpush1.bf16.msra.mxu0 %v5380
      %5471 = vmatprep.subr.bf16.mxu0 0
      %5472 = vmatpush1.bf16.msra.mxu0 0
      %5473 = vmatprep.subr.bf16.mxu0 0
      %5474 = vmatpush1.bf16.msra.mxu0 0
      %5475 = vmatprep.subr.bf16.mxu0 0
      %5476 = vmatpush1.bf16.msra.mxu0 0
      %5477 = vmatprep.subr.bf16.mxu0 0
      %5478 = vmatpush1.bf16.msra.mxu0 0
      %5479 = vmatprep.subr.bf16.mxu0 0
      %5480 = vmatpush1.bf16.msra.mxu0 0
      %5481 = vmatprep.subr.bf16.mxu0 0
      %5482 = vmatpush1.bf16.msra.mxu0 0
      %5483 = vmatprep.subr.bf16.mxu0 0
      %5484 = vmatpush1.bf16.msra.mxu0 0
      %5485 = vmatprep.subr.bf16.mxu0 0
      %5486 = vmatpush1.bf16.msra.mxu0 0
      %5487 = vmatprep.mubr.bf16.mxu0 0
      %5488 = vmatmul.mubr.bf16.gmra.mrb[0].mxu0 %v5221
      %v5489 = vpop.f32.mrb[0].mxu0
      %v5490 = vadd.f32 0.0, %v5489
      %v5491 = vpop.f32.mrb[0].mxu0
      %v5492 = vadd.f32 0.0, %v5491
      %v5493 = vpop.f32.mrb[0].mxu0
      %v5494 = vpop.f32.mrb[0].mxu0
      %5495 = vdwg.mxu0
      %v5496 = vadd.f32 %v5217, %v5449
      %v5497 = vadd.f32 %v5218, %v5451
      %v5498 = vadd.f32 %v5219, %v5490
      %v5499 = vadd.f32 %v5220, %v5492
      %v5500 = vxor.u32 %v5496, 2147483648
      %v5501 = vxor.u32 %v5497, 2147483648
      %v5502 = vxor.u32 %v5498, 2147483648
      %v5503 = vmul.f32 %v5500, 1.442695
      %v5504 = vpow.pop %v5503
      %v5505 = vmul.f32 %v5501, 1.442695
      %v5506 = vpow.pop %v5505
      %v5507 = vmul.f32 %v5502, 1.442695
      %v5508 = vpow.pop %v5507
      %v5509 = vadd.f32 %v5504, 1.0
      %v5510 = vadd.f32 %v5506, 1.0
      %v5511 = vadd.f32 %v5508, 1.0
      %v5512 = vrcp.pop %v5509
      %v5513 = vmul.f32 1.0, %v5512
      %v5514 = vrcp.pop %v5510
      %v5515 = vmul.f32 1.0, %v5514
      %v5516 = vrcp.pop %v5511
      %v5517 = vmul.f32 1.0, %v5516
      %v5518 = vtanh.pop %v5499
      %v5519 = vmul.f32 %v5515, %v5215
      %v5520 = vmul.f32 %v5513, %v5518
      %v5521 = vadd.f32 %v5519, %v5520
      %v5522 = vtanh.pop %v5521
      %v5523 = vmul.f32 %v5517, %v5522
      %v5524 = vstv %s5213
      %vm5525 = vcmp.lt.s32.totalorder %v5524, %v459
      %v5526 = vsel %vm5525, %v5523, %v5214
      %5527 = vst [vmem:[#allocation2] sm:$0xff] %v5526
      %v5528 = vsel %vm5525, %v5521, %v5215
      %5529 = vst [vmem:[#allocation3] sm:$0xff] %v5528
    $region45: #{tpu_custom_call.1} parent=1 // pred_fallthru
      _
    // Predicated region
    $region46: #{tpu_custom_call.1} parent=1 // pred_check
      %p5530 = pneg %p59
    $region47: #{tpu_custom_call.1} parent=1 // pred_check_branch
      %5532 = sbr.rel (%p5530) target = $region49
    $region48: #{tpu_custom_call.1} parent=1 // pred_region
      %v5533 = vld [vmem:[#allocation2] sm:$0xff]
      %v5534 = vld [vmem:[%s6] sm:$0xff]
      %v5535 = vld [vmem:[%s6 + $0x8] sm:$0xff]
      %v5536 = vld [vmem:[%s6 + $0x10] sm:$0xff]
      %v5537 = vld [vmem:[%s6 + $0x18] sm:$0xff]
      %v5538 = vld [vmem:[%s6 + $0x20] sm:$0xff]
      %v5539 = vld [vmem:[%s6 + $0x28] sm:$0xff]
      %v5540 = vld [vmem:[%s6 + $0x30] sm:$0xff]
      %v5541 = vld [vmem:[%s6 + $0x38] sm:$0xff]
      %v5542 = vld [vmem:[%s6 + $0x40] sm:$0xff]
      %v5543 = vld [vmem:[%s6 + $0x48] sm:$0xff]
      %v5544 = vld [vmem:[%s6 + $0x50] sm:$0xff]
      %v5545 = vld [vmem:[%s6 + $0x58] sm:$0xff]
      %v5546 = vld [vmem:[%s6 + $0x60] sm:$0xff]
      %v5547 = vld [vmem:[%s6 + $0x68] sm:$0xff]
      %v5548 = vld [vmem:[%s6 + $0x70] sm:$0xff]
      %v5549 = vld [vmem:[%s6 + $0x78] sm:$0xff]
      %v5550 = vld [vmem:[#allocation7] sm:$0x1]
      %v5552 = vlaneseq
      %v5553 = vshrl.u32 %v5552, 7
      %v5554 = vsub.s32 0, %v5553
      %v5555 = vrot.slane %v5550, %v5554
      %5557 = vmatprep.subr.mxu0 0.0
      %5558 = vmatpush1.msra.mxu0 %v5534
      %5559 = vmatprep.subr.mxu0 0.0
      %5560 = vmatpush1.msra.mxu0 %v5535
      %5561 = vmatprep.subr.mxu0 0.0
      %5562 = vmatpush1.msra.mxu0 %v5536
      %5563 = vmatprep.subr.mxu0 0.0
      %5564 = vmatpush1.msra.mxu0 %v5537
      %5565 = vmatprep.subr.mxu0 0.0
      %5566 = vmatpush1.msra.mxu0 %v5538
      %5567 = vmatprep.subr.mxu0 0.0
      %5568 = vmatpush1.msra.mxu0 %v5539
      %5569 = vmatprep.subr.mxu0 0.0
      %5570 = vmatpush1.msra.mxu0 %v5540
      %5571 = vmatprep.subr.mxu0 0.0
      %5572 = vmatpush1.msra.mxu0 %v5541
      %5573 = vmatprep.subr.mxu0 0.0
      %5574 = vmatpush1.msra.mxu0 %v5542
      %5575 = vmatprep.subr.mxu0 0.0
      %5576 = vmatpush1.msra.mxu0 %v5543
      %5577 = vmatprep.subr.mxu0 0.0
      %5578 = vmatpush1.msra.mxu0 %v5544
      %5579 = vmatprep.subr.mxu0 0.0
      %5580 = vmatpush1.msra.mxu0 %v5545
      %5581 = vmatprep.subr.mxu0 0.0
      %5582 = vmatpush1.msra.mxu0 %v5546
      %5583 = vmatprep.subr.mxu0 0.0
      %5584 = vmatpush1.msra.mxu0 %v5547
      %5585 = vmatprep.subr.mxu0 0.0
      %5586 = vmatpush1.msra.mxu0 %v5548
      %5587 = vmatprep.subr.mxu0 0.0
      %5588 = vmatpush1.msra.mxu0 %v5549
      %5589 = vmatprep.subr.mxu0 0.0
      %5590 = vmatpush1.msra.mxu0 0.0
      %5591 = vmatprep.subr.mxu0 0.0
      %5592 = vmatpush1.msra.mxu0 0.0
      %5593 = vmatprep.subr.mxu0 0.0
      %5594 = vmatpush1.msra.mxu0 0.0
      %5595 = vmatprep.subr.mxu0 0.0
      %5596 = vmatpush1.msra.mxu0 0.0
      %5597 = vmatprep.subr.mxu0 0.0
      %5598 = vmatpush1.msra.mxu0 0.0
      %5599 = vmatprep.subr.mxu0 0.0
      %5600 = vmatpush1.msra.mxu0 0.0
      %5601 = vmatprep.subr.mxu0 0.0
      %5602 = vmatpush1.msra.mxu0 0.0
      %5603 = vmatprep.subr.mxu0 0.0
      %5604 = vmatpush1.msra.mxu0 0.0
      %5605 = vmatprep.subr.mxu0 0.0
      %5606 = vmatpush1.msra.mxu0 0.0
      %5607 = vmatprep.subr.mxu0 0.0
      %5608 = vmatpush1.msra.mxu0 0.0
      %5609 = vmatprep.subr.mxu0 0.0
      %5610 = vmatpush1.msra.mxu0 0.0
      %5611 = vmatprep.subr.mxu0 0.0
      %5612 = vmatpush1.msra.mxu0 0.0
      %5613 = vmatprep.subr.mxu0 0.0
      %5614 = vmatpush1.msra.mxu0 0.0
      %5615 = vmatprep.subr.mxu0 0.0
      %5616 = vmatpush1.msra.mxu0 0.0
      %5617 = vmatprep.subr.mxu0 0.0
      %5618 = vmatpush1.msra.mxu0 0.0
      %5619 = vmatprep.subr.mxu0 0.0
      %5620 = vmatpush1.msra.mxu0 0.0
      %5621 = vmatprep.mubr.f32.mxu0 0.0
      %5622 = vmatmul.mubr.f32.gmra.mrb[0].mxu0 %v5533
      %v5623 = vpop.f32.mrb[0].mxu0
      %v5624 = vadd.f32 %v5555, %v5623
      %v5625 = vpop.f32.mrb[0].mxu0
      %5626 = vdwg.mxu0
      %v5627 = vxor.u32 %v5624, 2147483648
      %v5628 = vmul.f32 %v5627, 1.442695
      %v5629 = vpow.pop %v5628
      %v5630 = vadd.f32 %v5629, 1.0
      %v5631 = vrcp.pop %v5630
      %v5632 = vmul.f32 1.0, %v5631
      %vm5633 = vcmask 7168
      %5634 = vst.msk [vmem:[%s8] sm:$0xff] %vm5633, %v5632
    $region49: #{tpu_custom_call.1} parent=1 // pred_fallthru
      _
    // Predicated region
    $region50: #{tpu_custom_call.1} parent=1 // pred_check
      _
    $region51: #{tpu_custom_call.1} parent=1 // pred_check_branch
      %5636 = sbr.rel (0) target = $region53
    $region52: #{tpu_custom_call.1} parent=1 // pred_region
      _
    $region53: #{tpu_custom_call.1} parent=1 // pred_fallthru
      _
    // Predicated region
    $region54: #{tpu_custom_call.1} parent=1 // pred_check
      _
    $region55: #{tpu_custom_call.1} parent=1 // pred_check_branch
      %5638 = sbr.rel (0) target = $region57
    $region56: #{tpu_custom_call.1} parent=1 // pred_region
      _
    $region57: #{tpu_custom_call.1} parent=1 // pred_fallthru
      _
    %5639 = vsyncpa [#allocation9], 1
    %5640 = vsyncpa [#allocation11], 1

</llo_original>
